<compile_context>
chip_gen: v7x
topology: tpu7x:2x2x1
jax: 0.10.0
libtpu: 0.0.40
codegen_flags: <defaults>
</compile_context>

<pallas_src>
import functools

import jax
import jax.numpy as jnp
from jax.experimental import pallas as pl
from jax.experimental.pallas import tpu as pltpu


# ------------------------------ fused kernel -------------------------------
def _block_quad_kernel(H, W, CP, cout, B, n_layers,
                       x_ref, mask_l_ref, mask_r_ref, sel_ref, *refs):
    # refs = (w1, b1, ..., wL, bL, o_ref, buf_ref, win_ref)
    #   x_ref   : (B, CP, H*W)        B images, channel-first, flat spatial (cin padded to CP)
    #   mask_*  : (1, H*W)            constant column masks for dx = -1 / +1 taps
    #   sel_ref : (B*H*W, B*HWo)      constant 0/1 pool-selection matrix (block diagonal)
    #   w_l     : (cout, 9*CP)        stacked-tap weights, b_l : (cout, 1)
    #   o_ref   : (1, cout, B*HWo)    pooled output block (lane dense)
    #   buf_ref : (CP, B*STRIDE)      haloed running activation, STRIDE = H*W + 2*(W+1)
    #   win_ref : (9*CP, B*H*W)       stacked conv window scratch
    layer_refs = refs[:2 * n_layers]
    o_ref = refs[2 * n_layers]
    buf_ref = refs[2 * n_layers + 1]
    win_ref = refs[2 * n_layers + 2]

    HW = H * W
    OFF = W + 1                       # start of an image inside its halo region
    STRIDE = HW + 2 * OFF

    mask_l = mask_l_ref[...]          # (1, HW), zero where x == 0
    mask_r = mask_r_ref[...]          # (1, HW), zero where x == W-1

    # Zero only the halo strips (image centers are fully overwritten right after),
    # then drop each image into the center of its halo region.
    zeros_strip = jnp.zeros((CP, OFF), jnp.float32)
    for b in range(B):
        base = b * STRIDE
        buf_ref[:, pl.ds(base, OFF)] = zeros_strip
        buf_ref[:, pl.ds(base + OFF + HW, OFF)] = zeros_strip
        buf_ref[:, pl.ds(base + OFF, HW)] = x_ref[b]

    act = None
    for layer in range(n_layers):
        w_ref = layer_refs[2 * layer]
        b_ref = layer_refs[2 * layer + 1]

        # Build the (9*CP, B*HW) stacked window: 9 shifted contiguous halo reads per
        # image, horizontal-tap masks applied during the copy.
        for t in range(9):
            ky, kx = divmod(t, 3)
            dy, dx = ky - 1, kx - 1
            shift = OFF + dy * W + dx              # static, always >= 0
            for b in range(B):
                src = buf_ref[:, pl.ds(b * STRIDE + shift, HW)]   # (CP, HW)
                if dx == -1:
                    src = src * mask_l
                elif dx == 1:
                    src = src * mask_r
                win_ref[pl.ds(t * CP, CP), pl.ds(b * HW, HW)] = src

        # One deep matmul per layer: (cout, 9*CP) @ (9*CP, B*HW) on the MXU.
        act = jnp.dot(w_ref[...], win_ref[...], preferred_element_type=jnp.float32)
        act = jnp.maximum(act + b_ref[...], 0.0)   # bias + ReLU

        # Write back into the (still zero-haloed) buffer for the next layer / pool.
        for b in range(B):
            buf_ref[pl.ds(0, cout), pl.ds(b * STRIDE + OFF, HW)] = \
                act[:, b * HW:(b + 1) * HW]

    # ---------------- fused 2x2 / stride-2 max-pool epilogue ----------------
    # act(y, x) sits at flat lane y*W + x; 2x2 partners are at +1, +W, +W+1 (shifted
    # halo reads).  Wrapped/halo values only land on odd-(y,x) lanes, which the
    # selection matrix never picks, so no masking is needed here.
    pooled = act                                   # (cout, B*HW)
    for t, off in enumerate((1, W, W + 1)):
        for b in range(B):
            win_ref[pl.ds(t * CP, cout), pl.ds(b * HW, HW)] = \
                buf_ref[pl.ds(0, cout), pl.ds(b * STRIDE + OFF + off, HW)]
    for t in range(3):
        pooled = jnp.maximum(pooled, win_ref[pl.ds(t * CP, cout), :])

    # Compact even-(y,x) lanes of every image into one dense (cout, B*HWo) block with a
    # constant 0/1 selection matmul — single unmasked, lane-dense output store.
    o_ref[0] = jnp.dot(pooled, sel_ref[...], preferred_element_type=jnp.float32)


# ------------------------------ public wrapper ------------------------------
def _pick_batch_block(N, HWo):
    """Smallest B dividing N with B*HWo >= 128 lanes (falls back to N)."""
    target = max(1, -(-128 // HWo))
    for B in range(min(target, N), N + 1):
        if N % B == 0:
            return B
    return N


def block_quad_forward(x_nchw, params):
    """Forward pass of Block_quad.

    x_nchw : (N, Cin, H, W) float32, PyTorch NCHW layout.
    params : list of 4 tuples (weight (Cout, Cin_l, 3, 3), bias (Cout,)), PyTorch layout.
    returns: (N, Cout, H//2, W//2) float32.
    """
    N, cin0, H, W = x_nchw.shape
    cout = params[0][0].shape[0]
    n_layers = len(params)
    assert H % 2 == 0 and W % 2 == 0, "2x2/2 maxpool assumes even H and W"

    HW = H * W
    Ho, Wo = H // 2, W // 2
    HWo = Ho * Wo
    CP = ((max(cin0, cout) + 7) // 8) * 8          # channel count padded to sublane tile
    B = _pick_batch_block(N, HWo)                  # images per grid step
    G = N // B
    STRIDE = HW + 2 * (W + 1)
    f32 = jnp.float32

    # Channel-first, flat-spatial input, zero-padded to CP channels.
    x_flat = x_nchw.astype(f32).reshape(N, cin0, HW)
    if CP > cin0:
        x_flat = jnp.pad(x_flat, ((0, 0), (0, CP - cin0), (0, 0)))

    # Constant column masks for the dx = -1 / +1 taps (hoisted out of the kernel).
    xcol = jnp.arange(HW, dtype=jnp.int32) % W
    mask_l = (xcol != 0).astype(f32).reshape(1, HW)
    mask_r = (xcol != W - 1).astype(f32).reshape(1, HW)

    # Constant pool-selection matrix (block diagonal over the B images):
    # sel[b*HW + (2*yo)*W + 2*xo, b*HWo + yo*Wo + xo] = 1.
    r = jnp.arange(B * HW, dtype=jnp.int32)[:, None]
    c = jnp.arange(B * HWo, dtype=jnp.int32)[None, :]
    br, pr = r // HW, r % HW
    bc, pc = c // HWo, c % HWo
    src = (pc // Wo) * (2 * W) + (pc % Wo) * 2
    sel = jnp.where((br == bc) & (pr == src), 1.0, 0.0).astype(f32)

    flat_args = [x_flat, mask_l, mask_r, sel]
    in_specs = [
        pl.BlockSpec((B, CP, HW), lambda n: (n, 0, 0)),
        pl.BlockSpec((1, HW), lambda n: (0, 0)),
        pl.BlockSpec((1, HW), lambda n: (0, 0)),
        pl.BlockSpec((B * HW, B * HWo), lambda n: (0, 0)),
    ]

    # Weight prep: (Cout, Cin_l, 3, 3) -> stacked-tap (Cout, 9*CP), zero-padded in Cin.
    for w, b in params:
        cin_l = w.shape[1]
        wt = jnp.transpose(w.astype(f32), (0, 2, 3, 1)).reshape(cout, 9, cin_l)
        if CP > cin_l:
            wt = jnp.pad(wt, ((0, 0), (0, 0), (0, CP - cin_l)))
        wt = wt.reshape(cout, 9 * CP)
        bt = b.astype(f32).reshape(cout, 1)
        flat_args += [wt, bt]
        in_specs += [pl.BlockSpec((cout, 9 * CP), lambda n: (0, 0)),
                     pl.BlockSpec((cout, 1), lambda n: (0, 0))]

    kernel = functools.partial(_block_quad_kernel, H, W, CP, cout, B, n_layers)
    out = pl.pallas_call(
        kernel,
        out_shape=jax.ShapeDtypeStruct((G, cout, B * HWo), f32),
        grid=(G,),
        in_specs=in_specs,
        out_specs=pl.BlockSpec((1, cout, B * HWo), lambda n: (n, 0, 0)),
        scratch_shapes=[
            pltpu.VMEM((CP, B * STRIDE), f32),     # haloed running activation
            pltpu.VMEM((9 * CP, B * HW), f32),     # stacked conv window
        ],
        compiler_params=pltpu.CompilerParams(
            dimension_semantics=("parallel",)),    # v7x: batch split across both TCs
    )(*flat_args)

    # (G, cout, B*HWo) -> (N, cout, Ho, Wo)
    out = out.reshape(G, cout, B, HWo).transpose(0, 2, 1, 3)
    return out.reshape(N, cout, Ho, Wo)


# ------------------------------ reference & init ----------------------------
def block_quad_reference(x, params):
    """Pure-XLA reference (lax.conv) matching the PyTorch module, for correctness."""
    for w, b in params:
        x = jax.lax.conv_general_dilated(
            x, w, window_strides=(1, 1), padding="SAME",
            dimension_numbers=("NCHW", "OIHW", "NCHW"))
        x = jnp.maximum(x + b[None, :, None, None], 0.0)
    N, C, H, W = x.shape
    return x.reshape(N, C, H // 2, 2, W // 2, 2).max(axis=(3, 5))


def init_params(key, in_channels, out_channels, n_layers=4):
    """PyTorch Conv2d-style init: uniform(+/- 1/sqrt(fan_in)), weights (Cout, Cin, 3, 3)."""
    params = []
    cin = in_channels
    keys = jax.random.split(key, 2 * n_layers)
    for i in range(n_layers):
        fan_in = cin * 3 * 3
        bound = float(fan_in) ** -0.5
        w = jax.random.uniform(keys[2 * i], (out_channels, cin, 3, 3),
                               jnp.float32, -bound, bound)
        b = jax.random.uniform(keys[2 * i + 1], (out_channels,),
                               jnp.float32, -bound, bound)
        params.append((w, b))
        cin = out_channels
    return params


if __name__ == "__main__":
    key = jax.random.PRNGKey(0)
    k_x, k_p = jax.random.split(key)

    in_channels, out_channels = 4, 8
    N, H, W = 2, 16, 16

    x = jax.random.normal(k_x, (N, in_channels, H, W), jnp.float32)   # NCHW like PyTorch
    params = init_params(k_p, in_channels, out_channels)

    fwd = jax.jit(block_quad_forward)
    out = jax.block_until_ready(fwd(x, params))

    assert out.shape == (N, out_channels, H // 2, W // 2), out.shape
    assert out.dtype == jnp.float32
    assert bool(jnp.all(jnp.isfinite(out)))

    ref = block_quad_reference(x, params)
    assert bool(jnp.allclose(out, ref, rtol=1e-4, atol=1e-4)), \
        float(jnp.max(jnp.abs(out - ref)))
    print("KERNEL_OK")
</pallas_src>

<mosaic_0001>
module attributes {stable_mosaic.version = 11 : i64} {
  func.func @_block_quad_kernel(%arg0: i32, %arg1: memref<2x8x256xf32, #tpu.memory_space<vmem>>, %arg2: memref<1x256xf32, #tpu.memory_space<vmem>>, %arg3: memref<1x256xf32, #tpu.memory_space<vmem>>, %arg4: memref<512x128xf32, #tpu.memory_space<vmem>>, %arg5: memref<8x72xf32, #tpu.memory_space<vmem>>, %arg6: memref<8x1xf32, #tpu.memory_space<vmem>>, %arg7: memref<8x72xf32, #tpu.memory_space<vmem>>, %arg8: memref<8x1xf32, #tpu.memory_space<vmem>>, %arg9: memref<8x72xf32, #tpu.memory_space<vmem>>, %arg10: memref<8x1xf32, #tpu.memory_space<vmem>>, %arg11: memref<8x72xf32, #tpu.memory_space<vmem>>, %arg12: memref<8x1xf32, #tpu.memory_space<vmem>>, %arg13: memref<1x8x128xf32, #tpu.memory_space<vmem>>, %arg14: memref<8x580xf32, #tpu.memory_space<vmem>>, %arg15: memref<72x512xf32, #tpu.memory_space<vmem>>) attributes {dimension_semantics = [#tpu.dimension_semantics<parallel>], iteration_bounds = array<i64: 1>, scalar_prefetch = 0 : i64, scratch_operands = 2 : i64, tpu.core_type = #tpu.core_type<tc>, window_params = [{transform_indices = @transform_0, window_bounds = array<i64: 2, 8, 256>}, {pipeline_mode = #tpu.pipeline_mode<synchronous>, transform_indices = @transform_1, window_bounds = array<i64: 1, 256>}, {pipeline_mode = #tpu.pipeline_mode<synchronous>, transform_indices = @transform_2, window_bounds = array<i64: 1, 256>}, {pipeline_mode = #tpu.pipeline_mode<synchronous>, transform_indices = @transform_3, window_bounds = array<i64: 512, 128>}, {pipeline_mode = #tpu.pipeline_mode<synchronous>, transform_indices = @transform_4, window_bounds = array<i64: 8, 72>}, {pipeline_mode = #tpu.pipeline_mode<synchronous>, transform_indices = @transform_5, window_bounds = array<i64: 8, 1>}, {pipeline_mode = #tpu.pipeline_mode<synchronous>, transform_indices = @transform_6, window_bounds = array<i64: 8, 72>}, {pipeline_mode = #tpu.pipeline_mode<synchronous>, transform_indices = @transform_7, window_bounds = array<i64: 8, 1>}, {pipeline_mode = #tpu.pipeline_mode<synchronous>, transform_indices = @transform_8, window_bounds = array<i64: 8, 72>}, {pipeline_mode = #tpu.pipeline_mode<synchronous>, transform_indices = @transform_9, window_bounds = array<i64: 8, 1>}, {pipeline_mode = #tpu.pipeline_mode<synchronous>, transform_indices = @transform_10, window_bounds = array<i64: 8, 72>}, {pipeline_mode = #tpu.pipeline_mode<synchronous>, transform_indices = @transform_11, window_bounds = array<i64: 8, 1>}, {transform_indices = @transform_12, window_bounds = array<i64: 1, 8, 128>}]} {
    %c0 = arith.constant 0 : index
    %c0_0 = arith.constant 0 : index
    %0 = vector.load %arg2[%c0, %c0_0] : memref<1x256xf32, #tpu.memory_space<vmem>>, vector<1x256xf32>
    %c0_1 = arith.constant 0 : index
    %c0_2 = arith.constant 0 : index
    %1 = vector.load %arg3[%c0_1, %c0_2] : memref<1x256xf32, #tpu.memory_space<vmem>>, vector<1x256xf32>
    %cst = arith.constant 0.000000e+00 : f32
    %2 = vector.broadcast %cst : f32 to vector<8x17xf32>
    %c0_3 = arith.constant 0 : index
    %c0_4 = arith.constant 0 : index
    %3 = vector.load %arg14[%c0_3, %c0_4] : memref<8x580xf32, #tpu.memory_space<vmem>>, vector<8x17xf32>
    tpu.vector_store %arg14[%c0_3, %c0_4], %2 {strides = array<i32>} : memref<8x580xf32, #tpu.memory_space<vmem>>, vector<8x17xf32>,
    %c0_5 = arith.constant 0 : index
    %c273 = arith.constant 273 : index
    %4 = vector.load %arg14[%c0_5, %c273] : memref<8x580xf32, #tpu.memory_space<vmem>>, vector<8x17xf32>
    tpu.vector_store %arg14[%c0_5, %c273], %2 {strides = array<i32>} : memref<8x580xf32, #tpu.memory_space<vmem>>, vector<8x17xf32>,
    %c0_6 = arith.constant 0 : index
    %c0_7 = arith.constant 0 : index
    %c0_8 = arith.constant 0 : index
    %5 = vector.load %arg1[%c0_6, %c0_7, %c0_8] : memref<2x8x256xf32, #tpu.memory_space<vmem>>, vector<1x8x256xf32>
    %6 = vector.shape_cast %5 : vector<1x8x256xf32> to vector<8x256xf32>
    %c0_9 = arith.constant 0 : index
    %c17 = arith.constant 17 : index
    %7 = vector.load %arg14[%c0_9, %c17] : memref<8x580xf32, #tpu.memory_space<vmem>>, vector<8x256xf32>
    tpu.vector_store %arg14[%c0_9, %c17], %6 {strides = array<i32>} : memref<8x580xf32, #tpu.memory_space<vmem>>, vector<8x256xf32>,
    %c0_10 = arith.constant 0 : index
    %c290 = arith.constant 290 : index
    %8 = vector.load %arg14[%c0_10, %c290] : memref<8x580xf32, #tpu.memory_space<vmem>>, vector<8x17xf32>
    tpu.vector_store %arg14[%c0_10, %c290], %2 {strides = array<i32>} : memref<8x580xf32, #tpu.memory_space<vmem>>, vector<8x17xf32>,
    %c0_11 = arith.constant 0 : index
    %c563 = arith.constant 563 : index
    %9 = vector.load %arg14[%c0_11, %c563] : memref<8x580xf32, #tpu.memory_space<vmem>>, vector<8x17xf32>
    tpu.vector_store %arg14[%c0_11, %c563], %2 {strides = array<i32>} : memref<8x580xf32, #tpu.memory_space<vmem>>, vector<8x17xf32>,
    %c1 = arith.constant 1 : index
    %c0_12 = arith.constant 0 : index
    %c0_13 = arith.constant 0 : index
    %10 = vector.load %arg1[%c1, %c0_12, %c0_13] : memref<2x8x256xf32, #tpu.memory_space<vmem>>, vector<1x8x256xf32>
    %11 = vector.shape_cast %10 : vector<1x8x256xf32> to vector<8x256xf32>
    %c0_14 = arith.constant 0 : index
    %c307 = arith.constant 307 : index
    %12 = vector.load %arg14[%c0_14, %c307] : memref<8x580xf32, #tpu.memory_space<vmem>>, vector<8x256xf32>
    tpu.vector_store %arg14[%c0_14, %c307], %11 {strides = array<i32>} : memref<8x580xf32, #tpu.memory_space<vmem>>, vector<8x256xf32>,
    %c0_15 = arith.constant 0 : index
    %c0_16 = arith.constant 0 : index
    %13 = vector.load %arg14[%c0_15, %c0_16] : memref<8x580xf32, #tpu.memory_space<vmem>>, vector<8x256xf32>
    %14 = vector.broadcast %0 : vector<1x256xf32> to vector<8x256xf32>
    %15 = arith.mulf %13, %14 : vector<8x256xf32>
    %c0_17 = arith.constant 0 : index
    %c0_18 = arith.constant 0 : index
    %16 = vector.load %arg15[%c0_17, %c0_18] : memref<72x512xf32, #tpu.memory_space<vmem>>, vector<8x256xf32>
    tpu.vector_store %arg15[%c0_17, %c0_18], %15 {strides = array<i32>} : memref<72x512xf32, #tpu.memory_space<vmem>>, vector<8x256xf32>,
    %c0_19 = arith.constant 0 : index
    %c290_20 = arith.constant 290 : index
    %17 = vector.load %arg14[%c0_19, %c290_20] : memref<8x580xf32, #tpu.memory_space<vmem>>, vector<8x256xf32>
    %18 = vector.broadcast %0 : vector<1x256xf32> to vector<8x256xf32>
    %19 = arith.mulf %17, %18 : vector<8x256xf32>
    %c0_21 = arith.constant 0 : index
    %c256 = arith.constant 256 : index
    %20 = vector.load %arg15[%c0_21, %c256] : memref<72x512xf32, #tpu.memory_space<vmem>>, vector<8x256xf32>
    tpu.vector_store %arg15[%c0_21, %c256], %19 {strides = array<i32>} : memref<72x512xf32, #tpu.memory_space<vmem>>, vector<8x256xf32>,
    %c0_22 = arith.constant 0 : index
    %c1_23 = arith.constant 1 : index
    %21 = vector.load %arg14[%c0_22, %c1_23] : memref<8x580xf32, #tpu.memory_space<vmem>>, vector<8x256xf32>
    %c8 = arith.constant 8 : index
    %c0_24 = arith.constant 0 : index
    %22 = vector.load %arg15[%c8, %c0_24] : memref<72x512xf32, #tpu.memory_space<vmem>>, vector<8x256xf32>
    tpu.vector_store %arg15[%c8, %c0_24], %21 {strides = array<i32>} : memref<72x512xf32, #tpu.memory_space<vmem>>, vector<8x256xf32>,
    %c0_25 = arith.constant 0 : index
    %c291 = arith.constant 291 : index
    %23 = vector.load %arg14[%c0_25, %c291] : memref<8x580xf32, #tpu.memory_space<vmem>>, vector<8x256xf32>
    %c8_26 = arith.constant 8 : index
    %c256_27 = arith.constant 256 : index
    %24 = vector.load %arg15[%c8_26, %c256_27] : memref<72x512xf32, #tpu.memory_space<vmem>>, vector<8x256xf32>
    tpu.vector_store %arg15[%c8_26, %c256_27], %23 {strides = array<i32>} : memref<72x512xf32, #tpu.memory_space<vmem>>, vector<8x256xf32>,
    %c0_28 = arith.constant 0 : index
    %c2 = arith.constant 2 : index
    %25 = vector.load %arg14[%c0_28, %c2] : memref<8x580xf32, #tpu.memory_space<vmem>>, vector<8x256xf32>
    %26 = vector.broadcast %1 : vector<1x256xf32> to vector<8x256xf32>
    %27 = arith.mulf %25, %26 : vector<8x256xf32>
    %c16 = arith.constant 16 : index
    %c0_29 = arith.constant 0 : index
    %28 = vector.load %arg15[%c16, %c0_29] : memref<72x512xf32, #tpu.memory_space<vmem>>, vector<8x256xf32>
    tpu.vector_store %arg15[%c16, %c0_29], %27 {strides = array<i32>} : memref<72x512xf32, #tpu.memory_space<vmem>>, vector<8x256xf32>,
    %c0_30 = arith.constant 0 : index
    %c292 = arith.constant 292 : index
    %29 = vector.load %arg14[%c0_30, %c292] : memref<8x580xf32, #tpu.memory_space<vmem>>, vector<8x256xf32>
    %30 = vector.broadcast %1 : vector<1x256xf32> to vector<8x256xf32>
    %31 = arith.mulf %29, %30 : vector<8x256xf32>
    %c16_31 = arith.constant 16 : index
    %c256_32 = arith.constant 256 : index
    %32 = vector.load %arg15[%c16_31, %c256_32] : memref<72x512xf32, #tpu.memory_space<vmem>>, vector<8x256xf32>
    tpu.vector_store %arg15[%c16_31, %c256_32], %31 {strides = array<i32>} : memref<72x512xf32, #tpu.memory_space<vmem>>, vector<8x256xf32>,
    %c0_33 = arith.constant 0 : index
    %c16_34 = arith.constant 16 : index
    %33 = vector.load %arg14[%c0_33, %c16_34] : memref<8x580xf32, #tpu.memory_space<vmem>>, vector<8x256xf32>
    %34 = vector.broadcast %0 : vector<1x256xf32> to vector<8x256xf32>
    %35 = arith.mulf %33, %34 : vector<8x256xf32>
    %c24 = arith.constant 24 : index
    %c0_35 = arith.constant 0 : index
    %36 = vector.load %arg15[%c24, %c0_35] : memref<72x512xf32, #tpu.memory_space<vmem>>, vector<8x256xf32>
    tpu.vector_store %arg15[%c24, %c0_35], %35 {strides = array<i32>} : memref<72x512xf32, #tpu.memory_space<vmem>>, vector<8x256xf32>,
    %c0_36 = arith.constant 0 : index
    %c306 = arith.constant 306 : index
    %37 = vector.load %arg14[%c0_36, %c306] : memref<8x580xf32, #tpu.memory_space<vmem>>, vector<8x256xf32>
    %38 = vector.broadcast %0 : vector<1x256xf32> to vector<8x256xf32>
    %39 = arith.mulf %37, %38 : vector<8x256xf32>
    %c24_37 = arith.constant 24 : index
    %c256_38 = arith.constant 256 : index
    %40 = vector.load %arg15[%c24_37, %c256_38] : memref<72x512xf32, #tpu.memory_space<vmem>>, vector<8x256xf32>
    tpu.vector_store %arg15[%c24_37, %c256_38], %39 {strides = array<i32>} : memref<72x512xf32, #tpu.memory_space<vmem>>, vector<8x256xf32>,
    %c0_39 = arith.constant 0 : index
    %c17_40 = arith.constant 17 : index
    %41 = vector.load %arg14[%c0_39, %c17_40] : memref<8x580xf32, #tpu.memory_space<vmem>>, vector<8x256xf32>
    %c32 = arith.constant 32 : index
    %c0_41 = arith.constant 0 : index
    %42 = vector.load %arg15[%c32, %c0_41] : memref<72x512xf32, #tpu.memory_space<vmem>>, vector<8x256xf32>
    tpu.vector_store %arg15[%c32, %c0_41], %41 {strides = array<i32>} : memref<72x512xf32, #tpu.memory_space<vmem>>, vector<8x256xf32>,
    %c0_42 = arith.constant 0 : index
    %c307_43 = arith.constant 307 : index
    %43 = vector.load %arg14[%c0_42, %c307_43] : memref<8x580xf32, #tpu.memory_space<vmem>>, vector<8x256xf32>
    %c32_44 = arith.constant 32 : index
    %c256_45 = arith.constant 256 : index
    %44 = vector.load %arg15[%c32_44, %c256_45] : memref<72x512xf32, #tpu.memory_space<vmem>>, vector<8x256xf32>
    tpu.vector_store %arg15[%c32_44, %c256_45], %43 {strides = array<i32>} : memref<72x512xf32, #tpu.memory_space<vmem>>, vector<8x256xf32>,
    %c0_46 = arith.constant 0 : index
    %c18 = arith.constant 18 : index
    %45 = vector.load %arg14[%c0_46, %c18] : memref<8x580xf32, #tpu.memory_space<vmem>>, vector<8x256xf32>
    %46 = vector.broadcast %1 : vector<1x256xf32> to vector<8x256xf32>
    %47 = arith.mulf %45, %46 : vector<8x256xf32>
    %c40 = arith.constant 40 : index
    %c0_47 = arith.constant 0 : index
    %48 = vector.load %arg15[%c40, %c0_47] : memref<72x512xf32, #tpu.memory_space<vmem>>, vector<8x256xf32>
    tpu.vector_store %arg15[%c40, %c0_47], %47 {strides = array<i32>} : memref<72x512xf32, #tpu.memory_space<vmem>>, vector<8x256xf32>,
    %c0_48 = arith.constant 0 : index
    %c308 = arith.constant 308 : index
    %49 = vector.load %arg14[%c0_48, %c308] : memref<8x580xf32, #tpu.memory_space<vmem>>, vector<8x256xf32>
    %50 = vector.broadcast %1 : vector<1x256xf32> to vector<8x256xf32>
    %51 = arith.mulf %49, %50 : vector<8x256xf32>
    %c40_49 = arith.constant 40 : index
    %c256_50 = arith.constant 256 : index
    %52 = vector.load %arg15[%c40_49, %c256_50] : memref<72x512xf32, #tpu.memory_space<vmem>>, vector<8x256xf32>
    tpu.vector_store %arg15[%c40_49, %c256_50], %51 {strides = array<i32>} : memref<72x512xf32, #tpu.memory_space<vmem>>, vector<8x256xf32>,
    %c0_51 = arith.constant 0 : index
    %c32_52 = arith.constant 32 : index
    %53 = vector.load %arg14[%c0_51, %c32_52] : memref<8x580xf32, #tpu.memory_space<vmem>>, vector<8x256xf32>
    %54 = vector.broadcast %0 : vector<1x256xf32> to vector<8x256xf32>
    %55 = arith.mulf %53, %54 : vector<8x256xf32>
    %c48 = arith.constant 48 : index
    %c0_53 = arith.constant 0 : index
    %56 = vector.load %arg15[%c48, %c0_53] : memref<72x512xf32, #tpu.memory_space<vmem>>, vector<8x256xf32>
    tpu.vector_store %arg15[%c48, %c0_53], %55 {strides = array<i32>} : memref<72x512xf32, #tpu.memory_space<vmem>>, vector<8x256xf32>,
    %c0_54 = arith.constant 0 : index
    %c322 = arith.constant 322 : index
    %57 = vector.load %arg14[%c0_54, %c322] : memref<8x580xf32, #tpu.memory_space<vmem>>, vector<8x256xf32>
    %58 = vector.broadcast %0 : vector<1x256xf32> to vector<8x256xf32>
    %59 = arith.mulf %57, %58 : vector<8x256xf32>
    %c48_55 = arith.constant 48 : index
    %c256_56 = arith.constant 256 : index
    %60 = vector.load %arg15[%c48_55, %c256_56] : memref<72x512xf32, #tpu.memory_space<vmem>>, vector<8x256xf32>
    tpu.vector_store %arg15[%c48_55, %c256_56], %59 {strides = array<i32>} : memref<72x512xf32, #tpu.memory_space<vmem>>, vector<8x256xf32>,
    %c0_57 = arith.constant 0 : index
    %c33 = arith.constant 33 : index
    %61 = vector.load %arg14[%c0_57, %c33] : memref<8x580xf32, #tpu.memory_space<vmem>>, vector<8x256xf32>
    %c56 = arith.constant 56 : index
    %c0_58 = arith.constant 0 : index
    %62 = vector.load %arg15[%c56, %c0_58] : memref<72x512xf32, #tpu.memory_space<vmem>>, vector<8x256xf32>
    tpu.vector_store %arg15[%c56, %c0_58], %61 {strides = array<i32>} : memref<72x512xf32, #tpu.memory_space<vmem>>, vector<8x256xf32>,
    %c0_59 = arith.constant 0 : index
    %c323 = arith.constant 323 : index
    %63 = vector.load %arg14[%c0_59, %c323] : memref<8x580xf32, #tpu.memory_space<vmem>>, vector<8x256xf32>
    %c56_60 = arith.constant 56 : index
    %c256_61 = arith.constant 256 : index
    %64 = vector.load %arg15[%c56_60, %c256_61] : memref<72x512xf32, #tpu.memory_space<vmem>>, vector<8x256xf32>
    tpu.vector_store %arg15[%c56_60, %c256_61], %63 {strides = array<i32>} : memref<72x512xf32, #tpu.memory_space<vmem>>, vector<8x256xf32>,
    %c0_62 = arith.constant 0 : index
    %c34 = arith.constant 34 : index
    %65 = vector.load %arg14[%c0_62, %c34] : memref<8x580xf32, #tpu.memory_space<vmem>>, vector<8x256xf32>
    %66 = vector.broadcast %1 : vector<1x256xf32> to vector<8x256xf32>
    %67 = arith.mulf %65, %66 : vector<8x256xf32>
    %c64 = arith.constant 64 : index
    %c0_63 = arith.constant 0 : index
    %68 = vector.load %arg15[%c64, %c0_63] : memref<72x512xf32, #tpu.memory_space<vmem>>, vector<8x256xf32>
    tpu.vector_store %arg15[%c64, %c0_63], %67 {strides = array<i32>} : memref<72x512xf32, #tpu.memory_space<vmem>>, vector<8x256xf32>,
    %c0_64 = arith.constant 0 : index
    %c324 = arith.constant 324 : index
    %69 = vector.load %arg14[%c0_64, %c324] : memref<8x580xf32, #tpu.memory_space<vmem>>, vector<8x256xf32>
    %70 = vector.broadcast %1 : vector<1x256xf32> to vector<8x256xf32>
    %71 = arith.mulf %69, %70 : vector<8x256xf32>
    %c64_65 = arith.constant 64 : index
    %c256_66 = arith.constant 256 : index
    %72 = vector.load %arg15[%c64_65, %c256_66] : memref<72x512xf32, #tpu.memory_space<vmem>>, vector<8x256xf32>
    tpu.vector_store %arg15[%c64_65, %c256_66], %71 {strides = array<i32>} : memref<72x512xf32, #tpu.memory_space<vmem>>, vector<8x256xf32>,
    %c0_67 = arith.constant 0 : index
    %c0_68 = arith.constant 0 : index
    %73 = vector.load %arg5[%c0_67, %c0_68] : memref<8x72xf32, #tpu.memory_space<vmem>>, vector<8x72xf32>
    %c0_69 = arith.constant 0 : index
    %c0_70 = arith.constant 0 : index
    %74 = vector.load %arg15[%c0_69, %c0_70] : memref<72x512xf32, #tpu.memory_space<vmem>>, vector<72x512xf32>
    %cst_71 = arith.constant dense<0.000000e+00> : vector<8x512xf32>
    %75 = tpu.matmul %73, %74, %cst_71 {dimension_numbers = #tpu.dot_dimension_numbers<[1], [0], [0], [1], [0, 0, 1, 1], [], []>} : vector<8x72xf32>, vector<72x512xf32>, vector<8x512xf32> -> vector<8x512xf32>
    %c0_72 = arith.constant 0 : index
    %c0_73 = arith.constant 0 : index
    %76 = vector.load %arg6[%c0_72, %c0_73] : memref<8x1xf32, #tpu.memory_space<vmem>>, vector<8x1xf32>
    %77 = vector.broadcast %76 : vector<8x1xf32> to vector<8x512xf32>
    %78 = arith.addf %75, %77 : vector<8x512xf32>
    %cst_74 = arith.constant 0.000000e+00 : f32
    %79 = vector.broadcast %cst_74 : f32 to vector<8x512xf32>
    %80 = arith.maximumf %78, %79 : vector<8x512xf32>
    %81 = vector.extract_strided_slice %80 {offsets = [0, 0], sizes = [8, 256], strides = [1, 1]} : vector<8x512xf32> to vector<8x256xf32>
    %c0_75 = arith.constant 0 : index
    %c17_76 = arith.constant 17 : index
    %82 = vector.load %arg14[%c0_75, %c17_76] : memref<8x580xf32, #tpu.memory_space<vmem>>, vector<8x256xf32>
    tpu.vector_store %arg14[%c0_75, %c17_76], %81 {strides = array<i32>} : memref<8x580xf32, #tpu.memory_space<vmem>>, vector<8x256xf32>,
    %83 = vector.extract_strided_slice %80 {offsets = [0, 256], sizes = [8, 256], strides = [1, 1]} : vector<8x512xf32> to vector<8x256xf32>
    %c0_77 = arith.constant 0 : index
    %c307_78 = arith.constant 307 : index
    %84 = vector.load %arg14[%c0_77, %c307_78] : memref<8x580xf32, #tpu.memory_space<vmem>>, vector<8x256xf32>
    tpu.vector_store %arg14[%c0_77, %c307_78], %83 {strides = array<i32>} : memref<8x580xf32, #tpu.memory_space<vmem>>, vector<8x256xf32>,
    %c0_79 = arith.constant 0 : index
    %c0_80 = arith.constant 0 : index
    %85 = vector.load %arg14[%c0_79, %c0_80] : memref<8x580xf32, #tpu.memory_space<vmem>>, vector<8x256xf32>
    %86 = vector.broadcast %0 : vector<1x256xf32> to vector<8x256xf32>
    %87 = arith.mulf %85, %86 : vector<8x256xf32>
    %c0_81 = arith.constant 0 : index
    %c0_82 = arith.constant 0 : index
    %88 = vector.load %arg15[%c0_81, %c0_82] : memref<72x512xf32, #tpu.memory_space<vmem>>, vector<8x256xf32>
    tpu.vector_store %arg15[%c0_81, %c0_82], %87 {strides = array<i32>} : memref<72x512xf32, #tpu.memory_space<vmem>>, vector<8x256xf32>,
    %c0_83 = arith.constant 0 : index
    %c290_84 = arith.constant 290 : index
    %89 = vector.load %arg14[%c0_83, %c290_84] : memref<8x580xf32, #tpu.memory_space<vmem>>, vector<8x256xf32>
    %90 = vector.broadcast %0 : vector<1x256xf32> to vector<8x256xf32>
    %91 = arith.mulf %89, %90 : vector<8x256xf32>
    %c0_85 = arith.constant 0 : index
    %c256_86 = arith.constant 256 : index
    %92 = vector.load %arg15[%c0_85, %c256_86] : memref<72x512xf32, #tpu.memory_space<vmem>>, vector<8x256xf32>
    tpu.vector_store %arg15[%c0_85, %c256_86], %91 {strides = array<i32>} : memref<72x512xf32, #tpu.memory_space<vmem>>, vector<8x256xf32>,
    %c0_87 = arith.constant 0 : index
    %c1_88 = arith.constant 1 : index
    %93 = vector.load %arg14[%c0_87, %c1_88] : memref<8x580xf32, #tpu.memory_space<vmem>>, vector<8x256xf32>
    %c8_89 = arith.constant 8 : index
    %c0_90 = arith.constant 0 : index
    %94 = vector.load %arg15[%c8_89, %c0_90] : memref<72x512xf32, #tpu.memory_space<vmem>>, vector<8x256xf32>
    tpu.vector_store %arg15[%c8_89, %c0_90], %93 {strides = array<i32>} : memref<72x512xf32, #tpu.memory_space<vmem>>, vector<8x256xf32>,
    %c0_91 = arith.constant 0 : index
    %c291_92 = arith.constant 291 : index
    %95 = vector.load %arg14[%c0_91, %c291_92] : memref<8x580xf32, #tpu.memory_space<vmem>>, vector<8x256xf32>
    %c8_93 = arith.constant 8 : index
    %c256_94 = arith.constant 256 : index
    %96 = vector.load %arg15[%c8_93, %c256_94] : memref<72x512xf32, #tpu.memory_space<vmem>>, vector<8x256xf32>
    tpu.vector_store %arg15[%c8_93, %c256_94], %95 {strides = array<i32>} : memref<72x512xf32, #tpu.memory_space<vmem>>, vector<8x256xf32>,
    %c0_95 = arith.constant 0 : index
    %c2_96 = arith.constant 2 : index
    %97 = vector.load %arg14[%c0_95, %c2_96] : memref<8x580xf32, #tpu.memory_space<vmem>>, vector<8x256xf32>
    %98 = vector.broadcast %1 : vector<1x256xf32> to vector<8x256xf32>
    %99 = arith.mulf %97, %98 : vector<8x256xf32>
    %c16_97 = arith.constant 16 : index
    %c0_98 = arith.constant 0 : index
    %100 = vector.load %arg15[%c16_97, %c0_98] : memref<72x512xf32, #tpu.memory_space<vmem>>, vector<8x256xf32>
    tpu.vector_store %arg15[%c16_97, %c0_98], %99 {strides = array<i32>} : memref<72x512xf32, #tpu.memory_space<vmem>>, vector<8x256xf32>,
    %c0_99 = arith.constant 0 : index
    %c292_100 = arith.constant 292 : index
    %101 = vector.load %arg14[%c0_99, %c292_100] : memref<8x580xf32, #tpu.memory_space<vmem>>, vector<8x256xf32>
    %102 = vector.broadcast %1 : vector<1x256xf32> to vector<8x256xf32>
    %103 = arith.mulf %101, %102 : vector<8x256xf32>
    %c16_101 = arith.constant 16 : index
    %c256_102 = arith.constant 256 : index
    %104 = vector.load %arg15[%c16_101, %c256_102] : memref<72x512xf32, #tpu.memory_space<vmem>>, vector<8x256xf32>
    tpu.vector_store %arg15[%c16_101, %c256_102], %103 {strides = array<i32>} : memref<72x512xf32, #tpu.memory_space<vmem>>, vector<8x256xf32>,
    %c0_103 = arith.constant 0 : index
    %c16_104 = arith.constant 16 : index
    %105 = vector.load %arg14[%c0_103, %c16_104] : memref<8x580xf32, #tpu.memory_space<vmem>>, vector<8x256xf32>
    %106 = vector.broadcast %0 : vector<1x256xf32> to vector<8x256xf32>
    %107 = arith.mulf %105, %106 : vector<8x256xf32>
    %c24_105 = arith.constant 24 : index
    %c0_106 = arith.constant 0 : index
    %108 = vector.load %arg15[%c24_105, %c0_106] : memref<72x512xf32, #tpu.memory_space<vmem>>, vector<8x256xf32>
    tpu.vector_store %arg15[%c24_105, %c0_106], %107 {strides = array<i32>} : memref<72x512xf32, #tpu.memory_space<vmem>>, vector<8x256xf32>,
    %c0_107 = arith.constant 0 : index
    %c306_108 = arith.constant 306 : index
    %109 = vector.load %arg14[%c0_107, %c306_108] : memref<8x580xf32, #tpu.memory_space<vmem>>, vector<8x256xf32>
    %110 = vector.broadcast %0 : vector<1x256xf32> to vector<8x256xf32>
    %111 = arith.mulf %109, %110 : vector<8x256xf32>
    %c24_109 = arith.constant 24 : index
    %c256_110 = arith.constant 256 : index
    %112 = vector.load %arg15[%c24_109, %c256_110] : memref<72x512xf32, #tpu.memory_space<vmem>>, vector<8x256xf32>
    tpu.vector_store %arg15[%c24_109, %c256_110], %111 {strides = array<i32>} : memref<72x512xf32, #tpu.memory_space<vmem>>, vector<8x256xf32>,
    %c0_111 = arith.constant 0 : index
    %c17_112 = arith.constant 17 : index
    %113 = vector.load %arg14[%c0_111, %c17_112] : memref<8x580xf32, #tpu.memory_space<vmem>>, vector<8x256xf32>
    %c32_113 = arith.constant 32 : index
    %c0_114 = arith.constant 0 : index
    %114 = vector.load %arg15[%c32_113, %c0_114] : memref<72x512xf32, #tpu.memory_space<vmem>>, vector<8x256xf32>
    tpu.vector_store %arg15[%c32_113, %c0_114], %113 {strides = array<i32>} : memref<72x512xf32, #tpu.memory_space<vmem>>, vector<8x256xf32>,
    %c0_115 = arith.constant 0 : index
    %c307_116 = arith.constant 307 : index
    %115 = vector.load %arg14[%c0_115, %c307_116] : memref<8x580xf32, #tpu.memory_space<vmem>>, vector<8x256xf32>
    %c32_117 = arith.constant 32 : index
    %c256_118 = arith.constant 256 : index
    %116 = vector.load %arg15[%c32_117, %c256_118] : memref<72x512xf32, #tpu.memory_space<vmem>>, vector<8x256xf32>
    tpu.vector_store %arg15[%c32_117, %c256_118], %115 {strides = array<i32>} : memref<72x512xf32, #tpu.memory_space<vmem>>, vector<8x256xf32>,
    %c0_119 = arith.constant 0 : index
    %c18_120 = arith.constant 18 : index
    %117 = vector.load %arg14[%c0_119, %c18_120] : memref<8x580xf32, #tpu.memory_space<vmem>>, vector<8x256xf32>
    %118 = vector.broadcast %1 : vector<1x256xf32> to vector<8x256xf32>
    %119 = arith.mulf %117, %118 : vector<8x256xf32>
    %c40_121 = arith.constant 40 : index
    %c0_122 = arith.constant 0 : index
    %120 = vector.load %arg15[%c40_121, %c0_122] : memref<72x512xf32, #tpu.memory_space<vmem>>, vector<8x256xf32>
    tpu.vector_store %arg15[%c40_121, %c0_122], %119 {strides = array<i32>} : memref<72x512xf32, #tpu.memory_space<vmem>>, vector<8x256xf32>,
    %c0_123 = arith.constant 0 : index
    %c308_124 = arith.constant 308 : index
    %121 = vector.load %arg14[%c0_123, %c308_124] : memref<8x580xf32, #tpu.memory_space<vmem>>, vector<8x256xf32>
    %122 = vector.broadcast %1 : vector<1x256xf32> to vector<8x256xf32>
    %123 = arith.mulf %121, %122 : vector<8x256xf32>
    %c40_125 = arith.constant 40 : index
    %c256_126 = arith.constant 256 : index
    %124 = vector.load %arg15[%c40_125, %c256_126] : memref<72x512xf32, #tpu.memory_space<vmem>>, vector<8x256xf32>
    tpu.vector_store %arg15[%c40_125, %c256_126], %123 {strides = array<i32>} : memref<72x512xf32, #tpu.memory_space<vmem>>, vector<8x256xf32>,
    %c0_127 = arith.constant 0 : index
    %c32_128 = arith.constant 32 : index
    %125 = vector.load %arg14[%c0_127, %c32_128] : memref<8x580xf32, #tpu.memory_space<vmem>>, vector<8x256xf32>
    %126 = vector.broadcast %0 : vector<1x256xf32> to vector<8x256xf32>
    %127 = arith.mulf %125, %126 : vector<8x256xf32>
    %c48_129 = arith.constant 48 : index
    %c0_130 = arith.constant 0 : index
    %128 = vector.load %arg15[%c48_129, %c0_130] : memref<72x512xf32, #tpu.memory_space<vmem>>, vector<8x256xf32>
    tpu.vector_store %arg15[%c48_129, %c0_130], %127 {strides = array<i32>} : memref<72x512xf32, #tpu.memory_space<vmem>>, vector<8x256xf32>,
    %c0_131 = arith.constant 0 : index
    %c322_132 = arith.constant 322 : index
    %129 = vector.load %arg14[%c0_131, %c322_132] : memref<8x580xf32, #tpu.memory_space<vmem>>, vector<8x256xf32>
    %130 = vector.broadcast %0 : vector<1x256xf32> to vector<8x256xf32>
    %131 = arith.mulf %129, %130 : vector<8x256xf32>
    %c48_133 = arith.constant 48 : index
    %c256_134 = arith.constant 256 : index
    %132 = vector.load %arg15[%c48_133, %c256_134] : memref<72x512xf32, #tpu.memory_space<vmem>>, vector<8x256xf32>
    tpu.vector_store %arg15[%c48_133, %c256_134], %131 {strides = array<i32>} : memref<72x512xf32, #tpu.memory_space<vmem>>, vector<8x256xf32>,
    %c0_135 = arith.constant 0 : index
    %c33_136 = arith.constant 33 : index
    %133 = vector.load %arg14[%c0_135, %c33_136] : memref<8x580xf32, #tpu.memory_space<vmem>>, vector<8x256xf32>
    %c56_137 = arith.constant 56 : index
    %c0_138 = arith.constant 0 : index
    %134 = vector.load %arg15[%c56_137, %c0_138] : memref<72x512xf32, #tpu.memory_space<vmem>>, vector<8x256xf32>
    tpu.vector_store %arg15[%c56_137, %c0_138], %133 {strides = array<i32>} : memref<72x512xf32, #tpu.memory_space<vmem>>, vector<8x256xf32>,
    %c0_139 = arith.constant 0 : index
    %c323_140 = arith.constant 323 : index
    %135 = vector.load %arg14[%c0_139, %c323_140] : memref<8x580xf32, #tpu.memory_space<vmem>>, vector<8x256xf32>
    %c56_141 = arith.constant 56 : index
    %c256_142 = arith.constant 256 : index
    %136 = vector.load %arg15[%c56_141, %c256_142] : memref<72x512xf32, #tpu.memory_space<vmem>>, vector<8x256xf32>
    tpu.vector_store %arg15[%c56_141, %c256_142], %135 {strides = array<i32>} : memref<72x512xf32, #tpu.memory_space<vmem>>, vector<8x256xf32>,
    %c0_143 = arith.constant 0 : index
    %c34_144 = arith.constant 34 : index
    %137 = vector.load %arg14[%c0_143, %c34_144] : memref<8x580xf32, #tpu.memory_space<vmem>>, vector<8x256xf32>
    %138 = vector.broadcast %1 : vector<1x256xf32> to vector<8x256xf32>
    %139 = arith.mulf %137, %138 : vector<8x256xf32>
    %c64_145 = arith.constant 64 : index
    %c0_146 = arith.constant 0 : index
    %140 = vector.load %arg15[%c64_145, %c0_146] : memref<72x512xf32, #tpu.memory_space<vmem>>, vector<8x256xf32>
    tpu.vector_store %arg15[%c64_145, %c0_146], %139 {strides = array<i32>} : memref<72x512xf32, #tpu.memory_space<vmem>>, vector<8x256xf32>,
    %c0_147 = arith.constant 0 : index
    %c324_148 = arith.constant 324 : index
    %141 = vector.load %arg14[%c0_147, %c324_148] : memref<8x580xf32, #tpu.memory_space<vmem>>, vector<8x256xf32>
    %142 = vector.broadcast %1 : vector<1x256xf32> to vector<8x256xf32>
    %143 = arith.mulf %141, %142 : vector<8x256xf32>
    %c64_149 = arith.constant 64 : index
    %c256_150 = arith.constant 256 : index
    %144 = vector.load %arg15[%c64_149, %c256_150] : memref<72x512xf32, #tpu.memory_space<vmem>>, vector<8x256xf32>
    tpu.vector_store %arg15[%c64_149, %c256_150], %143 {strides = array<i32>} : memref<72x512xf32, #tpu.memory_space<vmem>>, vector<8x256xf32>,
    %c0_151 = arith.constant 0 : index
    %c0_152 = arith.constant 0 : index
    %145 = vector.load %arg7[%c0_151, %c0_152] : memref<8x72xf32, #tpu.memory_space<vmem>>, vector<8x72xf32>
    %c0_153 = arith.constant 0 : index
    %c0_154 = arith.constant 0 : index
    %146 = vector.load %arg15[%c0_153, %c0_154] : memref<72x512xf32, #tpu.memory_space<vmem>>, vector<72x512xf32>
    %cst_155 = arith.constant dense<0.000000e+00> : vector<8x512xf32>
    %147 = tpu.matmul %145, %146, %cst_155 {dimension_numbers = #tpu.dot_dimension_numbers<[1], [0], [0], [1], [0, 0, 1, 1], [], []>} : vector<8x72xf32>, vector<72x512xf32>, vector<8x512xf32> -> vector<8x512xf32>
    %c0_156 = arith.constant 0 : index
    %c0_157 = arith.constant 0 : index
    %148 = vector.load %arg8[%c0_156, %c0_157] : memref<8x1xf32, #tpu.memory_space<vmem>>, vector<8x1xf32>
    %149 = vector.broadcast %148 : vector<8x1xf32> to vector<8x512xf32>
    %150 = arith.addf %147, %149 : vector<8x512xf32>
    %cst_158 = arith.constant 0.000000e+00 : f32
    %151 = vector.broadcast %cst_158 : f32 to vector<8x512xf32>
    %152 = arith.maximumf %150, %151 : vector<8x512xf32>
    %153 = vector.extract_strided_slice %152 {offsets = [0, 0], sizes = [8, 256], strides = [1, 1]} : vector<8x512xf32> to vector<8x256xf32>
    %c0_159 = arith.constant 0 : index
    %c17_160 = arith.constant 17 : index
    %154 = vector.load %arg14[%c0_159, %c17_160] : memref<8x580xf32, #tpu.memory_space<vmem>>, vector<8x256xf32>
    tpu.vector_store %arg14[%c0_159, %c17_160], %153 {strides = array<i32>} : memref<8x580xf32, #tpu.memory_space<vmem>>, vector<8x256xf32>,
    %155 = vector.extract_strided_slice %152 {offsets = [0, 256], sizes = [8, 256], strides = [1, 1]} : vector<8x512xf32> to vector<8x256xf32>
    %c0_161 = arith.constant 0 : index
    %c307_162 = arith.constant 307 : index
    %156 = vector.load %arg14[%c0_161, %c307_162] : memref<8x580xf32, #tpu.memory_space<vmem>>, vector<8x256xf32>
    tpu.vector_store %arg14[%c0_161, %c307_162], %155 {strides = array<i32>} : memref<8x580xf32, #tpu.memory_space<vmem>>, vector<8x256xf32>,
    %c0_163 = arith.constant 0 : index
    %c0_164 = arith.constant 0 : index
    %157 = vector.load %arg14[%c0_163, %c0_164] : memref<8x580xf32, #tpu.memory_space<vmem>>, vector<8x256xf32>
    %158 = vector.broadcast %0 : vector<1x256xf32> to vector<8x256xf32>
    %159 = arith.mulf %157, %158 : vector<8x256xf32>
    %c0_165 = arith.constant 0 : index
    %c0_166 = arith.constant 0 : index
    %160 = vector.load %arg15[%c0_165, %c0_166] : memref<72x512xf32, #tpu.memory_space<vmem>>, vector<8x256xf32>
    tpu.vector_store %arg15[%c0_165, %c0_166], %159 {strides = array<i32>} : memref<72x512xf32, #tpu.memory_space<vmem>>, vector<8x256xf32>,
    %c0_167 = arith.constant 0 : index
    %c290_168 = arith.constant 290 : index
    %161 = vector.load %arg14[%c0_167, %c290_168] : memref<8x580xf32, #tpu.memory_space<vmem>>, vector<8x256xf32>
    %162 = vector.broadcast %0 : vector<1x256xf32> to vector<8x256xf32>
    %163 = arith.mulf %161, %162 : vector<8x256xf32>
    %c0_169 = arith.constant 0 : index
    %c256_170 = arith.constant 256 : index
    %164 = vector.load %arg15[%c0_169, %c256_170] : memref<72x512xf32, #tpu.memory_space<vmem>>, vector<8x256xf32>
    tpu.vector_store %arg15[%c0_169, %c256_170], %163 {strides = array<i32>} : memref<72x512xf32, #tpu.memory_space<vmem>>, vector<8x256xf32>,
    %c0_171 = arith.constant 0 : index
    %c1_172 = arith.constant 1 : index
    %165 = vector.load %arg14[%c0_171, %c1_172] : memref<8x580xf32, #tpu.memory_space<vmem>>, vector<8x256xf32>
    %c8_173 = arith.constant 8 : index
    %c0_174 = arith.constant 0 : index
    %166 = vector.load %arg15[%c8_173, %c0_174] : memref<72x512xf32, #tpu.memory_space<vmem>>, vector<8x256xf32>
    tpu.vector_store %arg15[%c8_173, %c0_174], %165 {strides = array<i32>} : memref<72x512xf32, #tpu.memory_space<vmem>>, vector<8x256xf32>,
    %c0_175 = arith.constant 0 : index
    %c291_176 = arith.constant 291 : index
    %167 = vector.load %arg14[%c0_175, %c291_176] : memref<8x580xf32, #tpu.memory_space<vmem>>, vector<8x256xf32>
    %c8_177 = arith.constant 8 : index
    %c256_178 = arith.constant 256 : index
    %168 = vector.load %arg15[%c8_177, %c256_178] : memref<72x512xf32, #tpu.memory_space<vmem>>, vector<8x256xf32>
    tpu.vector_store %arg15[%c8_177, %c256_178], %167 {strides = array<i32>} : memref<72x512xf32, #tpu.memory_space<vmem>>, vector<8x256xf32>,
    %c0_179 = arith.constant 0 : index
    %c2_180 = arith.constant 2 : index
    %169 = vector.load %arg14[%c0_179, %c2_180] : memref<8x580xf32, #tpu.memory_space<vmem>>, vector<8x256xf32>
    %170 = vector.broadcast %1 : vector<1x256xf32> to vector<8x256xf32>
    %171 = arith.mulf %169, %170 : vector<8x256xf32>
    %c16_181 = arith.constant 16 : index
    %c0_182 = arith.constant 0 : index
    %172 = vector.load %arg15[%c16_181, %c0_182] : memref<72x512xf32, #tpu.memory_space<vmem>>, vector<8x256xf32>
    tpu.vector_store %arg15[%c16_181, %c0_182], %171 {strides = array<i32>} : memref<72x512xf32, #tpu.memory_space<vmem>>, vector<8x256xf32>,
    %c0_183 = arith.constant 0 : index
    %c292_184 = arith.constant 292 : index
    %173 = vector.load %arg14[%c0_183, %c292_184] : memref<8x580xf32, #tpu.memory_space<vmem>>, vector<8x256xf32>
    %174 = vector.broadcast %1 : vector<1x256xf32> to vector<8x256xf32>
    %175 = arith.mulf %173, %174 : vector<8x256xf32>
    %c16_185 = arith.constant 16 : index
    %c256_186 = arith.constant 256 : index
    %176 = vector.load %arg15[%c16_185, %c256_186] : memref<72x512xf32, #tpu.memory_space<vmem>>, vector<8x256xf32>
    tpu.vector_store %arg15[%c16_185, %c256_186], %175 {strides = array<i32>} : memref<72x512xf32, #tpu.memory_space<vmem>>, vector<8x256xf32>,
    %c0_187 = arith.constant 0 : index
    %c16_188 = arith.constant 16 : index
    %177 = vector.load %arg14[%c0_187, %c16_188] : memref<8x580xf32, #tpu.memory_space<vmem>>, vector<8x256xf32>
    %178 = vector.broadcast %0 : vector<1x256xf32> to vector<8x256xf32>
    %179 = arith.mulf %177, %178 : vector<8x256xf32>
    %c24_189 = arith.constant 24 : index
    %c0_190 = arith.constant 0 : index
    %180 = vector.load %arg15[%c24_189, %c0_190] : memref<72x512xf32, #tpu.memory_space<vmem>>, vector<8x256xf32>
    tpu.vector_store %arg15[%c24_189, %c0_190], %179 {strides = array<i32>} : memref<72x512xf32, #tpu.memory_space<vmem>>, vector<8x256xf32>,
    %c0_191 = arith.constant 0 : index
    %c306_192 = arith.constant 306 : index
    %181 = vector.load %arg14[%c0_191, %c306_192] : memref<8x580xf32, #tpu.memory_space<vmem>>, vector<8x256xf32>
    %182 = vector.broadcast %0 : vector<1x256xf32> to vector<8x256xf32>
    %183 = arith.mulf %181, %182 : vector<8x256xf32>
    %c24_193 = arith.constant 24 : index
    %c256_194 = arith.constant 256 : index
    %184 = vector.load %arg15[%c24_193, %c256_194] : memref<72x512xf32, #tpu.memory_space<vmem>>, vector<8x256xf32>
    tpu.vector_store %arg15[%c24_193, %c256_194], %183 {strides = array<i32>} : memref<72x512xf32, #tpu.memory_space<vmem>>, vector<8x256xf32>,
    %c0_195 = arith.constant 0 : index
    %c17_196 = arith.constant 17 : index
    %185 = vector.load %arg14[%c0_195, %c17_196] : memref<8x580xf32, #tpu.memory_space<vmem>>, vector<8x256xf32>
    %c32_197 = arith.constant 32 : index
    %c0_198 = arith.constant 0 : index
    %186 = vector.load %arg15[%c32_197, %c0_198] : memref<72x512xf32, #tpu.memory_space<vmem>>, vector<8x256xf32>
    tpu.vector_store %arg15[%c32_197, %c0_198], %185 {strides = array<i32>} : memref<72x512xf32, #tpu.memory_space<vmem>>, vector<8x256xf32>,
    %c0_199 = arith.constant 0 : index
    %c307_200 = arith.constant 307 : index
    %187 = vector.load %arg14[%c0_199, %c307_200] : memref<8x580xf32, #tpu.memory_space<vmem>>, vector<8x256xf32>
    %c32_201 = arith.constant 32 : index
    %c256_202 = arith.constant 256 : index
    %188 = vector.load %arg15[%c32_201, %c256_202] : memref<72x512xf32, #tpu.memory_space<vmem>>, vector<8x256xf32>
    tpu.vector_store %arg15[%c32_201, %c256_202], %187 {strides = array<i32>} : memref<72x512xf32, #tpu.memory_space<vmem>>, vector<8x256xf32>,
    %c0_203 = arith.constant 0 : index
    %c18_204 = arith.constant 18 : index
    %189 = vector.load %arg14[%c0_203, %c18_204] : memref<8x580xf32, #tpu.memory_space<vmem>>, vector<8x256xf32>
    %190 = vector.broadcast %1 : vector<1x256xf32> to vector<8x256xf32>
    %191 = arith.mulf %189, %190 : vector<8x256xf32>
    %c40_205 = arith.constant 40 : index
    %c0_206 = arith.constant 0 : index
    %192 = vector.load %arg15[%c40_205, %c0_206] : memref<72x512xf32, #tpu.memory_space<vmem>>, vector<8x256xf32>
    tpu.vector_store %arg15[%c40_205, %c0_206], %191 {strides = array<i32>} : memref<72x512xf32, #tpu.memory_space<vmem>>, vector<8x256xf32>,
    %c0_207 = arith.constant 0 : index
    %c308_208 = arith.constant 308 : index
    %193 = vector.load %arg14[%c0_207, %c308_208] : memref<8x580xf32, #tpu.memory_space<vmem>>, vector<8x256xf32>
    %194 = vector.broadcast %1 : vector<1x256xf32> to vector<8x256xf32>
    %195 = arith.mulf %193, %194 : vector<8x256xf32>
    %c40_209 = arith.constant 40 : index
    %c256_210 = arith.constant 256 : index
    %196 = vector.load %arg15[%c40_209, %c256_210] : memref<72x512xf32, #tpu.memory_space<vmem>>, vector<8x256xf32>
    tpu.vector_store %arg15[%c40_209, %c256_210], %195 {strides = array<i32>} : memref<72x512xf32, #tpu.memory_space<vmem>>, vector<8x256xf32>,
    %c0_211 = arith.constant 0 : index
    %c32_212 = arith.constant 32 : index
    %197 = vector.load %arg14[%c0_211, %c32_212] : memref<8x580xf32, #tpu.memory_space<vmem>>, vector<8x256xf32>
    %198 = vector.broadcast %0 : vector<1x256xf32> to vector<8x256xf32>
    %199 = arith.mulf %197, %198 : vector<8x256xf32>
    %c48_213 = arith.constant 48 : index
    %c0_214 = arith.constant 0 : index
    %200 = vector.load %arg15[%c48_213, %c0_214] : memref<72x512xf32, #tpu.memory_space<vmem>>, vector<8x256xf32>
    tpu.vector_store %arg15[%c48_213, %c0_214], %199 {strides = array<i32>} : memref<72x512xf32, #tpu.memory_space<vmem>>, vector<8x256xf32>,
    %c0_215 = arith.constant 0 : index
    %c322_216 = arith.constant 322 : index
    %201 = vector.load %arg14[%c0_215, %c322_216] : memref<8x580xf32, #tpu.memory_space<vmem>>, vector<8x256xf32>
    %202 = vector.broadcast %0 : vector<1x256xf32> to vector<8x256xf32>
    %203 = arith.mulf %201, %202 : vector<8x256xf32>
    %c48_217 = arith.constant 48 : index
    %c256_218 = arith.constant 256 : index
    %204 = vector.load %arg15[%c48_217, %c256_218] : memref<72x512xf32, #tpu.memory_space<vmem>>, vector<8x256xf32>
    tpu.vector_store %arg15[%c48_217, %c256_218], %203 {strides = array<i32>} : memref<72x512xf32, #tpu.memory_space<vmem>>, vector<8x256xf32>,
    %c0_219 = arith.constant 0 : index
    %c33_220 = arith.constant 33 : index
    %205 = vector.load %arg14[%c0_219, %c33_220] : memref<8x580xf32, #tpu.memory_space<vmem>>, vector<8x256xf32>
    %c56_221 = arith.constant 56 : index
    %c0_222 = arith.constant 0 : index
    %206 = vector.load %arg15[%c56_221, %c0_222] : memref<72x512xf32, #tpu.memory_space<vmem>>, vector<8x256xf32>
    tpu.vector_store %arg15[%c56_221, %c0_222], %205 {strides = array<i32>} : memref<72x512xf32, #tpu.memory_space<vmem>>, vector<8x256xf32>,
    %c0_223 = arith.constant 0 : index
    %c323_224 = arith.constant 323 : index
    %207 = vector.load %arg14[%c0_223, %c323_224] : memref<8x580xf32, #tpu.memory_space<vmem>>, vector<8x256xf32>
    %c56_225 = arith.constant 56 : index
    %c256_226 = arith.constant 256 : index
    %208 = vector.load %arg15[%c56_225, %c256_226] : memref<72x512xf32, #tpu.memory_space<vmem>>, vector<8x256xf32>
    tpu.vector_store %arg15[%c56_225, %c256_226], %207 {strides = array<i32>} : memref<72x512xf32, #tpu.memory_space<vmem>>, vector<8x256xf32>,
    %c0_227 = arith.constant 0 : index
    %c34_228 = arith.constant 34 : index
    %209 = vector.load %arg14[%c0_227, %c34_228] : memref<8x580xf32, #tpu.memory_space<vmem>>, vector<8x256xf32>
    %210 = vector.broadcast %1 : vector<1x256xf32> to vector<8x256xf32>
    %211 = arith.mulf %209, %210 : vector<8x256xf32>
    %c64_229 = arith.constant 64 : index
    %c0_230 = arith.constant 0 : index
    %212 = vector.load %arg15[%c64_229, %c0_230] : memref<72x512xf32, #tpu.memory_space<vmem>>, vector<8x256xf32>
    tpu.vector_store %arg15[%c64_229, %c0_230], %211 {strides = array<i32>} : memref<72x512xf32, #tpu.memory_space<vmem>>, vector<8x256xf32>,
    %c0_231 = arith.constant 0 : index
    %c324_232 = arith.constant 324 : index
    %213 = vector.load %arg14[%c0_231, %c324_232] : memref<8x580xf32, #tpu.memory_space<vmem>>, vector<8x256xf32>
    %214 = vector.broadcast %1 : vector<1x256xf32> to vector<8x256xf32>
    %215 = arith.mulf %213, %214 : vector<8x256xf32>
    %c64_233 = arith.constant 64 : index
    %c256_234 = arith.constant 256 : index
    %216 = vector.load %arg15[%c64_233, %c256_234] : memref<72x512xf32, #tpu.memory_space<vmem>>, vector<8x256xf32>
    tpu.vector_store %arg15[%c64_233, %c256_234], %215 {strides = array<i32>} : memref<72x512xf32, #tpu.memory_space<vmem>>, vector<8x256xf32>,
    %c0_235 = arith.constant 0 : index
    %c0_236 = arith.constant 0 : index
    %217 = vector.load %arg9[%c0_235, %c0_236] : memref<8x72xf32, #tpu.memory_space<vmem>>, vector<8x72xf32>
    %c0_237 = arith.constant 0 : index
    %c0_238 = arith.constant 0 : index
    %218 = vector.load %arg15[%c0_237, %c0_238] : memref<72x512xf32, #tpu.memory_space<vmem>>, vector<72x512xf32>
    %cst_239 = arith.constant dense<0.000000e+00> : vector<8x512xf32>
    %219 = tpu.matmul %217, %218, %cst_239 {dimension_numbers = #tpu.dot_dimension_numbers<[1], [0], [0], [1], [0, 0, 1, 1], [], []>} : vector<8x72xf32>, vector<72x512xf32>, vector<8x512xf32> -> vector<8x512xf32>
    %c0_240 = arith.constant 0 : index
    %c0_241 = arith.constant 0 : index
    %220 = vector.load %arg10[%c0_240, %c0_241] : memref<8x1xf32, #tpu.memory_space<vmem>>, vector<8x1xf32>
    %221 = vector.broadcast %220 : vector<8x1xf32> to vector<8x512xf32>
    %222 = arith.addf %219, %221 : vector<8x512xf32>
    %cst_242 = arith.constant 0.000000e+00 : f32
    %223 = vector.broadcast %cst_242 : f32 to vector<8x512xf32>
    %224 = arith.maximumf %222, %223 : vector<8x512xf32>
    %225 = vector.extract_strided_slice %224 {offsets = [0, 0], sizes = [8, 256], strides = [1, 1]} : vector<8x512xf32> to vector<8x256xf32>
    %c0_243 = arith.constant 0 : index
    %c17_244 = arith.constant 17 : index
    %226 = vector.load %arg14[%c0_243, %c17_244] : memref<8x580xf32, #tpu.memory_space<vmem>>, vector<8x256xf32>
    tpu.vector_store %arg14[%c0_243, %c17_244], %225 {strides = array<i32>} : memref<8x580xf32, #tpu.memory_space<vmem>>, vector<8x256xf32>,
    %227 = vector.extract_strided_slice %224 {offsets = [0, 256], sizes = [8, 256], strides = [1, 1]} : vector<8x512xf32> to vector<8x256xf32>
    %c0_245 = arith.constant 0 : index
    %c307_246 = arith.constant 307 : index
    %228 = vector.load %arg14[%c0_245, %c307_246] : memref<8x580xf32, #tpu.memory_space<vmem>>, vector<8x256xf32>
    tpu.vector_store %arg14[%c0_245, %c307_246], %227 {strides = array<i32>} : memref<8x580xf32, #tpu.memory_space<vmem>>, vector<8x256xf32>,
    %c0_247 = arith.constant 0 : index
    %c0_248 = arith.constant 0 : index
    %229 = vector.load %arg14[%c0_247, %c0_248] : memref<8x580xf32, #tpu.memory_space<vmem>>, vector<8x256xf32>
    %230 = vector.broadcast %0 : vector<1x256xf32> to vector<8x256xf32>
    %231 = arith.mulf %229, %230 : vector<8x256xf32>
    %c0_249 = arith.constant 0 : index
    %c0_250 = arith.constant 0 : index
    %232 = vector.load %arg15[%c0_249, %c0_250] : memref<72x512xf32, #tpu.memory_space<vmem>>, vector<8x256xf32>
    tpu.vector_store %arg15[%c0_249, %c0_250], %231 {strides = array<i32>} : memref<72x512xf32, #tpu.memory_space<vmem>>, vector<8x256xf32>,
    %c0_251 = arith.constant 0 : index
    %c290_252 = arith.constant 290 : index
    %233 = vector.load %arg14[%c0_251, %c290_252] : memref<8x580xf32, #tpu.memory_space<vmem>>, vector<8x256xf32>
    %234 = vector.broadcast %0 : vector<1x256xf32> to vector<8x256xf32>
    %235 = arith.mulf %233, %234 : vector<8x256xf32>
    %c0_253 = arith.constant 0 : index
    %c256_254 = arith.constant 256 : index
    %236 = vector.load %arg15[%c0_253, %c256_254] : memref<72x512xf32, #tpu.memory_space<vmem>>, vector<8x256xf32>
    tpu.vector_store %arg15[%c0_253, %c256_254], %235 {strides = array<i32>} : memref<72x512xf32, #tpu.memory_space<vmem>>, vector<8x256xf32>,
    %c0_255 = arith.constant 0 : index
    %c1_256 = arith.constant 1 : index
    %237 = vector.load %arg14[%c0_255, %c1_256] : memref<8x580xf32, #tpu.memory_space<vmem>>, vector<8x256xf32>
    %c8_257 = arith.constant 8 : index
    %c0_258 = arith.constant 0 : index
    %238 = vector.load %arg15[%c8_257, %c0_258] : memref<72x512xf32, #tpu.memory_space<vmem>>, vector<8x256xf32>
    tpu.vector_store %arg15[%c8_257, %c0_258], %237 {strides = array<i32>} : memref<72x512xf32, #tpu.memory_space<vmem>>, vector<8x256xf32>,
    %c0_259 = arith.constant 0 : index
    %c291_260 = arith.constant 291 : index
    %239 = vector.load %arg14[%c0_259, %c291_260] : memref<8x580xf32, #tpu.memory_space<vmem>>, vector<8x256xf32>
    %c8_261 = arith.constant 8 : index
    %c256_262 = arith.constant 256 : index
    %240 = vector.load %arg15[%c8_261, %c256_262] : memref<72x512xf32, #tpu.memory_space<vmem>>, vector<8x256xf32>
    tpu.vector_store %arg15[%c8_261, %c256_262], %239 {strides = array<i32>} : memref<72x512xf32, #tpu.memory_space<vmem>>, vector<8x256xf32>,
    %c0_263 = arith.constant 0 : index
    %c2_264 = arith.constant 2 : index
    %241 = vector.load %arg14[%c0_263, %c2_264] : memref<8x580xf32, #tpu.memory_space<vmem>>, vector<8x256xf32>
    %242 = vector.broadcast %1 : vector<1x256xf32> to vector<8x256xf32>
    %243 = arith.mulf %241, %242 : vector<8x256xf32>
    %c16_265 = arith.constant 16 : index
    %c0_266 = arith.constant 0 : index
    %244 = vector.load %arg15[%c16_265, %c0_266] : memref<72x512xf32, #tpu.memory_space<vmem>>, vector<8x256xf32>
    tpu.vector_store %arg15[%c16_265, %c0_266], %243 {strides = array<i32>} : memref<72x512xf32, #tpu.memory_space<vmem>>, vector<8x256xf32>,
    %c0_267 = arith.constant 0 : index
    %c292_268 = arith.constant 292 : index
    %245 = vector.load %arg14[%c0_267, %c292_268] : memref<8x580xf32, #tpu.memory_space<vmem>>, vector<8x256xf32>
    %246 = vector.broadcast %1 : vector<1x256xf32> to vector<8x256xf32>
    %247 = arith.mulf %245, %246 : vector<8x256xf32>
    %c16_269 = arith.constant 16 : index
    %c256_270 = arith.constant 256 : index
    %248 = vector.load %arg15[%c16_269, %c256_270] : memref<72x512xf32, #tpu.memory_space<vmem>>, vector<8x256xf32>
    tpu.vector_store %arg15[%c16_269, %c256_270], %247 {strides = array<i32>} : memref<72x512xf32, #tpu.memory_space<vmem>>, vector<8x256xf32>,
    %c0_271 = arith.constant 0 : index
    %c16_272 = arith.constant 16 : index
    %249 = vector.load %arg14[%c0_271, %c16_272] : memref<8x580xf32, #tpu.memory_space<vmem>>, vector<8x256xf32>
    %250 = vector.broadcast %0 : vector<1x256xf32> to vector<8x256xf32>
    %251 = arith.mulf %249, %250 : vector<8x256xf32>
    %c24_273 = arith.constant 24 : index
    %c0_274 = arith.constant 0 : index
    %252 = vector.load %arg15[%c24_273, %c0_274] : memref<72x512xf32, #tpu.memory_space<vmem>>, vector<8x256xf32>
    tpu.vector_store %arg15[%c24_273, %c0_274], %251 {strides = array<i32>} : memref<72x512xf32, #tpu.memory_space<vmem>>, vector<8x256xf32>,
    %c0_275 = arith.constant 0 : index
    %c306_276 = arith.constant 306 : index
    %253 = vector.load %arg14[%c0_275, %c306_276] : memref<8x580xf32, #tpu.memory_space<vmem>>, vector<8x256xf32>
    %254 = vector.broadcast %0 : vector<1x256xf32> to vector<8x256xf32>
    %255 = arith.mulf %253, %254 : vector<8x256xf32>
    %c24_277 = arith.constant 24 : index
    %c256_278 = arith.constant 256 : index
    %256 = vector.load %arg15[%c24_277, %c256_278] : memref<72x512xf32, #tpu.memory_space<vmem>>, vector<8x256xf32>
    tpu.vector_store %arg15[%c24_277, %c256_278], %255 {strides = array<i32>} : memref<72x512xf32, #tpu.memory_space<vmem>>, vector<8x256xf32>,
    %c0_279 = arith.constant 0 : index
    %c17_280 = arith.constant 17 : index
    %257 = vector.load %arg14[%c0_279, %c17_280] : memref<8x580xf32, #tpu.memory_space<vmem>>, vector<8x256xf32>
    %c32_281 = arith.constant 32 : index
    %c0_282 = arith.constant 0 : index
    %258 = vector.load %arg15[%c32_281, %c0_282] : memref<72x512xf32, #tpu.memory_space<vmem>>, vector<8x256xf32>
    tpu.vector_store %arg15[%c32_281, %c0_282], %257 {strides = array<i32>} : memref<72x512xf32, #tpu.memory_space<vmem>>, vector<8x256xf32>,
    %c0_283 = arith.constant 0 : index
    %c307_284 = arith.constant 307 : index
    %259 = vector.load %arg14[%c0_283, %c307_284] : memref<8x580xf32, #tpu.memory_space<vmem>>, vector<8x256xf32>
    %c32_285 = arith.constant 32 : index
    %c256_286 = arith.constant 256 : index
    %260 = vector.load %arg15[%c32_285, %c256_286] : memref<72x512xf32, #tpu.memory_space<vmem>>, vector<8x256xf32>
    tpu.vector_store %arg15[%c32_285, %c256_286], %259 {strides = array<i32>} : memref<72x512xf32, #tpu.memory_space<vmem>>, vector<8x256xf32>,
    %c0_287 = arith.constant 0 : index
    %c18_288 = arith.constant 18 : index
    %261 = vector.load %arg14[%c0_287, %c18_288] : memref<8x580xf32, #tpu.memory_space<vmem>>, vector<8x256xf32>
    %262 = vector.broadcast %1 : vector<1x256xf32> to vector<8x256xf32>
    %263 = arith.mulf %261, %262 : vector<8x256xf32>
    %c40_289 = arith.constant 40 : index
    %c0_290 = arith.constant 0 : index
    %264 = vector.load %arg15[%c40_289, %c0_290] : memref<72x512xf32, #tpu.memory_space<vmem>>, vector<8x256xf32>
    tpu.vector_store %arg15[%c40_289, %c0_290], %263 {strides = array<i32>} : memref<72x512xf32, #tpu.memory_space<vmem>>, vector<8x256xf32>,
    %c0_291 = arith.constant 0 : index
    %c308_292 = arith.constant 308 : index
    %265 = vector.load %arg14[%c0_291, %c308_292] : memref<8x580xf32, #tpu.memory_space<vmem>>, vector<8x256xf32>
    %266 = vector.broadcast %1 : vector<1x256xf32> to vector<8x256xf32>
    %267 = arith.mulf %265, %266 : vector<8x256xf32>
    %c40_293 = arith.constant 40 : index
    %c256_294 = arith.constant 256 : index
    %268 = vector.load %arg15[%c40_293, %c256_294] : memref<72x512xf32, #tpu.memory_space<vmem>>, vector<8x256xf32>
    tpu.vector_store %arg15[%c40_293, %c256_294], %267 {strides = array<i32>} : memref<72x512xf32, #tpu.memory_space<vmem>>, vector<8x256xf32>,
    %c0_295 = arith.constant 0 : index
    %c32_296 = arith.constant 32 : index
    %269 = vector.load %arg14[%c0_295, %c32_296] : memref<8x580xf32, #tpu.memory_space<vmem>>, vector<8x256xf32>
    %270 = vector.broadcast %0 : vector<1x256xf32> to vector<8x256xf32>
    %271 = arith.mulf %269, %270 : vector<8x256xf32>
    %c48_297 = arith.constant 48 : index
    %c0_298 = arith.constant 0 : index
    %272 = vector.load %arg15[%c48_297, %c0_298] : memref<72x512xf32, #tpu.memory_space<vmem>>, vector<8x256xf32>
    tpu.vector_store %arg15[%c48_297, %c0_298], %271 {strides = array<i32>} : memref<72x512xf32, #tpu.memory_space<vmem>>, vector<8x256xf32>,
    %c0_299 = arith.constant 0 : index
    %c322_300 = arith.constant 322 : index
    %273 = vector.load %arg14[%c0_299, %c322_300] : memref<8x580xf32, #tpu.memory_space<vmem>>, vector<8x256xf32>
    %274 = vector.broadcast %0 : vector<1x256xf32> to vector<8x256xf32>
    %275 = arith.mulf %273, %274 : vector<8x256xf32>
    %c48_301 = arith.constant 48 : index
    %c256_302 = arith.constant 256 : index
    %276 = vector.load %arg15[%c48_301, %c256_302] : memref<72x512xf32, #tpu.memory_space<vmem>>, vector<8x256xf32>
    tpu.vector_store %arg15[%c48_301, %c256_302], %275 {strides = array<i32>} : memref<72x512xf32, #tpu.memory_space<vmem>>, vector<8x256xf32>,
    %c0_303 = arith.constant 0 : index
    %c33_304 = arith.constant 33 : index
    %277 = vector.load %arg14[%c0_303, %c33_304] : memref<8x580xf32, #tpu.memory_space<vmem>>, vector<8x256xf32>
    %c56_305 = arith.constant 56 : index
    %c0_306 = arith.constant 0 : index
    %278 = vector.load %arg15[%c56_305, %c0_306] : memref<72x512xf32, #tpu.memory_space<vmem>>, vector<8x256xf32>
    tpu.vector_store %arg15[%c56_305, %c0_306], %277 {strides = array<i32>} : memref<72x512xf32, #tpu.memory_space<vmem>>, vector<8x256xf32>,
    %c0_307 = arith.constant 0 : index
    %c323_308 = arith.constant 323 : index
    %279 = vector.load %arg14[%c0_307, %c323_308] : memref<8x580xf32, #tpu.memory_space<vmem>>, vector<8x256xf32>
    %c56_309 = arith.constant 56 : index
    %c256_310 = arith.constant 256 : index
    %280 = vector.load %arg15[%c56_309, %c256_310] : memref<72x512xf32, #tpu.memory_space<vmem>>, vector<8x256xf32>
    tpu.vector_store %arg15[%c56_309, %c256_310], %279 {strides = array<i32>} : memref<72x512xf32, #tpu.memory_space<vmem>>, vector<8x256xf32>,
    %c0_311 = arith.constant 0 : index
    %c34_312 = arith.constant 34 : index
    %281 = vector.load %arg14[%c0_311, %c34_312] : memref<8x580xf32, #tpu.memory_space<vmem>>, vector<8x256xf32>
    %282 = vector.broadcast %1 : vector<1x256xf32> to vector<8x256xf32>
    %283 = arith.mulf %281, %282 : vector<8x256xf32>
    %c64_313 = arith.constant 64 : index
    %c0_314 = arith.constant 0 : index
    %284 = vector.load %arg15[%c64_313, %c0_314] : memref<72x512xf32, #tpu.memory_space<vmem>>, vector<8x256xf32>
    tpu.vector_store %arg15[%c64_313, %c0_314], %283 {strides = array<i32>} : memref<72x512xf32, #tpu.memory_space<vmem>>, vector<8x256xf32>,
    %c0_315 = arith.constant 0 : index
    %c324_316 = arith.constant 324 : index
    %285 = vector.load %arg14[%c0_315, %c324_316] : memref<8x580xf32, #tpu.memory_space<vmem>>, vector<8x256xf32>
    %286 = vector.broadcast %1 : vector<1x256xf32> to vector<8x256xf32>
    %287 = arith.mulf %285, %286 : vector<8x256xf32>
    %c64_317 = arith.constant 64 : index
    %c256_318 = arith.constant 256 : index
    %288 = vector.load %arg15[%c64_317, %c256_318] : memref<72x512xf32, #tpu.memory_space<vmem>>, vector<8x256xf32>
    tpu.vector_store %arg15[%c64_317, %c256_318], %287 {strides = array<i32>} : memref<72x512xf32, #tpu.memory_space<vmem>>, vector<8x256xf32>,
    %c0_319 = arith.constant 0 : index
    %c0_320 = arith.constant 0 : index
    %289 = vector.load %arg11[%c0_319, %c0_320] : memref<8x72xf32, #tpu.memory_space<vmem>>, vector<8x72xf32>
    %c0_321 = arith.constant 0 : index
    %c0_322 = arith.constant 0 : index
    %290 = vector.load %arg15[%c0_321, %c0_322] : memref<72x512xf32, #tpu.memory_space<vmem>>, vector<72x512xf32>
    %cst_323 = arith.constant dense<0.000000e+00> : vector<8x512xf32>
    %291 = tpu.matmul %289, %290, %cst_323 {dimension_numbers = #tpu.dot_dimension_numbers<[1], [0], [0], [1], [0, 0, 1, 1], [], []>} : vector<8x72xf32>, vector<72x512xf32>, vector<8x512xf32> -> vector<8x512xf32>
    %c0_324 = arith.constant 0 : index
    %c0_325 = arith.constant 0 : index
    %292 = vector.load %arg12[%c0_324, %c0_325] : memref<8x1xf32, #tpu.memory_space<vmem>>, vector<8x1xf32>
    %293 = vector.broadcast %292 : vector<8x1xf32> to vector<8x512xf32>
    %294 = arith.addf %291, %293 : vector<8x512xf32>
    %cst_326 = arith.constant 0.000000e+00 : f32
    %295 = vector.broadcast %cst_326 : f32 to vector<8x512xf32>
    %296 = arith.maximumf %294, %295 : vector<8x512xf32>
    %297 = vector.extract_strided_slice %296 {offsets = [0, 0], sizes = [8, 256], strides = [1, 1]} : vector<8x512xf32> to vector<8x256xf32>
    %c0_327 = arith.constant 0 : index
    %c17_328 = arith.constant 17 : index
    %298 = vector.load %arg14[%c0_327, %c17_328] : memref<8x580xf32, #tpu.memory_space<vmem>>, vector<8x256xf32>
    tpu.vector_store %arg14[%c0_327, %c17_328], %297 {strides = array<i32>} : memref<8x580xf32, #tpu.memory_space<vmem>>, vector<8x256xf32>,
    %299 = vector.extract_strided_slice %296 {offsets = [0, 256], sizes = [8, 256], strides = [1, 1]} : vector<8x512xf32> to vector<8x256xf32>
    %c0_329 = arith.constant 0 : index
    %c307_330 = arith.constant 307 : index
    %300 = vector.load %arg14[%c0_329, %c307_330] : memref<8x580xf32, #tpu.memory_space<vmem>>, vector<8x256xf32>
    tpu.vector_store %arg14[%c0_329, %c307_330], %299 {strides = array<i32>} : memref<8x580xf32, #tpu.memory_space<vmem>>, vector<8x256xf32>,
    %c0_331 = arith.constant 0 : index
    %c18_332 = arith.constant 18 : index
    %301 = vector.load %arg14[%c0_331, %c18_332] : memref<8x580xf32, #tpu.memory_space<vmem>>, vector<8x256xf32>
    %c0_333 = arith.constant 0 : index
    %c0_334 = arith.constant 0 : index
    %302 = vector.load %arg15[%c0_333, %c0_334] : memref<72x512xf32, #tpu.memory_space<vmem>>, vector<8x256xf32>
    tpu.vector_store %arg15[%c0_333, %c0_334], %301 {strides = array<i32>} : memref<72x512xf32, #tpu.memory_space<vmem>>, vector<8x256xf32>,
    %c0_335 = arith.constant 0 : index
    %c308_336 = arith.constant 308 : index
    %303 = vector.load %arg14[%c0_335, %c308_336] : memref<8x580xf32, #tpu.memory_space<vmem>>, vector<8x256xf32>
    %c0_337 = arith.constant 0 : index
    %c256_338 = arith.constant 256 : index
    %304 = vector.load %arg15[%c0_337, %c256_338] : memref<72x512xf32, #tpu.memory_space<vmem>>, vector<8x256xf32>
    tpu.vector_store %arg15[%c0_337, %c256_338], %303 {strides = array<i32>} : memref<72x512xf32, #tpu.memory_space<vmem>>, vector<8x256xf32>,
    %c0_339 = arith.constant 0 : index
    %c33_340 = arith.constant 33 : index
    %305 = vector.load %arg14[%c0_339, %c33_340] : memref<8x580xf32, #tpu.memory_space<vmem>>, vector<8x256xf32>
    %c8_341 = arith.constant 8 : index
    %c0_342 = arith.constant 0 : index
    %306 = vector.load %arg15[%c8_341, %c0_342] : memref<72x512xf32, #tpu.memory_space<vmem>>, vector<8x256xf32>
    tpu.vector_store %arg15[%c8_341, %c0_342], %305 {strides = array<i32>} : memref<72x512xf32, #tpu.memory_space<vmem>>, vector<8x256xf32>,
    %c0_343 = arith.constant 0 : index
    %c323_344 = arith.constant 323 : index
    %307 = vector.load %arg14[%c0_343, %c323_344] : memref<8x580xf32, #tpu.memory_space<vmem>>, vector<8x256xf32>
    %c8_345 = arith.constant 8 : index
    %c256_346 = arith.constant 256 : index
    %308 = vector.load %arg15[%c8_345, %c256_346] : memref<72x512xf32, #tpu.memory_space<vmem>>, vector<8x256xf32>
    tpu.vector_store %arg15[%c8_345, %c256_346], %307 {strides = array<i32>} : memref<72x512xf32, #tpu.memory_space<vmem>>, vector<8x256xf32>,
    %c0_347 = arith.constant 0 : index
    %c34_348 = arith.constant 34 : index
    %309 = vector.load %arg14[%c0_347, %c34_348] : memref<8x580xf32, #tpu.memory_space<vmem>>, vector<8x256xf32>
    %c16_349 = arith.constant 16 : index
    %c0_350 = arith.constant 0 : index
    %310 = vector.load %arg15[%c16_349, %c0_350] : memref<72x512xf32, #tpu.memory_space<vmem>>, vector<8x256xf32>
    tpu.vector_store %arg15[%c16_349, %c0_350], %309 {strides = array<i32>} : memref<72x512xf32, #tpu.memory_space<vmem>>, vector<8x256xf32>,
    %c0_351 = arith.constant 0 : index
    %c324_352 = arith.constant 324 : index
    %311 = vector.load %arg14[%c0_351, %c324_352] : memref<8x580xf32, #tpu.memory_space<vmem>>, vector<8x256xf32>
    %c16_353 = arith.constant 16 : index
    %c256_354 = arith.constant 256 : index
    %312 = vector.load %arg15[%c16_353, %c256_354] : memref<72x512xf32, #tpu.memory_space<vmem>>, vector<8x256xf32>
    tpu.vector_store %arg15[%c16_353, %c256_354], %311 {strides = array<i32>} : memref<72x512xf32, #tpu.memory_space<vmem>>, vector<8x256xf32>,
    %c0_355 = arith.constant 0 : index
    %c0_356 = arith.constant 0 : index
    %313 = vector.load %arg15[%c0_355, %c0_356] : memref<72x512xf32, #tpu.memory_space<vmem>>, vector<8x512xf32>
    %314 = arith.maximumf %296, %313 : vector<8x512xf32>
    %c8_357 = arith.constant 8 : index
    %c0_358 = arith.constant 0 : index
    %315 = vector.load %arg15[%c8_357, %c0_358] : memref<72x512xf32, #tpu.memory_space<vmem>>, vector<8x512xf32>
    %316 = arith.maximumf %314, %315 : vector<8x512xf32>
    %c16_359 = arith.constant 16 : index
    %c0_360 = arith.constant 0 : index
    %317 = vector.load %arg15[%c16_359, %c0_360] : memref<72x512xf32, #tpu.memory_space<vmem>>, vector<8x512xf32>
    %318 = arith.maximumf %316, %317 : vector<8x512xf32>
    %c0_361 = arith.constant 0 : index
    %c0_362 = arith.constant 0 : index
    %319 = vector.load %arg4[%c0_361, %c0_362] : memref<512x128xf32, #tpu.memory_space<vmem>>, vector<512x128xf32>
    %cst_363 = arith.constant dense<0.000000e+00> : vector<8x128xf32>
    %320 = tpu.matmul %318, %319, %cst_363 {dimension_numbers = #tpu.dot_dimension_numbers<[1], [0], [0], [1], [0, 0, 1, 1], [], []>} : vector<8x512xf32>, vector<512x128xf32>, vector<8x128xf32> -> vector<8x128xf32>
    %c0_364 = arith.constant 0 : index
    %c0_365 = arith.constant 0 : index
    %c0_366 = arith.constant 0 : index
    %321 = vector.load %arg13[%c0_364, %c0_365, %c0_366] : memref<1x8x128xf32, #tpu.memory_space<vmem>>, vector<1x8x128xf32>
    %322 = vector.shape_cast %321 : vector<1x8x128xf32> to vector<8x128xf32>
    %323 = vector.shape_cast %320 : vector<8x128xf32> to vector<1x8x128xf32>
    tpu.vector_store %arg13[%c0_364, %c0_365, %c0_366], %323 {strides = array<i32>} : memref<1x8x128xf32, #tpu.memory_space<vmem>>, vector<1x8x128xf32>,
    return
  }
  func.func @transform_0(%arg0: i32) -> (i32, i32, i32) {
    %c0_i32 = arith.constant 0 : i32
    %c0_i32_0 = arith.constant 0 : i32
    %c0_i32_1 = arith.constant 0 : i32
    return %arg0, %c0_i32, %c0_i32_0 : i32, i32, i32
  }
  func.func @transform_1(%arg0: i32) -> (i32, i32) {
    %c0_i32 = arith.constant 0 : i32
    %c0_i32_0 = arith.constant 0 : i32
    %c0_i32_1 = arith.constant 0 : i32
    return %c0_i32, %c0_i32_0 : i32, i32
  }
  func.func @transform_2(%arg0: i32) -> (i32, i32) {
    %c0_i32 = arith.constant 0 : i32
    %c0_i32_0 = arith.constant 0 : i32
    %c0_i32_1 = arith.constant 0 : i32
    return %c0_i32, %c0_i32_0 : i32, i32
  }
  func.func @transform_3(%arg0: i32) -> (i32, i32) {
    %c0_i32 = arith.constant 0 : i32
    %c0_i32_0 = arith.constant 0 : i32
    %c0_i32_1 = arith.constant 0 : i32
    return %c0_i32, %c0_i32_0 : i32, i32
  }
  func.func @transform_4(%arg0: i32) -> (i32, i32) {
    %c0_i32 = arith.constant 0 : i32
    %c0_i32_0 = arith.constant 0 : i32
    %c0_i32_1 = arith.constant 0 : i32
    return %c0_i32, %c0_i32_0 : i32, i32
  }
  func.func @transform_5(%arg0: i32) -> (i32, i32) {
    %c0_i32 = arith.constant 0 : i32
    %c0_i32_0 = arith.constant 0 : i32
    %c0_i32_1 = arith.constant 0 : i32
    return %c0_i32, %c0_i32_0 : i32, i32
  }
  func.func @transform_6(%arg0: i32) -> (i32, i32) {
    %c0_i32 = arith.constant 0 : i32
    %c0_i32_0 = arith.constant 0 : i32
    %c0_i32_1 = arith.constant 0 : i32
    return %c0_i32, %c0_i32_0 : i32, i32
  }
  func.func @transform_7(%arg0: i32) -> (i32, i32) {
    %c0_i32 = arith.constant 0 : i32
    %c0_i32_0 = arith.constant 0 : i32
    %c0_i32_1 = arith.constant 0 : i32
    return %c0_i32, %c0_i32_0 : i32, i32
  }
  func.func @transform_8(%arg0: i32) -> (i32, i32) {
    %c0_i32 = arith.constant 0 : i32
    %c0_i32_0 = arith.constant 0 : i32
    %c0_i32_1 = arith.constant 0 : i32
    return %c0_i32, %c0_i32_0 : i32, i32
  }
  func.func @transform_9(%arg0: i32) -> (i32, i32) {
    %c0_i32 = arith.constant 0 : i32
    %c0_i32_0 = arith.constant 0 : i32
    %c0_i32_1 = arith.constant 0 : i32
    return %c0_i32, %c0_i32_0 : i32, i32
  }
  func.func @transform_10(%arg0: i32) -> (i32, i32) {
    %c0_i32 = arith.constant 0 : i32
    %c0_i32_0 = arith.constant 0 : i32
    %c0_i32_1 = arith.constant 0 : i32
    return %c0_i32, %c0_i32_0 : i32, i32
  }
  func.func @transform_11(%arg0: i32) -> (i32, i32) {
    %c0_i32 = arith.constant 0 : i32
    %c0_i32_0 = arith.constant 0 : i32
    %c0_i32_1 = arith.constant 0 : i32
    return %c0_i32, %c0_i32_0 : i32, i32
  }
  func.func @transform_12(%arg0: i32) -> (i32, i32, i32) {
    %c0_i32 = arith.constant 0 : i32
    %c0_i32_0 = arith.constant 0 : i32
    %c0_i32_1 = arith.constant 0 : i32
    return %arg0, %c0_i32, %c0_i32_0 : i32, i32, i32
  }
}

</mosaic_0001>

<llo_original>
// kernel: block_quad_forward.1
$region0: #{block_quad_forward.1}
  #allocation0 [shape = 'u32[]', space=smem, size = 0x4, offset = 0x4, fixed_abs, tag = 'smem constant byte address 0x4 - core index']
  #allocation1 [shape = 'u32[144,128]{1,0:T(1,128)}', space=vmem, size = 0x12000, scoped, tag = 'internal scratch']
  #allocation2 [shape = 'f32[8,580]{1,0:T(8,128)}', space=vmem, size = 0x5000, scoped, tag = 'scratch operand']
  #allocation3 [shape = 'f32[72,512]{1,0:T(8,128)}', space=vmem, size = 0x24000, scoped, tag = 'scratch operand']
  %s0 = inlined_call_operand.vmem [shape: f32[2,8,256], index: 0, kind: input, shape index: {}]
  %s1 = inlined_call_operand.vmem [shape: f32[1,256], index: 1, kind: input, shape index: {}]
  %s2 = inlined_call_operand.vmem [shape: f32[1,256], index: 2, kind: input, shape index: {}]
  %s3 = inlined_call_operand.vmem [shape: f32[512,128], index: 3, kind: input, shape index: {}]
  %s4 = inlined_call_operand.vmem [shape: f32[8,72], index: 4, kind: input, shape index: {}]
  %s5 = inlined_call_operand.vmem [shape: f32[8,1], index: 5, kind: input, shape index: {}]
  %s6 = inlined_call_operand.vmem [shape: f32[8,72], index: 6, kind: input, shape index: {}]
  %s7 = inlined_call_operand.vmem [shape: f32[8,1], index: 7, kind: input, shape index: {}]
  %s8 = inlined_call_operand.vmem [shape: f32[8,72], index: 8, kind: input, shape index: {}]
  %s9 = inlined_call_operand.vmem [shape: f32[8,1], index: 9, kind: input, shape index: {}]
  %s10 = inlined_call_operand.vmem [shape: f32[8,72], index: 10, kind: input, shape index: {}]
  %s11 = inlined_call_operand.vmem [shape: f32[8,1], index: 11, kind: input, shape index: {}]
  %s12 = inlined_call_operand.vmem [shape: f32[1,8,128], index: 12, kind: output, shape index: {}]
  %s13 = sld [smem:[#allocation0]]
  $region58: #{block_quad_forward.1} parent=0
    _
  %s15 = ssub.s32 1, %s13
  %s16 = scalar_select 0, %s15, %s13
  // Predicated region
  $region2: #{block_quad_forward.1} parent=0 // pred_check
    _
  $region3: #{block_quad_forward.1} parent=0 // pred_check_branch
    %18 = sbr.rel (0) target = $region5
  $region4: #{block_quad_forward.1} parent=0 // pred_region
    _
  $region5: #{block_quad_forward.1} parent=0 // pred_fallthru
    _
  // Predicated region
  $region6: #{block_quad_forward.1} parent=0 // pred_check
    _
  $region7: #{block_quad_forward.1} parent=0 // pred_check_branch
    %20 = sbr.rel (0) target = $region9
  $region8: #{block_quad_forward.1} parent=0 // pred_region
    _
  $region9: #{block_quad_forward.1} parent=0 // pred_fallthru
    _
  // Predicated region
  $region10: #{block_quad_forward.1} parent=0 // pred_check
    _
  $region11: #{block_quad_forward.1} parent=0 // pred_check_branch
    %22 = sbr.rel (0) target = $region13
  $region12: #{block_quad_forward.1} parent=0 // pred_region
    _
  $region13: #{block_quad_forward.1} parent=0 // pred_fallthru
    _
  // Predicated region
  $region14: #{block_quad_forward.1} parent=0 // pred_check
    _
  $region15: #{block_quad_forward.1} parent=0 // pred_check_branch
    %24 = sbr.rel (0) target = $region17
  $region16: #{block_quad_forward.1} parent=0 // pred_region
    _
  $region17: #{block_quad_forward.1} parent=0 // pred_fallthru
    _
  // Predicated region
  $region18: #{block_quad_forward.1} parent=0 // pred_check
    _
  $region19: #{block_quad_forward.1} parent=0 // pred_check_branch
    %26 = sbr.rel (0) target = $region21
  $region20: #{block_quad_forward.1} parent=0 // pred_region
    _
  $region21: #{block_quad_forward.1} parent=0 // pred_fallthru
    _
  // Predicated region
  $region22: #{block_quad_forward.1} parent=0 // pred_check
    _
  $region23: #{block_quad_forward.1} parent=0 // pred_check_branch
    %28 = sbr.rel (0) target = $region25
  $region24: #{block_quad_forward.1} parent=0 // pred_region
    _
  $region25: #{block_quad_forward.1} parent=0 // pred_fallthru
    _
  // Predicated region
  $region26: #{block_quad_forward.1} parent=0 // pred_check
    _
  $region27: #{block_quad_forward.1} parent=0 // pred_check_branch
    %30 = sbr.rel (0) target = $region29
  $region28: #{block_quad_forward.1} parent=0 // pred_region
    _
  $region29: #{block_quad_forward.1} parent=0 // pred_fallthru
    _
  // Predicated region
  $region30: #{block_quad_forward.1} parent=0 // pred_check
    _
  $region31: #{block_quad_forward.1} parent=0 // pred_check_branch
    %32 = sbr.rel (0) target = $region33
  $region32: #{block_quad_forward.1} parent=0 // pred_region
    _
  $region33: #{block_quad_forward.1} parent=0 // pred_fallthru
    _
  // Predicated region
  $region34: #{block_quad_forward.1} parent=0 // pred_check
    _
  $region35: #{block_quad_forward.1} parent=0 // pred_check_branch
    %34 = sbr.rel (0) target = $region37
  $region36: #{block_quad_forward.1} parent=0 // pred_region
    _
  $region37: #{block_quad_forward.1} parent=0 // pred_fallthru
    _
  // Predicated region
  $region38: #{block_quad_forward.1} parent=0 // pred_check
    _
  $region39: #{block_quad_forward.1} parent=0 // pred_check_branch
    %36 = sbr.rel (0) target = $region41
  $region40: #{block_quad_forward.1} parent=0 // pred_region
    _
  $region41: #{block_quad_forward.1} parent=0 // pred_fallthru
    _
  // Predicated region
  $region42: #{block_quad_forward.1} parent=0 // pred_check
    _
  $region43: #{block_quad_forward.1} parent=0 // pred_check_branch
    %38 = sbr.rel (0) target = $region45
  $region44: #{block_quad_forward.1} parent=0 // pred_region
    _
  $region45: #{block_quad_forward.1} parent=0 // pred_fallthru
    _
  // Predicated region
  $region46: #{block_quad_forward.1} parent=0 // pred_check
    _
  $region47: #{block_quad_forward.1} parent=0 // pred_check_branch
    %40 = sbr.rel (0) target = $region49
  $region48: #{block_quad_forward.1} parent=0 // pred_region
    _
  $region49: #{block_quad_forward.1} parent=0 // pred_fallthru
    _
  %v41 = vld [vmem:[%s1] sm:$0x3]
  %v42 = vld [vmem:[%s2] sm:$0x3]
  %vm43 = vcmask 138240
  %44 = vst.msk [vmem:[#allocation2] sm:$0xff] %vm43, 0.0
  %vm45 = vcmask 277640
  %46 = vst.msk [vmem:[#allocation2 + $0x10] sm:$0xff] %vm45, 0.0
  %v47 = vld [vmem:[%s0] sm:$0xff]
  %v48 = vld [vmem:[%s0 + $0x8] sm:$0xff]
  %51 = vrot.lane.b32.xlu0 %v47, 17
  %v52 = vpop.permute.xlu0 %51
  %53 = vrot.lane.b32.xlu0 %v48, 17
  %v54 = vpop.permute.xlu0 %53
  %v55 = vsel %vm43, %v52, %v54
  %vm59 = vcmask 1047688
  %60 = vst.msk [vmem:[#allocation2] sm:$0xff] %vm59, %v52
  %61 = vst [vmem:[#allocation2 + $0x8] sm:$0xff] %v55
  %62 = vst.msk [vmem:[#allocation2 + $0x10] sm:$0xff] %vm43, %v54
  %vm63 = vcmask 417040
  %64 = vst.msk [vmem:[#allocation2 + $0x10] sm:$0xff] %vm63, 0.0
  %vm65 = vcmask 556440
  %66 = vst.msk [vmem:[#allocation2 + $0x20] sm:$0xff] %vm65, 0.0
  %s67 = scalar_lea.vmem %s0, 16
  %v68 = vld [vmem:[%s67] sm:$0xff]
  %v69 = vld [vmem:[%s67 + $0x8] sm:$0xff]
  %72 = vrot.lane.b32.xlu0 %v68, 51
  %v73 = vpop.permute.xlu0 %72
  %74 = vrot.lane.b32.xlu0 %v69, 51
  %v75 = vpop.permute.xlu0 %74
  %vm76 = vcmask 416768
  %v77 = vsel %vm76, %v73, %v75
  %vm81 = vcmask 1047960
  %82 = vst.msk [vmem:[#allocation2 + $0x10] sm:$0xff] %vm81, %v73
  %83 = vst [vmem:[#allocation2 + $0x18] sm:$0xff] %v77
  %84 = vst.msk [vmem:[#allocation2 + $0x20] sm:$0xff] %vm76, %v75
  %v85 = vld [vmem:[#allocation2] sm:$0xff]
  %v86 = vld [vmem:[#allocation2 + $0x8] sm:$0xff]
  %v88 = vlaneseq
  %v89 = vshrl.u32 %v88, 7
  %v90 = vsub.s32 0, %v89
  %v91 = vrot.slane %v41, %v90
  %v92 = vlaneseq
  %v93 = vshrl.u32 %v92, 7
  %v94 = vsub.s32 1, %v93
  %v95 = vrot.slane %v41, %v94
  %v98 = vmul.f32 %v85, %v91
  %v99 = vmul.f32 %v86, %v95
  %100 = vst [vmem:[#allocation3] sm:$0xff] %v98
  %101 = vst [vmem:[#allocation3 + $0x8] sm:$0xff] %v99
  %v102 = vld [vmem:[#allocation2 + $0x10] sm:$0xff]
  %v103 = vld [vmem:[#allocation2 + $0x18] sm:$0xff]
  %v104 = vld [vmem:[#allocation2 + $0x20] sm:$0xff]
  %105 = vrot.lane.b32.xlu0 %v91, 34
  %v106 = vpop.permute.xlu0 %105
  %107 = vrot.lane.b32.xlu0 %v95, 34
  %v108 = vpop.permute.xlu0 %107
  %vm109 = vcmask 277504
  %v110 = vsel %vm109, %v106, %v108
  %v114 = vmul.f32 %v102, %v106
  %v115 = vmul.f32 %v103, %v110
  %v116 = vmul.f32 %v104, %v108
  %120 = vrot.lane.b32.xlu0 %v114, 94
  %v121 = vpop.permute.xlu0 %120
  %122 = vrot.lane.b32.xlu0 %v115, 94
  %v123 = vpop.permute.xlu0 %122
  %124 = vrot.lane.b32.xlu0 %v116, 94
  %v125 = vpop.permute.xlu0 %124
  %vm126 = vcmask 769024
  %v127 = vsel %vm126, %v121, %v123
  %v128 = vsel %vm126, %v123, %v125
  %131 = vst [vmem:[#allocation3 + $0x10] sm:$0xff] %v127
  %132 = vst [vmem:[#allocation3 + $0x18] sm:$0xff] %v128
  %v133 = vld [vmem:[#allocation2] sm:$0xff]
  %v134 = vld [vmem:[#allocation2 + $0x8] sm:$0xff]
  %v135 = vld [vmem:[#allocation2 + $0x10] sm:$0xff]
  %139 = vrot.lane.b32.xlu0 %v133, 127
  %v140 = vpop.permute.xlu0 %139
  %141 = vrot.lane.b32.xlu0 %v134, 127
  %v142 = vpop.permute.xlu0 %141
  %143 = vrot.lane.b32.xlu0 %v135, 127
  %v144 = vpop.permute.xlu0 %143
  %vm145 = vcmask 1039360
  %v146 = vsel %vm145, %v140, %v142
  %v147 = vsel %vm145, %v142, %v144
  %150 = vst [vmem:[#allocation3 + $0x20] sm:$0xff] %v146
  %151 = vst [vmem:[#allocation3 + $0x28] sm:$0xff] %v147
  %v152 = vld [vmem:[#allocation2 + $0x10] sm:$0xff]
  %v153 = vld [vmem:[#allocation2 + $0x18] sm:$0xff]
  %v154 = vld [vmem:[#allocation2 + $0x20] sm:$0xff]
  %158 = vrot.lane.b32.xlu0 %v152, 93
  %v159 = vpop.permute.xlu0 %158
  %160 = vrot.lane.b32.xlu0 %v153, 93
  %v161 = vpop.permute.xlu0 %160
  %162 = vrot.lane.b32.xlu0 %v154, 93
  %v163 = vpop.permute.xlu0 %162
  %vm164 = vcmask 760832
  %v165 = vsel %vm164, %v159, %v161
  %v166 = vsel %vm164, %v161, %v163
  %169 = vst [vmem:[#allocation3 + $0x30] sm:$0xff] %v165
  %170 = vst [vmem:[#allocation3 + $0x38] sm:$0xff] %v166
  %v171 = vld [vmem:[#allocation2] sm:$0xff]
  %v172 = vld [vmem:[#allocation2 + $0x8] sm:$0xff]
  %v173 = vld [vmem:[#allocation2 + $0x10] sm:$0xff]
  %v175 = vlaneseq
  %v176 = vshrl.u32 %v175, 7
  %v177 = vsub.s32 0, %v176
  %v178 = vrot.slane %v42, %v177
  %v179 = vlaneseq
  %v180 = vshrl.u32 %v179, 7
  %v181 = vsub.s32 1, %v180
  %v182 = vrot.slane %v42, %v181
  %183 = vrot.lane.b32.xlu0 %v178, 2
  %v184 = vpop.permute.xlu0 %183
  %185 = vrot.lane.b32.xlu0 %v182, 2
  %v186 = vpop.permute.xlu0 %185
  %vm187 = vcmask 15360
  %v188 = vsel %vm187, %v184, %v186
  %v192 = vmul.f32 %v171, %v184
  %v193 = vmul.f32 %v172, %v188
  %v194 = vmul.f32 %v173, %v186
  %198 = vrot.lane.b32.xlu0 %v192, 126
  %v199 = vpop.permute.xlu0 %198
  %200 = vrot.lane.b32.xlu0 %v193, 126
  %v201 = vpop.permute.xlu0 %200
  %202 = vrot.lane.b32.xlu0 %v194, 126
  %v203 = vpop.permute.xlu0 %202
  %vm204 = vcmask 1031168
  %v205 = vsel %vm204, %v199, %v201
  %v206 = vsel %vm204, %v201, %v203
  %209 = vst [vmem:[#allocation3 + $0x40] sm:$0xff] %v205
  %210 = vst [vmem:[#allocation3 + $0x48] sm:$0xff] %v206
  %v211 = vld [vmem:[#allocation2 + $0x10] sm:$0xff]
  %v212 = vld [vmem:[#allocation2 + $0x18] sm:$0xff]
  %v213 = vld [vmem:[#allocation2 + $0x20] sm:$0xff]
  %214 = vrot.lane.b32.xlu0 %v178, 36
  %v215 = vpop.permute.xlu0 %214
  %216 = vrot.lane.b32.xlu0 %v182, 36
  %v217 = vpop.permute.xlu0 %216
  %vm218 = vcmask 293888
  %v219 = vsel %vm218, %v215, %v217
  %v223 = vmul.f32 %v211, %v215
  %v224 = vmul.f32 %v212, %v219
  %v225 = vmul.f32 %v213, %v217
  %229 = vrot.lane.b32.xlu0 %v223, 92
  %v230 = vpop.permute.xlu0 %229
  %231 = vrot.lane.b32.xlu0 %v224, 92
  %v232 = vpop.permute.xlu0 %231
  %233 = vrot.lane.b32.xlu0 %v225, 92
  %v234 = vpop.permute.xlu0 %233
  %vm235 = vcmask 752640
  %v236 = vsel %vm235, %v230, %v232
  %v237 = vsel %vm235, %v232, %v234
  %240 = vst [vmem:[#allocation3 + $0x50] sm:$0xff] %v236
  %241 = vst [vmem:[#allocation3 + $0x58] sm:$0xff] %v237
  %v242 = vld [vmem:[#allocation2] sm:$0xff]
  %v243 = vld [vmem:[#allocation2 + $0x8] sm:$0xff]
  %v244 = vld [vmem:[#allocation2 + $0x10] sm:$0xff]
  %245 = vrot.lane.b32.xlu0 %v91, 16
  %v246 = vpop.permute.xlu0 %245
  %247 = vrot.lane.b32.xlu0 %v95, 16
  %v248 = vpop.permute.xlu0 %247
  %vm249 = vcmask 130048
  %v250 = vsel %vm249, %v246, %v248
  %v254 = vmul.f32 %v242, %v246
  %v255 = vmul.f32 %v243, %v250
  %v256 = vmul.f32 %v244, %v248
  %260 = vrot.lane.b32.xlu0 %v254, 112
  %v261 = vpop.permute.xlu0 %260
  %262 = vrot.lane.b32.xlu0 %v255, 112
  %v263 = vpop.permute.xlu0 %262
  %264 = vrot.lane.b32.xlu0 %v256, 112
  %v265 = vpop.permute.xlu0 %264
  %vm266 = vcmask 916480
  %v267 = vsel %vm266, %v261, %v263
  %v268 = vsel %vm266, %v263, %v265
  %271 = vst [vmem:[#allocation3 + $0x60] sm:$0xff] %v267
  %272 = vst [vmem:[#allocation3 + $0x68] sm:$0xff] %v268
  %v273 = vld [vmem:[#allocation2 + $0x10] sm:$0xff]
  %v274 = vld [vmem:[#allocation2 + $0x18] sm:$0xff]
  %v275 = vld [vmem:[#allocation2 + $0x20] sm:$0xff]
  %276 = vrot.lane.b32.xlu0 %v91, 50
  %v277 = vpop.permute.xlu0 %276
  %278 = vrot.lane.b32.xlu0 %v95, 50
  %v279 = vpop.permute.xlu0 %278
  %vm280 = vcmask 408576
  %v281 = vsel %vm280, %v277, %v279
  %v285 = vmul.f32 %v273, %v277
  %v286 = vmul.f32 %v274, %v281
  %v287 = vmul.f32 %v275, %v279
  %291 = vrot.lane.b32.xlu0 %v285, 78
  %v292 = vpop.permute.xlu0 %291
  %293 = vrot.lane.b32.xlu0 %v286, 78
  %v294 = vpop.permute.xlu0 %293
  %295 = vrot.lane.b32.xlu0 %v287, 78
  %v296 = vpop.permute.xlu0 %295
  %vm297 = vcmask 637952
  %v298 = vsel %vm297, %v292, %v294
  %v299 = vsel %vm297, %v294, %v296
  %302 = vst [vmem:[#allocation3 + $0x70] sm:$0xff] %v298
  %303 = vst [vmem:[#allocation3 + $0x78] sm:$0xff] %v299
  %v304 = vld [vmem:[#allocation2] sm:$0xff]
  %v305 = vld [vmem:[#allocation2 + $0x8] sm:$0xff]
  %v306 = vld [vmem:[#allocation2 + $0x10] sm:$0xff]
  %310 = vrot.lane.b32.xlu0 %v304, 111
  %v311 = vpop.permute.xlu0 %310
  %312 = vrot.lane.b32.xlu0 %v305, 111
  %v313 = vpop.permute.xlu0 %312
  %314 = vrot.lane.b32.xlu0 %v306, 111
  %v315 = vpop.permute.xlu0 %314
  %vm316 = vcmask 908288
  %v317 = vsel %vm316, %v311, %v313
  %v318 = vsel %vm316, %v313, %v315
  %321 = vst [vmem:[#allocation3 + $0x80] sm:$0xff] %v317
  %322 = vst [vmem:[#allocation3 + $0x88] sm:$0xff] %v318
  %v323 = vld [vmem:[#allocation2 + $0x10] sm:$0xff]
  %v324 = vld [vmem:[#allocation2 + $0x18] sm:$0xff]
  %v325 = vld [vmem:[#allocation2 + $0x20] sm:$0xff]
  %329 = vrot.lane.b32.xlu0 %v323, 77
  %v330 = vpop.permute.xlu0 %329
  %331 = vrot.lane.b32.xlu0 %v324, 77
  %v332 = vpop.permute.xlu0 %331
  %333 = vrot.lane.b32.xlu0 %v325, 77
  %v334 = vpop.permute.xlu0 %333
  %vm335 = vcmask 629760
  %v336 = vsel %vm335, %v330, %v332
  %v337 = vsel %vm335, %v332, %v334
  %340 = vst [vmem:[#allocation3 + $0x90] sm:$0xff] %v336
  %341 = vst [vmem:[#allocation3 + $0x98] sm:$0xff] %v337
  %v342 = vld [vmem:[#allocation2] sm:$0xff]
  %v343 = vld [vmem:[#allocation2 + $0x8] sm:$0xff]
  %v344 = vld [vmem:[#allocation2 + $0x10] sm:$0xff]
  %345 = vrot.lane.b32.xlu0 %v178, 18
  %v346 = vpop.permute.xlu0 %345
  %347 = vrot.lane.b32.xlu0 %v182, 18
  %v348 = vpop.permute.xlu0 %347
  %vm349 = vcmask 146432
  %v350 = vsel %vm349, %v346, %v348
  %v354 = vmul.f32 %v342, %v346
  %v355 = vmul.f32 %v343, %v350
  %v356 = vmul.f32 %v344, %v348
  %360 = vrot.lane.b32.xlu0 %v354, 110
  %v361 = vpop.permute.xlu0 %360
  %362 = vrot.lane.b32.xlu0 %v355, 110
  %v363 = vpop.permute.xlu0 %362
  %364 = vrot.lane.b32.xlu0 %v356, 110
  %v365 = vpop.permute.xlu0 %364
  %vm366 = vcmask 900096
  %v367 = vsel %vm366, %v361, %v363
  %v368 = vsel %vm366, %v363, %v365
  %371 = vst [vmem:[#allocation3 + $0xa0] sm:$0xff] %v367
  %372 = vst [vmem:[#allocation3 + $0xa8] sm:$0xff] %v368
  %v373 = vld [vmem:[#allocation2 + $0x10] sm:$0xff]
  %v374 = vld [vmem:[#allocation2 + $0x18] sm:$0xff]
  %v375 = vld [vmem:[#allocation2 + $0x20] sm:$0xff]
  %376 = vrot.lane.b32.xlu0 %v178, 52
  %v377 = vpop.permute.xlu0 %376
  %378 = vrot.lane.b32.xlu0 %v182, 52
  %v379 = vpop.permute.xlu0 %378
  %vm380 = vcmask 424960
  %v381 = vsel %vm380, %v377, %v379
  %v385 = vmul.f32 %v373, %v377
  %v386 = vmul.f32 %v374, %v381
  %v387 = vmul.f32 %v375, %v379
  %391 = vrot.lane.b32.xlu0 %v385, 76
  %v392 = vpop.permute.xlu0 %391
  %393 = vrot.lane.b32.xlu0 %v386, 76
  %v394 = vpop.permute.xlu0 %393
  %395 = vrot.lane.b32.xlu0 %v387, 76
  %v396 = vpop.permute.xlu0 %395
  %vm397 = vcmask 621568
  %v398 = vsel %vm397, %v392, %v394
  %v399 = vsel %vm397, %v394, %v396
  %402 = vst [vmem:[#allocation3 + $0xb0] sm:$0xff] %v398
  %403 = vst [vmem:[#allocation3 + $0xb8] sm:$0xff] %v399
  %v404 = vld [vmem:[#allocation2] sm:$0xff]
  %v405 = vld [vmem:[#allocation2 + $0x8] sm:$0xff]
  %v406 = vld [vmem:[#allocation2 + $0x10] sm:$0xff]
  %407 = vrot.lane.b32.xlu0 %v91, 32
  %v408 = vpop.permute.xlu0 %407
  %409 = vrot.lane.b32.xlu0 %v95, 32
  %v410 = vpop.permute.xlu0 %409
  %vm411 = vcmask 261120
  %v412 = vsel %vm411, %v408, %v410
  %v416 = vmul.f32 %v404, %v408
  %v417 = vmul.f32 %v405, %v412
  %v418 = vmul.f32 %v406, %v410
  %422 = vrot.lane.b32.xlu0 %v416, 96
  %v423 = vpop.permute.xlu0 %422
  %424 = vrot.lane.b32.xlu0 %v417, 96
  %v425 = vpop.permute.xlu0 %424
  %426 = vrot.lane.b32.xlu0 %v418, 96
  %v427 = vpop.permute.xlu0 %426
  %vm428 = vcmask 785408
  %v429 = vsel %vm428, %v423, %v425
  %v430 = vsel %vm428, %v425, %v427
  %433 = vst [vmem:[#allocation3 + $0xc0] sm:$0xff] %v429
  %434 = vst [vmem:[#allocation3 + $0xc8] sm:$0xff] %v430
  %v435 = vld [vmem:[#allocation2 + $0x10] sm:$0xff]
  %v436 = vld [vmem:[#allocation2 + $0x18] sm:$0xff]
  %v437 = vld [vmem:[#allocation2 + $0x20] sm:$0xff]
  %438 = vrot.lane.b32.xlu0 %v91, 66
  %v439 = vpop.permute.xlu0 %438
  %440 = vrot.lane.b32.xlu0 %v95, 66
  %v441 = vpop.permute.xlu0 %440
  %vm442 = vcmask 539648
  %v443 = vsel %vm442, %v439, %v441
  %v447 = vmul.f32 %v435, %v439
  %v448 = vmul.f32 %v436, %v443
  %v449 = vmul.f32 %v437, %v441
  %453 = vrot.lane.b32.xlu0 %v447, 62
  %v454 = vpop.permute.xlu0 %453
  %455 = vrot.lane.b32.xlu0 %v448, 62
  %v456 = vpop.permute.xlu0 %455
  %457 = vrot.lane.b32.xlu0 %v449, 62
  %v458 = vpop.permute.xlu0 %457
  %vm459 = vcmask 506880
  %v460 = vsel %vm459, %v454, %v456
  %v461 = vsel %vm459, %v456, %v458
  %464 = vst [vmem:[#allocation3 + $0xd0] sm:$0xff] %v460
  %465 = vst [vmem:[#allocation3 + $0xd8] sm:$0xff] %v461
  %v466 = vld [vmem:[#allocation2] sm:$0xff]
  %v467 = vld [vmem:[#allocation2 + $0x8] sm:$0xff]
  %v468 = vld [vmem:[#allocation2 + $0x10] sm:$0xff]
  %472 = vrot.lane.b32.xlu0 %v466, 95
  %v473 = vpop.permute.xlu0 %472
  %474 = vrot.lane.b32.xlu0 %v467, 95
  %v475 = vpop.permute.xlu0 %474
  %476 = vrot.lane.b32.xlu0 %v468, 95
  %v477 = vpop.permute.xlu0 %476
  %vm478 = vcmask 777216
  %v479 = vsel %vm478, %v473, %v475
  %v480 = vsel %vm478, %v475, %v477
  %483 = vst [vmem:[#allocation3 + $0xe0] sm:$0xff] %v479
  %484 = vst [vmem:[#allocation3 + $0xe8] sm:$0xff] %v480
  %v485 = vld [vmem:[#allocation2 + $0x10] sm:$0xff]
  %v486 = vld [vmem:[#allocation2 + $0x18] sm:$0xff]
  %v487 = vld [vmem:[#allocation2 + $0x20] sm:$0xff]
  %491 = vrot.lane.b32.xlu0 %v485, 61
  %v492 = vpop.permute.xlu0 %491
  %493 = vrot.lane.b32.xlu0 %v486, 61
  %v494 = vpop.permute.xlu0 %493
  %495 = vrot.lane.b32.xlu0 %v487, 61
  %v496 = vpop.permute.xlu0 %495
  %vm497 = vcmask 498688
  %v498 = vsel %vm497, %v492, %v494
  %v499 = vsel %vm497, %v494, %v496
  %502 = vst [vmem:[#allocation3 + $0xf0] sm:$0xff] %v498
  %503 = vst [vmem:[#allocation3 + $0xf8] sm:$0xff] %v499
  %v504 = vld [vmem:[#allocation2] sm:$0xff]
  %v505 = vld [vmem:[#allocation2 + $0x8] sm:$0xff]
  %v506 = vld [vmem:[#allocation2 + $0x10] sm:$0xff]
  %507 = vrot.lane.b32.xlu0 %v178, 34
  %v508 = vpop.permute.xlu0 %507
  %509 = vrot.lane.b32.xlu0 %v182, 34
  %v510 = vpop.permute.xlu0 %509
  %v511 = vsel %vm109, %v508, %v510
  %v515 = vmul.f32 %v504, %v508
  %v516 = vmul.f32 %v505, %v511
  %v517 = vmul.f32 %v506, %v510
  %521 = vrot.lane.b32.xlu0 %v515, 94
  %v522 = vpop.permute.xlu0 %521
  %523 = vrot.lane.b32.xlu0 %v516, 94
  %v524 = vpop.permute.xlu0 %523
  %525 = vrot.lane.b32.xlu0 %v517, 94
  %v526 = vpop.permute.xlu0 %525
  %v527 = vsel %vm126, %v522, %v524
  %v528 = vsel %vm126, %v524, %v526
  %531 = vst [vmem:[#allocation3 + $0x100] sm:$0xff] %v527
  %532 = vst [vmem:[#allocation3 + $0x108] sm:$0xff] %v528
  %v533 = vld [vmem:[#allocation2 + $0x10] sm:$0xff]
  %v534 = vld [vmem:[#allocation2 + $0x18] sm:$0xff]
  %v535 = vld [vmem:[#allocation2 + $0x20] sm:$0xff]
  %536 = vrot.lane.b32.xlu0 %v178, 68
  %v537 = vpop.permute.xlu0 %536
  %538 = vrot.lane.b32.xlu0 %v182, 68
  %v539 = vpop.permute.xlu0 %538
  %vm540 = vcmask 556032
  %v541 = vsel %vm540, %v537, %v539
  %v545 = vmul.f32 %v533, %v537
  %v546 = vmul.f32 %v534, %v541
  %v547 = vmul.f32 %v535, %v539
  %551 = vrot.lane.b32.xlu0 %v545, 60
  %v552 = vpop.permute.xlu0 %551
  %553 = vrot.lane.b32.xlu0 %v546, 60
  %v554 = vpop.permute.xlu0 %553
  %555 = vrot.lane.b32.xlu0 %v547, 60
  %v556 = vpop.permute.xlu0 %555
  %vm557 = vcmask 490496
  %v558 = vsel %vm557, %v552, %v554
  %v559 = vsel %vm557, %v554, %v556
  %562 = vst [vmem:[#allocation3 + $0x110] sm:$0xff] %v558
  %563 = vst [vmem:[#allocation3 + $0x118] sm:$0xff] %v559
  %v564 = vld [vmem:[%s4] sm:$0xff]
  %v565 = vld [vmem:[#allocation3] sm:$0xff]
  %v566 = vld [vmem:[#allocation3 + $0x8] sm:$0xff]
  %v567 = vld [vmem:[#allocation3 + $0x10] sm:$0xff]
  %v568 = vld [vmem:[#allocation3 + $0x18] sm:$0xff]
  %v569 = vld [vmem:[#allocation3 + $0x20] sm:$0xff]
  %v570 = vld [vmem:[#allocation3 + $0x28] sm:$0xff]
  %v571 = vld [vmem:[#allocation3 + $0x30] sm:$0xff]
  %v572 = vld [vmem:[#allocation3 + $0x38] sm:$0xff]
  %v573 = vld [vmem:[#allocation3 + $0x40] sm:$0xff]
  %v574 = vld [vmem:[#allocation3 + $0x48] sm:$0xff]
  %v575 = vld [vmem:[#allocation3 + $0x50] sm:$0xff]
  %v576 = vld [vmem:[#allocation3 + $0x58] sm:$0xff]
  %v577 = vld [vmem:[#allocation3 + $0x60] sm:$0xff]
  %v578 = vld [vmem:[#allocation3 + $0x68] sm:$0xff]
  %v579 = vld [vmem:[#allocation3 + $0x70] sm:$0xff]
  %v580 = vld [vmem:[#allocation3 + $0x78] sm:$0xff]
  %v581 = vld [vmem:[#allocation3 + $0x80] sm:$0xff]
  %v582 = vld [vmem:[#allocation3 + $0x88] sm:$0xff]
  %v583 = vld [vmem:[#allocation3 + $0x90] sm:$0xff]
  %v584 = vld [vmem:[#allocation3 + $0x98] sm:$0xff]
  %v585 = vld [vmem:[#allocation3 + $0xa0] sm:$0xff]
  %v586 = vld [vmem:[#allocation3 + $0xa8] sm:$0xff]
  %v587 = vld [vmem:[#allocation3 + $0xb0] sm:$0xff]
  %v588 = vld [vmem:[#allocation3 + $0xb8] sm:$0xff]
  %v589 = vld [vmem:[#allocation3 + $0xc0] sm:$0xff]
  %v590 = vld [vmem:[#allocation3 + $0xc8] sm:$0xff]
  %v591 = vld [vmem:[#allocation3 + $0xd0] sm:$0xff]
  %v592 = vld [vmem:[#allocation3 + $0xd8] sm:$0xff]
  %v593 = vld [vmem:[#allocation3 + $0xe0] sm:$0xff]
  %v594 = vld [vmem:[#allocation3 + $0xe8] sm:$0xff]
  %v595 = vld [vmem:[#allocation3 + $0xf0] sm:$0xff]
  %v596 = vld [vmem:[#allocation3 + $0xf8] sm:$0xff]
  %v597 = vld [vmem:[#allocation3 + $0x100] sm:$0xff]
  %v598 = vld [vmem:[#allocation3 + $0x108] sm:$0xff]
  %v599 = vld [vmem:[#allocation3 + $0x110] sm:$0xff]
  %v600 = vld [vmem:[#allocation3 + $0x118] sm:$0xff]
  %v601 = vld [vmem:[%s5] sm:$0xff]
  %603 = vset.pattern.permute.xlu0 0
  %604 = vperm.xlu0 %603, %v601
  %v605 = vpop.permute.xlu0 %604
  %vm607 = vcmask 588800
  %v609 = vsel %vm607, %v564, 0
  %611 = vmatprep.subr.mxu0 %v566
  %612 = vmatpush1.msra.mxu0 %v565
  %613 = vmatprep.subr.mxu0 %v570
  %614 = vmatpush1.msra.mxu0 %v569
  %615 = vmatprep.subr.mxu0 %v574
  %616 = vmatpush1.msra.mxu0 %v573
  %617 = vmatprep.subr.mxu0 %v578
  %618 = vmatpush1.msra.mxu0 %v577
  %619 = vmatprep.subr.mxu0 %v582
  %620 = vmatpush1.msra.mxu0 %v581
  %621 = vmatprep.subr.mxu0 %v586
  %622 = vmatpush1.msra.mxu0 %v585
  %623 = vmatprep.subr.mxu0 %v590
  %624 = vmatpush1.msra.mxu0 %v589
  %625 = vmatprep.subr.mxu0 %v594
  %626 = vmatpush1.msra.mxu0 %v593
  %627 = vmatprep.subr.mxu0 %v598
  %628 = vmatpush1.msra.mxu0 %v597
  %629 = vmatprep.subr.mxu0 0.0
  %630 = vmatpush1.msra.mxu0 0.0
  %631 = vmatprep.subr.mxu0 0.0
  %632 = vmatpush1.msra.mxu0 0.0
  %633 = vmatprep.subr.mxu0 0.0
  %634 = vmatpush1.msra.mxu0 0.0
  %635 = vmatprep.subr.mxu0 0.0
  %636 = vmatpush1.msra.mxu0 0.0
  %637 = vmatprep.subr.mxu0 0.0
  %638 = vmatpush1.msra.mxu0 0.0
  %639 = vmatprep.subr.mxu0 0.0
  %640 = vmatpush1.msra.mxu0 0.0
  %641 = vmatprep.subr.mxu0 0.0
  %642 = vmatpush1.msra.mxu0 0.0
  %643 = vmatprep.subr.mxu0 0.0
  %644 = vmatpush1.msra.mxu0 0.0
  %645 = vmatprep.subr.mxu0 0.0
  %646 = vmatpush1.msra.mxu0 0.0
  %647 = vmatprep.subr.mxu0 0.0
  %648 = vmatpush1.msra.mxu0 0.0
  %649 = vmatprep.subr.mxu0 0.0
  %650 = vmatpush1.msra.mxu0 0.0
  %651 = vmatprep.subr.mxu0 0.0
  %652 = vmatpush1.msra.mxu0 0.0
  %653 = vmatprep.subr.mxu0 0.0
  %654 = vmatpush1.msra.mxu0 0.0
  %655 = vmatprep.subr.mxu0 0.0
  %656 = vmatpush1.msra.mxu0 0.0
  %657 = vmatprep.subr.mxu0 0.0
  %658 = vmatpush1.msra.mxu0 0.0
  %659 = vmatprep.subr.mxu0 0.0
  %660 = vmatpush1.msra.mxu0 0.0
  %661 = vmatprep.subr.mxu0 0.0
  %662 = vmatpush1.msra.mxu0 0.0
  %663 = vmatprep.subr.mxu0 0.0
  %664 = vmatpush1.msra.mxu0 0.0
  %665 = vmatprep.subr.mxu0 0.0
  %666 = vmatpush1.msra.mxu0 0.0
  %667 = vmatprep.subr.mxu0 0.0
  %668 = vmatpush1.msra.mxu0 0.0
  %669 = vmatprep.subr.mxu0 0.0
  %670 = vmatpush1.msra.mxu0 0.0
  %671 = vmatprep.subr.mxu0 0.0
  %672 = vmatpush1.msra.mxu0 0.0
  %673 = vmatprep.subr.mxu0 0.0
  %674 = vmatpush1.msra.mxu0 0.0
  %675 = vmatprep.mubr.f32.mxu0 0.0
  %676 = vmatmul.mubr.f32.gmra.mrb[0].mxu0 %v609
  %v677 = vpop.f32.mrb[0].mxu0
  %v678 = vadd.f32 %v605, %v677
  %v679 = vpop.f32.mrb[0].mxu0
  %v680 = vadd.f32 %v605, %v679
  %681 = vdwg.mxu0
  %682 = vmatprep.subr.mxu0 %v568
  %683 = vmatpush1.msra.mxu0 %v567
  %684 = vmatprep.subr.mxu0 %v572
  %685 = vmatpush1.msra.mxu0 %v571
  %686 = vmatprep.subr.mxu0 %v576
  %687 = vmatpush1.msra.mxu0 %v575
  %688 = vmatprep.subr.mxu0 %v580
  %689 = vmatpush1.msra.mxu0 %v579
  %690 = vmatprep.subr.mxu0 %v584
  %691 = vmatpush1.msra.mxu0 %v583
  %692 = vmatprep.subr.mxu0 %v588
  %693 = vmatpush1.msra.mxu0 %v587
  %694 = vmatprep.subr.mxu0 %v592
  %695 = vmatpush1.msra.mxu0 %v591
  %696 = vmatprep.subr.mxu0 %v596
  %697 = vmatpush1.msra.mxu0 %v595
  %698 = vmatprep.subr.mxu0 %v600
  %699 = vmatpush1.msra.mxu0 %v599
  %700 = vmatprep.subr.mxu0 0.0
  %701 = vmatpush1.msra.mxu0 0.0
  %702 = vmatprep.subr.mxu0 0.0
  %703 = vmatpush1.msra.mxu0 0.0
  %704 = vmatprep.subr.mxu0 0.0
  %705 = vmatpush1.msra.mxu0 0.0
  %706 = vmatprep.subr.mxu0 0.0
  %707 = vmatpush1.msra.mxu0 0.0
  %708 = vmatprep.subr.mxu0 0.0
  %709 = vmatpush1.msra.mxu0 0.0
  %710 = vmatprep.subr.mxu0 0.0
  %711 = vmatpush1.msra.mxu0 0.0
  %712 = vmatprep.subr.mxu0 0.0
  %713 = vmatpush1.msra.mxu0 0.0
  %714 = vmatprep.subr.mxu0 0.0
  %715 = vmatpush1.msra.mxu0 0.0
  %716 = vmatprep.subr.mxu0 0.0
  %717 = vmatpush1.msra.mxu0 0.0
  %718 = vmatprep.subr.mxu0 0.0
  %719 = vmatpush1.msra.mxu0 0.0
  %720 = vmatprep.subr.mxu0 0.0
  %721 = vmatpush1.msra.mxu0 0.0
  %722 = vmatprep.subr.mxu0 0.0
  %723 = vmatpush1.msra.mxu0 0.0
  %724 = vmatprep.subr.mxu0 0.0
  %725 = vmatpush1.msra.mxu0 0.0
  %726 = vmatprep.subr.mxu0 0.0
  %727 = vmatpush1.msra.mxu0 0.0
  %728 = vmatprep.subr.mxu0 0.0
  %729 = vmatpush1.msra.mxu0 0.0
  %730 = vmatprep.subr.mxu0 0.0
  %731 = vmatpush1.msra.mxu0 0.0
  %732 = vmatprep.subr.mxu0 0.0
  %733 = vmatpush1.msra.mxu0 0.0
  %734 = vmatprep.subr.mxu0 0.0
  %735 = vmatpush1.msra.mxu0 0.0
  %736 = vmatprep.subr.mxu0 0.0
  %737 = vmatpush1.msra.mxu0 0.0
  %738 = vmatprep.subr.mxu0 0.0
  %739 = vmatpush1.msra.mxu0 0.0
  %740 = vmatprep.subr.mxu0 0.0
  %741 = vmatpush1.msra.mxu0 0.0
  %742 = vmatprep.subr.mxu0 0.0
  %743 = vmatpush1.msra.mxu0 0.0
  %744 = vmatprep.subr.mxu0 0.0
  %745 = vmatpush1.msra.mxu0 0.0
  %746 = vmatprep.mubr.f32.mxu0 0.0
  %747 = vmatmul.mubr.f32.gmra.mrb[0].mxu0 %v609
  %v748 = vpop.f32.mrb[0].mxu0
  %v749 = vadd.f32 %v605, %v748
  %v750 = vpop.f32.mrb[0].mxu0
  %v751 = vadd.f32 %v605, %v750
  %752 = vdwg.mxu0
  %v753 = vmax.f32 %v678, 0.0
  %v754 = vmax.f32 %v680, 0.0
  %v755 = vmax.f32 %v749, 0.0
  %v756 = vmax.f32 %v751, 0.0
  %759 = vrot.lane.b32.xlu0 %v753, 17
  %v760 = vpop.permute.xlu0 %759
  %761 = vrot.lane.b32.xlu0 %v754, 17
  %v762 = vpop.permute.xlu0 %761
  %v763 = vsel %vm43, %v760, %v762
  %767 = vst.msk [vmem:[#allocation2] sm:$0xff] %vm59, %v760
  %768 = vst [vmem:[#allocation2 + $0x8] sm:$0xff] %v763
  %769 = vst.msk [vmem:[#allocation2 + $0x10] sm:$0xff] %vm43, %v762
  %772 = vrot.lane.b32.xlu0 %v755, 51
  %v773 = vpop.permute.xlu0 %772
  %774 = vrot.lane.b32.xlu0 %v756, 51
  %v775 = vpop.permute.xlu0 %774
  %v776 = vsel %vm76, %v773, %v775
  %780 = vst.msk [vmem:[#allocation2 + $0x10] sm:$0xff] %vm81, %v773
  %781 = vst [vmem:[#allocation2 + $0x18] sm:$0xff] %v776
  %782 = vst.msk [vmem:[#allocation2 + $0x20] sm:$0xff] %vm76, %v775
  %v783 = vld [vmem:[#allocation2] sm:$0xff]
  %v784 = vld [vmem:[#allocation2 + $0x8] sm:$0xff]
  %v785 = vmul.f32 %v783, %v91
  %v786 = vmul.f32 %v784, %v95
  %787 = vst [vmem:[#allocation3] sm:$0xff] %v785
  %788 = vst [vmem:[#allocation3 + $0x8] sm:$0xff] %v786
  %v789 = vld [vmem:[#allocation2 + $0x10] sm:$0xff]
  %v790 = vld [vmem:[#allocation2 + $0x18] sm:$0xff]
  %v791 = vld [vmem:[#allocation2 + $0x20] sm:$0xff]
  %v792 = vmul.f32 %v789, %v106
  %v793 = vmul.f32 %v790, %v110
  %v794 = vmul.f32 %v791, %v108
  %798 = vrot.lane.b32.xlu0 %v792, 94
  %v799 = vpop.permute.xlu0 %798
  %800 = vrot.lane.b32.xlu0 %v793, 94
  %v801 = vpop.permute.xlu0 %800
  %802 = vrot.lane.b32.xlu0 %v794, 94
  %v803 = vpop.permute.xlu0 %802
  %v804 = vsel %vm126, %v799, %v801
  %v805 = vsel %vm126, %v801, %v803
  %808 = vst [vmem:[#allocation3 + $0x10] sm:$0xff] %v804
  %809 = vst [vmem:[#allocation3 + $0x18] sm:$0xff] %v805
  %v810 = vld [vmem:[#allocation2] sm:$0xff]
  %v811 = vld [vmem:[#allocation2 + $0x8] sm:$0xff]
  %v812 = vld [vmem:[#allocation2 + $0x10] sm:$0xff]
  %816 = vrot.lane.b32.xlu0 %v810, 127
  %v817 = vpop.permute.xlu0 %816
  %818 = vrot.lane.b32.xlu0 %v811, 127
  %v819 = vpop.permute.xlu0 %818
  %820 = vrot.lane.b32.xlu0 %v812, 127
  %v821 = vpop.permute.xlu0 %820
  %v822 = vsel %vm145, %v817, %v819
  %v823 = vsel %vm145, %v819, %v821
  %826 = vst [vmem:[#allocation3 + $0x20] sm:$0xff] %v822
  %827 = vst [vmem:[#allocation3 + $0x28] sm:$0xff] %v823
  %v828 = vld [vmem:[#allocation2 + $0x10] sm:$0xff]
  %v829 = vld [vmem:[#allocation2 + $0x18] sm:$0xff]
  %v830 = vld [vmem:[#allocation2 + $0x20] sm:$0xff]
  %834 = vrot.lane.b32.xlu0 %v828, 93
  %v835 = vpop.permute.xlu0 %834
  %836 = vrot.lane.b32.xlu0 %v829, 93
  %v837 = vpop.permute.xlu0 %836
  %838 = vrot.lane.b32.xlu0 %v830, 93
  %v839 = vpop.permute.xlu0 %838
  %v840 = vsel %vm164, %v835, %v837
  %v841 = vsel %vm164, %v837, %v839
  %844 = vst [vmem:[#allocation3 + $0x30] sm:$0xff] %v840
  %845 = vst [vmem:[#allocation3 + $0x38] sm:$0xff] %v841
  %v846 = vld [vmem:[#allocation2] sm:$0xff]
  %v847 = vld [vmem:[#allocation2 + $0x8] sm:$0xff]
  %v848 = vld [vmem:[#allocation2 + $0x10] sm:$0xff]
  %v849 = vmul.f32 %v846, %v184
  %v850 = vmul.f32 %v847, %v188
  %v851 = vmul.f32 %v848, %v186
  %855 = vrot.lane.b32.xlu0 %v849, 126
  %v856 = vpop.permute.xlu0 %855
  %857 = vrot.lane.b32.xlu0 %v850, 126
  %v858 = vpop.permute.xlu0 %857
  %859 = vrot.lane.b32.xlu0 %v851, 126
  %v860 = vpop.permute.xlu0 %859
  %v861 = vsel %vm204, %v856, %v858
  %v862 = vsel %vm204, %v858, %v860
  %865 = vst [vmem:[#allocation3 + $0x40] sm:$0xff] %v861
  %866 = vst [vmem:[#allocation3 + $0x48] sm:$0xff] %v862
  %v867 = vld [vmem:[#allocation2 + $0x10] sm:$0xff]
  %v868 = vld [vmem:[#allocation2 + $0x18] sm:$0xff]
  %v869 = vld [vmem:[#allocation2 + $0x20] sm:$0xff]
  %v870 = vmul.f32 %v867, %v215
  %v871 = vmul.f32 %v868, %v219
  %v872 = vmul.f32 %v869, %v217
  %876 = vrot.lane.b32.xlu0 %v870, 92
  %v877 = vpop.permute.xlu0 %876
  %878 = vrot.lane.b32.xlu0 %v871, 92
  %v879 = vpop.permute.xlu0 %878
  %880 = vrot.lane.b32.xlu0 %v872, 92
  %v881 = vpop.permute.xlu0 %880
  %v882 = vsel %vm235, %v877, %v879
  %v883 = vsel %vm235, %v879, %v881
  %886 = vst [vmem:[#allocation3 + $0x50] sm:$0xff] %v882
  %887 = vst [vmem:[#allocation3 + $0x58] sm:$0xff] %v883
  %v888 = vld [vmem:[#allocation2] sm:$0xff]
  %v889 = vld [vmem:[#allocation2 + $0x8] sm:$0xff]
  %v890 = vld [vmem:[#allocation2 + $0x10] sm:$0xff]
  %v891 = vmul.f32 %v888, %v246
  %v892 = vmul.f32 %v889, %v250
  %v893 = vmul.f32 %v890, %v248
  %897 = vrot.lane.b32.xlu0 %v891, 112
  %v898 = vpop.permute.xlu0 %897
  %899 = vrot.lane.b32.xlu0 %v892, 112
  %v900 = vpop.permute.xlu0 %899
  %901 = vrot.lane.b32.xlu0 %v893, 112
  %v902 = vpop.permute.xlu0 %901
  %v903 = vsel %vm266, %v898, %v900
  %v904 = vsel %vm266, %v900, %v902
  %907 = vst [vmem:[#allocation3 + $0x60] sm:$0xff] %v903
  %908 = vst [vmem:[#allocation3 + $0x68] sm:$0xff] %v904
  %v909 = vld [vmem:[#allocation2 + $0x10] sm:$0xff]
  %v910 = vld [vmem:[#allocation2 + $0x18] sm:$0xff]
  %v911 = vld [vmem:[#allocation2 + $0x20] sm:$0xff]
  %v912 = vmul.f32 %v909, %v277
  %v913 = vmul.f32 %v910, %v281
  %v914 = vmul.f32 %v911, %v279
  %918 = vrot.lane.b32.xlu0 %v912, 78
  %v919 = vpop.permute.xlu0 %918
  %920 = vrot.lane.b32.xlu0 %v913, 78
  %v921 = vpop.permute.xlu0 %920
  %922 = vrot.lane.b32.xlu0 %v914, 78
  %v923 = vpop.permute.xlu0 %922
  %v924 = vsel %vm297, %v919, %v921
  %v925 = vsel %vm297, %v921, %v923
  %928 = vst [vmem:[#allocation3 + $0x70] sm:$0xff] %v924
  %929 = vst [vmem:[#allocation3 + $0x78] sm:$0xff] %v925
  %v930 = vld [vmem:[#allocation2] sm:$0xff]
  %v931 = vld [vmem:[#allocation2 + $0x8] sm:$0xff]
  %v932 = vld [vmem:[#allocation2 + $0x10] sm:$0xff]
  %936 = vrot.lane.b32.xlu0 %v930, 111
  %v937 = vpop.permute.xlu0 %936
  %938 = vrot.lane.b32.xlu0 %v931, 111
  %v939 = vpop.permute.xlu0 %938
  %940 = vrot.lane.b32.xlu0 %v932, 111
  %v941 = vpop.permute.xlu0 %940
  %v942 = vsel %vm316, %v937, %v939
  %v943 = vsel %vm316, %v939, %v941
  %946 = vst [vmem:[#allocation3 + $0x80] sm:$0xff] %v942
  %947 = vst [vmem:[#allocation3 + $0x88] sm:$0xff] %v943
  %v948 = vld [vmem:[#allocation2 + $0x10] sm:$0xff]
  %v949 = vld [vmem:[#allocation2 + $0x18] sm:$0xff]
  %v950 = vld [vmem:[#allocation2 + $0x20] sm:$0xff]
  %954 = vrot.lane.b32.xlu0 %v948, 77
  %v955 = vpop.permute.xlu0 %954
  %956 = vrot.lane.b32.xlu0 %v949, 77
  %v957 = vpop.permute.xlu0 %956
  %958 = vrot.lane.b32.xlu0 %v950, 77
  %v959 = vpop.permute.xlu0 %958
  %v960 = vsel %vm335, %v955, %v957
  %v961 = vsel %vm335, %v957, %v959
  %964 = vst [vmem:[#allocation3 + $0x90] sm:$0xff] %v960
  %965 = vst [vmem:[#allocation3 + $0x98] sm:$0xff] %v961
  %v966 = vld [vmem:[#allocation2] sm:$0xff]
  %v967 = vld [vmem:[#allocation2 + $0x8] sm:$0xff]
  %v968 = vld [vmem:[#allocation2 + $0x10] sm:$0xff]
  %v969 = vmul.f32 %v966, %v346
  %v970 = vmul.f32 %v967, %v350
  %v971 = vmul.f32 %v968, %v348
  %975 = vrot.lane.b32.xlu0 %v969, 110
  %v976 = vpop.permute.xlu0 %975
  %977 = vrot.lane.b32.xlu0 %v970, 110
  %v978 = vpop.permute.xlu0 %977
  %979 = vrot.lane.b32.xlu0 %v971, 110
  %v980 = vpop.permute.xlu0 %979
  %v981 = vsel %vm366, %v976, %v978
  %v982 = vsel %vm366, %v978, %v980
  %985 = vst [vmem:[#allocation3 + $0xa0] sm:$0xff] %v981
  %986 = vst [vmem:[#allocation3 + $0xa8] sm:$0xff] %v982
  %v987 = vld [vmem:[#allocation2 + $0x10] sm:$0xff]
  %v988 = vld [vmem:[#allocation2 + $0x18] sm:$0xff]
  %v989 = vld [vmem:[#allocation2 + $0x20] sm:$0xff]
  %v990 = vmul.f32 %v987, %v377
  %v991 = vmul.f32 %v988, %v381
  %v992 = vmul.f32 %v989, %v379
  %996 = vrot.lane.b32.xlu0 %v990, 76
  %v997 = vpop.permute.xlu0 %996
  %998 = vrot.lane.b32.xlu0 %v991, 76
  %v999 = vpop.permute.xlu0 %998
  %1000 = vrot.lane.b32.xlu0 %v992, 76
  %v1001 = vpop.permute.xlu0 %1000
  %v1002 = vsel %vm397, %v997, %v999
  %v1003 = vsel %vm397, %v999, %v1001
  %1006 = vst [vmem:[#allocation3 + $0xb0] sm:$0xff] %v1002
  %1007 = vst [vmem:[#allocation3 + $0xb8] sm:$0xff] %v1003
  %v1008 = vld [vmem:[#allocation2] sm:$0xff]
  %v1009 = vld [vmem:[#allocation2 + $0x8] sm:$0xff]
  %v1010 = vld [vmem:[#allocation2 + $0x10] sm:$0xff]
  %v1011 = vmul.f32 %v1008, %v408
  %v1012 = vmul.f32 %v1009, %v412
  %v1013 = vmul.f32 %v1010, %v410
  %1017 = vrot.lane.b32.xlu0 %v1011, 96
  %v1018 = vpop.permute.xlu0 %1017
  %1019 = vrot.lane.b32.xlu0 %v1012, 96
  %v1020 = vpop.permute.xlu0 %1019
  %1021 = vrot.lane.b32.xlu0 %v1013, 96
  %v1022 = vpop.permute.xlu0 %1021
  %v1023 = vsel %vm428, %v1018, %v1020
  %v1024 = vsel %vm428, %v1020, %v1022
  %1027 = vst [vmem:[#allocation3 + $0xc0] sm:$0xff] %v1023
  %1028 = vst [vmem:[#allocation3 + $0xc8] sm:$0xff] %v1024
  %v1029 = vld [vmem:[#allocation2 + $0x10] sm:$0xff]
  %v1030 = vld [vmem:[#allocation2 + $0x18] sm:$0xff]
  %v1031 = vld [vmem:[#allocation2 + $0x20] sm:$0xff]
  %v1032 = vmul.f32 %v1029, %v439
  %v1033 = vmul.f32 %v1030, %v443
  %v1034 = vmul.f32 %v1031, %v441
  %1038 = vrot.lane.b32.xlu0 %v1032, 62
  %v1039 = vpop.permute.xlu0 %1038
  %1040 = vrot.lane.b32.xlu0 %v1033, 62
  %v1041 = vpop.permute.xlu0 %1040
  %1042 = vrot.lane.b32.xlu0 %v1034, 62
  %v1043 = vpop.permute.xlu0 %1042
  %v1044 = vsel %vm459, %v1039, %v1041
  %v1045 = vsel %vm459, %v1041, %v1043
  %1048 = vst [vmem:[#allocation3 + $0xd0] sm:$0xff] %v1044
  %1049 = vst [vmem:[#allocation3 + $0xd8] sm:$0xff] %v1045
  %v1050 = vld [vmem:[#allocation2] sm:$0xff]
  %v1051 = vld [vmem:[#allocation2 + $0x8] sm:$0xff]
  %v1052 = vld [vmem:[#allocation2 + $0x10] sm:$0xff]
  %1056 = vrot.lane.b32.xlu0 %v1050, 95
  %v1057 = vpop.permute.xlu0 %1056
  %1058 = vrot.lane.b32.xlu0 %v1051, 95
  %v1059 = vpop.permute.xlu0 %1058
  %1060 = vrot.lane.b32.xlu0 %v1052, 95
  %v1061 = vpop.permute.xlu0 %1060
  %v1062 = vsel %vm478, %v1057, %v1059
  %v1063 = vsel %vm478, %v1059, %v1061
  %1066 = vst [vmem:[#allocation3 + $0xe0] sm:$0xff] %v1062
  %1067 = vst [vmem:[#allocation3 + $0xe8] sm:$0xff] %v1063
  %v1068 = vld [vmem:[#allocation2 + $0x10] sm:$0xff]
  %v1069 = vld [vmem:[#allocation2 + $0x18] sm:$0xff]
  %v1070 = vld [vmem:[#allocation2 + $0x20] sm:$0xff]
  %1074 = vrot.lane.b32.xlu0 %v1068, 61
  %v1075 = vpop.permute.xlu0 %1074
  %1076 = vrot.lane.b32.xlu0 %v1069, 61
  %v1077 = vpop.permute.xlu0 %1076
  %1078 = vrot.lane.b32.xlu0 %v1070, 61
  %v1079 = vpop.permute.xlu0 %1078
  %v1080 = vsel %vm497, %v1075, %v1077
  %v1081 = vsel %vm497, %v1077, %v1079
  %1084 = vst [vmem:[#allocation3 + $0xf0] sm:$0xff] %v1080
  %1085 = vst [vmem:[#allocation3 + $0xf8] sm:$0xff] %v1081
  %v1086 = vld [vmem:[#allocation2] sm:$0xff]
  %v1087 = vld [vmem:[#allocation2 + $0x8] sm:$0xff]
  %v1088 = vld [vmem:[#allocation2 + $0x10] sm:$0xff]
  %v1089 = vmul.f32 %v1086, %v508
  %v1090 = vmul.f32 %v1087, %v511
  %v1091 = vmul.f32 %v1088, %v510
  %1095 = vrot.lane.b32.xlu0 %v1089, 94
  %v1096 = vpop.permute.xlu0 %1095
  %1097 = vrot.lane.b32.xlu0 %v1090, 94
  %v1098 = vpop.permute.xlu0 %1097
  %1099 = vrot.lane.b32.xlu0 %v1091, 94
  %v1100 = vpop.permute.xlu0 %1099
  %v1101 = vsel %vm126, %v1096, %v1098
  %v1102 = vsel %vm126, %v1098, %v1100
  %1105 = vst [vmem:[#allocation3 + $0x100] sm:$0xff] %v1101
  %1106 = vst [vmem:[#allocation3 + $0x108] sm:$0xff] %v1102
  %v1107 = vld [vmem:[#allocation2 + $0x10] sm:$0xff]
  %v1108 = vld [vmem:[#allocation2 + $0x18] sm:$0xff]
  %v1109 = vld [vmem:[#allocation2 + $0x20] sm:$0xff]
  %v1110 = vmul.f32 %v1107, %v537
  %v1111 = vmul.f32 %v1108, %v541
  %v1112 = vmul.f32 %v1109, %v539
  %1116 = vrot.lane.b32.xlu0 %v1110, 60
  %v1117 = vpop.permute.xlu0 %1116
  %1118 = vrot.lane.b32.xlu0 %v1111, 60
  %v1119 = vpop.permute.xlu0 %1118
  %1120 = vrot.lane.b32.xlu0 %v1112, 60
  %v1121 = vpop.permute.xlu0 %1120
  %v1122 = vsel %vm557, %v1117, %v1119
  %v1123 = vsel %vm557, %v1119, %v1121
  %1126 = vst [vmem:[#allocation3 + $0x110] sm:$0xff] %v1122
  %1127 = vst [vmem:[#allocation3 + $0x118] sm:$0xff] %v1123
  %v1128 = vld [vmem:[%s6] sm:$0xff]
  %v1129 = vld [vmem:[#allocation3] sm:$0xff]
  %v1130 = vld [vmem:[#allocation3 + $0x8] sm:$0xff]
  %v1131 = vld [vmem:[#allocation3 + $0x10] sm:$0xff]
  %v1132 = vld [vmem:[#allocation3 + $0x18] sm:$0xff]
  %v1133 = vld [vmem:[#allocation3 + $0x20] sm:$0xff]
  %v1134 = vld [vmem:[#allocation3 + $0x28] sm:$0xff]
  %v1135 = vld [vmem:[#allocation3 + $0x30] sm:$0xff]
  %v1136 = vld [vmem:[#allocation3 + $0x38] sm:$0xff]
  %v1137 = vld [vmem:[#allocation3 + $0x40] sm:$0xff]
  %v1138 = vld [vmem:[#allocation3 + $0x48] sm:$0xff]
  %v1139 = vld [vmem:[#allocation3 + $0x50] sm:$0xff]
  %v1140 = vld [vmem:[#allocation3 + $0x58] sm:$0xff]
  %v1141 = vld [vmem:[#allocation3 + $0x60] sm:$0xff]
  %v1142 = vld [vmem:[#allocation3 + $0x68] sm:$0xff]
  %v1143 = vld [vmem:[#allocation3 + $0x70] sm:$0xff]
  %v1144 = vld [vmem:[#allocation3 + $0x78] sm:$0xff]
  %v1145 = vld [vmem:[#allocation3 + $0x80] sm:$0xff]
  %v1146 = vld [vmem:[#allocation3 + $0x88] sm:$0xff]
  %v1147 = vld [vmem:[#allocation3 + $0x90] sm:$0xff]
  %v1148 = vld [vmem:[#allocation3 + $0x98] sm:$0xff]
  %v1149 = vld [vmem:[#allocation3 + $0xa0] sm:$0xff]
  %v1150 = vld [vmem:[#allocation3 + $0xa8] sm:$0xff]
  %v1151 = vld [vmem:[#allocation3 + $0xb0] sm:$0xff]
  %v1152 = vld [vmem:[#allocation3 + $0xb8] sm:$0xff]
  %v1153 = vld [vmem:[#allocation3 + $0xc0] sm:$0xff]
  %v1154 = vld [vmem:[#allocation3 + $0xc8] sm:$0xff]
  %v1155 = vld [vmem:[#allocation3 + $0xd0] sm:$0xff]
  %v1156 = vld [vmem:[#allocation3 + $0xd8] sm:$0xff]
  %v1157 = vld [vmem:[#allocation3 + $0xe0] sm:$0xff]
  %v1158 = vld [vmem:[#allocation3 + $0xe8] sm:$0xff]
  %v1159 = vld [vmem:[#allocation3 + $0xf0] sm:$0xff]
  %v1160 = vld [vmem:[#allocation3 + $0xf8] sm:$0xff]
  %v1161 = vld [vmem:[#allocation3 + $0x100] sm:$0xff]
  %v1162 = vld [vmem:[#allocation3 + $0x108] sm:$0xff]
  %v1163 = vld [vmem:[#allocation3 + $0x110] sm:$0xff]
  %v1164 = vld [vmem:[#allocation3 + $0x118] sm:$0xff]
  %v1165 = vld [vmem:[%s7] sm:$0xff]
  %1167 = vset.pattern.permute.xlu0 0
  %1168 = vperm.xlu0 %1167, %v1165
  %v1169 = vpop.permute.xlu0 %1168
  %v1172 = vsel %vm607, %v1128, 0
  %1174 = vmatprep.subr.mxu0 %v1130
  %1175 = vmatpush1.msra.mxu0 %v1129
  %1176 = vmatprep.subr.mxu0 %v1134
  %1177 = vmatpush1.msra.mxu0 %v1133
  %1178 = vmatprep.subr.mxu0 %v1138
  %1179 = vmatpush1.msra.mxu0 %v1137
  %1180 = vmatprep.subr.mxu0 %v1142
  %1181 = vmatpush1.msra.mxu0 %v1141
  %1182 = vmatprep.subr.mxu0 %v1146
  %1183 = vmatpush1.msra.mxu0 %v1145
  %1184 = vmatprep.subr.mxu0 %v1150
  %1185 = vmatpush1.msra.mxu0 %v1149
  %1186 = vmatprep.subr.mxu0 %v1154
  %1187 = vmatpush1.msra.mxu0 %v1153
  %1188 = vmatprep.subr.mxu0 %v1158
  %1189 = vmatpush1.msra.mxu0 %v1157
  %1190 = vmatprep.subr.mxu0 %v1162
  %1191 = vmatpush1.msra.mxu0 %v1161
  %1192 = vmatprep.subr.mxu0 0.0
  %1193 = vmatpush1.msra.mxu0 0.0
  %1194 = vmatprep.subr.mxu0 0.0
  %1195 = vmatpush1.msra.mxu0 0.0
  %1196 = vmatprep.subr.mxu0 0.0
  %1197 = vmatpush1.msra.mxu0 0.0
  %1198 = vmatprep.subr.mxu0 0.0
  %1199 = vmatpush1.msra.mxu0 0.0
  %1200 = vmatprep.subr.mxu0 0.0
  %1201 = vmatpush1.msra.mxu0 0.0
  %1202 = vmatprep.subr.mxu0 0.0
  %1203 = vmatpush1.msra.mxu0 0.0
  %1204 = vmatprep.subr.mxu0 0.0
  %1205 = vmatpush1.msra.mxu0 0.0
  %1206 = vmatprep.subr.mxu0 0.0
  %1207 = vmatpush1.msra.mxu0 0.0
  %1208 = vmatprep.subr.mxu0 0.0
  %1209 = vmatpush1.msra.mxu0 0.0
  %1210 = vmatprep.subr.mxu0 0.0
  %1211 = vmatpush1.msra.mxu0 0.0
  %1212 = vmatprep.subr.mxu0 0.0
  %1213 = vmatpush1.msra.mxu0 0.0
  %1214 = vmatprep.subr.mxu0 0.0
  %1215 = vmatpush1.msra.mxu0 0.0
  %1216 = vmatprep.subr.mxu0 0.0
  %1217 = vmatpush1.msra.mxu0 0.0
  %1218 = vmatprep.subr.mxu0 0.0
  %1219 = vmatpush1.msra.mxu0 0.0
  %1220 = vmatprep.subr.mxu0 0.0
  %1221 = vmatpush1.msra.mxu0 0.0
  %1222 = vmatprep.subr.mxu0 0.0
  %1223 = vmatpush1.msra.mxu0 0.0
  %1224 = vmatprep.subr.mxu0 0.0
  %1225 = vmatpush1.msra.mxu0 0.0
  %1226 = vmatprep.subr.mxu0 0.0
  %1227 = vmatpush1.msra.mxu0 0.0
  %1228 = vmatprep.subr.mxu0 0.0
  %1229 = vmatpush1.msra.mxu0 0.0
  %1230 = vmatprep.subr.mxu0 0.0
  %1231 = vmatpush1.msra.mxu0 0.0
  %1232 = vmatprep.subr.mxu0 0.0
  %1233 = vmatpush1.msra.mxu0 0.0
  %1234 = vmatprep.subr.mxu0 0.0
  %1235 = vmatpush1.msra.mxu0 0.0
  %1236 = vmatprep.subr.mxu0 0.0
  %1237 = vmatpush1.msra.mxu0 0.0
  %1238 = vmatprep.mubr.f32.mxu0 0.0
  %1239 = vmatmul.mubr.f32.gmra.mrb[0].mxu0 %v1172
  %v1240 = vpop.f32.mrb[0].mxu0
  %v1241 = vadd.f32 %v1169, %v1240
  %v1242 = vpop.f32.mrb[0].mxu0
  %v1243 = vadd.f32 %v1169, %v1242
  %1244 = vdwg.mxu0
  %1245 = vmatprep.subr.mxu0 %v1132
  %1246 = vmatpush1.msra.mxu0 %v1131
  %1247 = vmatprep.subr.mxu0 %v1136
  %1248 = vmatpush1.msra.mxu0 %v1135
  %1249 = vmatprep.subr.mxu0 %v1140
  %1250 = vmatpush1.msra.mxu0 %v1139
  %1251 = vmatprep.subr.mxu0 %v1144
  %1252 = vmatpush1.msra.mxu0 %v1143
  %1253 = vmatprep.subr.mxu0 %v1148
  %1254 = vmatpush1.msra.mxu0 %v1147
  %1255 = vmatprep.subr.mxu0 %v1152
  %1256 = vmatpush1.msra.mxu0 %v1151
  %1257 = vmatprep.subr.mxu0 %v1156
  %1258 = vmatpush1.msra.mxu0 %v1155
  %1259 = vmatprep.subr.mxu0 %v1160
  %1260 = vmatpush1.msra.mxu0 %v1159
  %1261 = vmatprep.subr.mxu0 %v1164
  %1262 = vmatpush1.msra.mxu0 %v1163
  %1263 = vmatprep.subr.mxu0 0.0
  %1264 = vmatpush1.msra.mxu0 0.0
  %1265 = vmatprep.subr.mxu0 0.0
  %1266 = vmatpush1.msra.mxu0 0.0
  %1267 = vmatprep.subr.mxu0 0.0
  %1268 = vmatpush1.msra.mxu0 0.0
  %1269 = vmatprep.subr.mxu0 0.0
  %1270 = vmatpush1.msra.mxu0 0.0
  %1271 = vmatprep.subr.mxu0 0.0
  %1272 = vmatpush1.msra.mxu0 0.0
  %1273 = vmatprep.subr.mxu0 0.0
  %1274 = vmatpush1.msra.mxu0 0.0
  %1275 = vmatprep.subr.mxu0 0.0
  %1276 = vmatpush1.msra.mxu0 0.0
  %1277 = vmatprep.subr.mxu0 0.0
  %1278 = vmatpush1.msra.mxu0 0.0
  %1279 = vmatprep.subr.mxu0 0.0
  %1280 = vmatpush1.msra.mxu0 0.0
  %1281 = vmatprep.subr.mxu0 0.0
  %1282 = vmatpush1.msra.mxu0 0.0
  %1283 = vmatprep.subr.mxu0 0.0
  %1284 = vmatpush1.msra.mxu0 0.0
  %1285 = vmatprep.subr.mxu0 0.0
  %1286 = vmatpush1.msra.mxu0 0.0
  %1287 = vmatprep.subr.mxu0 0.0
  %1288 = vmatpush1.msra.mxu0 0.0
  %1289 = vmatprep.subr.mxu0 0.0
  %1290 = vmatpush1.msra.mxu0 0.0
  %1291 = vmatprep.subr.mxu0 0.0
  %1292 = vmatpush1.msra.mxu0 0.0
  %1293 = vmatprep.subr.mxu0 0.0
  %1294 = vmatpush1.msra.mxu0 0.0
  %1295 = vmatprep.subr.mxu0 0.0
  %1296 = vmatpush1.msra.mxu0 0.0
  %1297 = vmatprep.subr.mxu0 0.0
  %1298 = vmatpush1.msra.mxu0 0.0
  %1299 = vmatprep.subr.mxu0 0.0
  %1300 = vmatpush1.msra.mxu0 0.0
  %1301 = vmatprep.subr.mxu0 0.0
  %1302 = vmatpush1.msra.mxu0 0.0
  %1303 = vmatprep.subr.mxu0 0.0
  %1304 = vmatpush1.msra.mxu0 0.0
  %1305 = vmatprep.subr.mxu0 0.0
  %1306 = vmatpush1.msra.mxu0 0.0
  %1307 = vmatprep.subr.mxu0 0.0
  %1308 = vmatpush1.msra.mxu0 0.0
  %1309 = vmatprep.mubr.f32.mxu0 0.0
  %1310 = vmatmul.mubr.f32.gmra.mrb[0].mxu0 %v1172
  %v1311 = vpop.f32.mrb[0].mxu0
  %v1312 = vadd.f32 %v1169, %v1311
  %v1313 = vpop.f32.mrb[0].mxu0
  %v1314 = vadd.f32 %v1169, %v1313
  %1315 = vdwg.mxu0
  %v1316 = vmax.f32 %v1241, 0.0
  %v1317 = vmax.f32 %v1243, 0.0
  %v1318 = vmax.f32 %v1312, 0.0
  %v1319 = vmax.f32 %v1314, 0.0
  %1322 = vrot.lane.b32.xlu0 %v1316, 17
  %v1323 = vpop.permute.xlu0 %1322
  %1324 = vrot.lane.b32.xlu0 %v1317, 17
  %v1325 = vpop.permute.xlu0 %1324
  %v1326 = vsel %vm43, %v1323, %v1325
  %1330 = vst.msk [vmem:[#allocation2] sm:$0xff] %vm59, %v1323
  %1331 = vst [vmem:[#allocation2 + $0x8] sm:$0xff] %v1326
  %1332 = vst.msk [vmem:[#allocation2 + $0x10] sm:$0xff] %vm43, %v1325
  %1335 = vrot.lane.b32.xlu0 %v1318, 51
  %v1336 = vpop.permute.xlu0 %1335
  %1337 = vrot.lane.b32.xlu0 %v1319, 51
  %v1338 = vpop.permute.xlu0 %1337
  %v1339 = vsel %vm76, %v1336, %v1338
  %1343 = vst.msk [vmem:[#allocation2 + $0x10] sm:$0xff] %vm81, %v1336
  %1344 = vst [vmem:[#allocation2 + $0x18] sm:$0xff] %v1339
  %1345 = vst.msk [vmem:[#allocation2 + $0x20] sm:$0xff] %vm76, %v1338
  %v1346 = vld [vmem:[#allocation2] sm:$0xff]
  %v1347 = vld [vmem:[#allocation2 + $0x8] sm:$0xff]
  %v1348 = vmul.f32 %v1346, %v91
  %v1349 = vmul.f32 %v1347, %v95
  %1350 = vst [vmem:[#allocation3] sm:$0xff] %v1348
  %1351 = vst [vmem:[#allocation3 + $0x8] sm:$0xff] %v1349
  %v1352 = vld [vmem:[#allocation2 + $0x10] sm:$0xff]
  %v1353 = vld [vmem:[#allocation2 + $0x18] sm:$0xff]
  %v1354 = vld [vmem:[#allocation2 + $0x20] sm:$0xff]
  %v1355 = vmul.f32 %v1352, %v106
  %v1356 = vmul.f32 %v1353, %v110
  %v1357 = vmul.f32 %v1354, %v108
  %1361 = vrot.lane.b32.xlu0 %v1355, 94
  %v1362 = vpop.permute.xlu0 %1361
  %1363 = vrot.lane.b32.xlu0 %v1356, 94
  %v1364 = vpop.permute.xlu0 %1363
  %1365 = vrot.lane.b32.xlu0 %v1357, 94
  %v1366 = vpop.permute.xlu0 %1365
  %v1367 = vsel %vm126, %v1362, %v1364
  %v1368 = vsel %vm126, %v1364, %v1366
  %1371 = vst [vmem:[#allocation3 + $0x10] sm:$0xff] %v1367
  %1372 = vst [vmem:[#allocation3 + $0x18] sm:$0xff] %v1368
  %v1373 = vld [vmem:[#allocation2] sm:$0xff]
  %v1374 = vld [vmem:[#allocation2 + $0x8] sm:$0xff]
  %v1375 = vld [vmem:[#allocation2 + $0x10] sm:$0xff]
  %1379 = vrot.lane.b32.xlu0 %v1373, 127
  %v1380 = vpop.permute.xlu0 %1379
  %1381 = vrot.lane.b32.xlu0 %v1374, 127
  %v1382 = vpop.permute.xlu0 %1381
  %1383 = vrot.lane.b32.xlu0 %v1375, 127
  %v1384 = vpop.permute.xlu0 %1383
  %v1385 = vsel %vm145, %v1380, %v1382
  %v1386 = vsel %vm145, %v1382, %v1384
  %1389 = vst [vmem:[#allocation3 + $0x20] sm:$0xff] %v1385
  %1390 = vst [vmem:[#allocation3 + $0x28] sm:$0xff] %v1386
  %v1391 = vld [vmem:[#allocation2 + $0x10] sm:$0xff]
  %v1392 = vld [vmem:[#allocation2 + $0x18] sm:$0xff]
  %v1393 = vld [vmem:[#allocation2 + $0x20] sm:$0xff]
  %1397 = vrot.lane.b32.xlu0 %v1391, 93
  %v1398 = vpop.permute.xlu0 %1397
  %1399 = vrot.lane.b32.xlu0 %v1392, 93
  %v1400 = vpop.permute.xlu0 %1399
  %1401 = vrot.lane.b32.xlu0 %v1393, 93
  %v1402 = vpop.permute.xlu0 %1401
  %v1403 = vsel %vm164, %v1398, %v1400
  %v1404 = vsel %vm164, %v1400, %v1402
  %1407 = vst [vmem:[#allocation3 + $0x30] sm:$0xff] %v1403
  %1408 = vst [vmem:[#allocation3 + $0x38] sm:$0xff] %v1404
  %v1409 = vld [vmem:[#allocation2] sm:$0xff]
  %v1410 = vld [vmem:[#allocation2 + $0x8] sm:$0xff]
  %v1411 = vld [vmem:[#allocation2 + $0x10] sm:$0xff]
  %v1412 = vmul.f32 %v1409, %v184
  %v1413 = vmul.f32 %v1410, %v188
  %v1414 = vmul.f32 %v1411, %v186
  %1418 = vrot.lane.b32.xlu0 %v1412, 126
  %v1419 = vpop.permute.xlu0 %1418
  %1420 = vrot.lane.b32.xlu0 %v1413, 126
  %v1421 = vpop.permute.xlu0 %1420
  %1422 = vrot.lane.b32.xlu0 %v1414, 126
  %v1423 = vpop.permute.xlu0 %1422
  %v1424 = vsel %vm204, %v1419, %v1421
  %v1425 = vsel %vm204, %v1421, %v1423
  %1428 = vst [vmem:[#allocation3 + $0x40] sm:$0xff] %v1424
  %1429 = vst [vmem:[#allocation3 + $0x48] sm:$0xff] %v1425
  %v1430 = vld [vmem:[#allocation2 + $0x10] sm:$0xff]
  %v1431 = vld [vmem:[#allocation2 + $0x18] sm:$0xff]
  %v1432 = vld [vmem:[#allocation2 + $0x20] sm:$0xff]
  %v1433 = vmul.f32 %v1430, %v215
  %v1434 = vmul.f32 %v1431, %v219
  %v1435 = vmul.f32 %v1432, %v217
  %1439 = vrot.lane.b32.xlu0 %v1433, 92
  %v1440 = vpop.permute.xlu0 %1439
  %1441 = vrot.lane.b32.xlu0 %v1434, 92
  %v1442 = vpop.permute.xlu0 %1441
  %1443 = vrot.lane.b32.xlu0 %v1435, 92
  %v1444 = vpop.permute.xlu0 %1443
  %v1445 = vsel %vm235, %v1440, %v1442
  %v1446 = vsel %vm235, %v1442, %v1444
  %1449 = vst [vmem:[#allocation3 + $0x50] sm:$0xff] %v1445
  %1450 = vst [vmem:[#allocation3 + $0x58] sm:$0xff] %v1446
  %v1451 = vld [vmem:[#allocation2] sm:$0xff]
  %v1452 = vld [vmem:[#allocation2 + $0x8] sm:$0xff]
  %v1453 = vld [vmem:[#allocation2 + $0x10] sm:$0xff]
  %v1454 = vmul.f32 %v1451, %v246
  %v1455 = vmul.f32 %v1452, %v250
  %v1456 = vmul.f32 %v1453, %v248
  %1460 = vrot.lane.b32.xlu0 %v1454, 112
  %v1461 = vpop.permute.xlu0 %1460
  %1462 = vrot.lane.b32.xlu0 %v1455, 112
  %v1463 = vpop.permute.xlu0 %1462
  %1464 = vrot.lane.b32.xlu0 %v1456, 112
  %v1465 = vpop.permute.xlu0 %1464
  %v1466 = vsel %vm266, %v1461, %v1463
  %v1467 = vsel %vm266, %v1463, %v1465
  %1470 = vst [vmem:[#allocation3 + $0x60] sm:$0xff] %v1466
  %1471 = vst [vmem:[#allocation3 + $0x68] sm:$0xff] %v1467
  %v1472 = vld [vmem:[#allocation2 + $0x10] sm:$0xff]
  %v1473 = vld [vmem:[#allocation2 + $0x18] sm:$0xff]
  %v1474 = vld [vmem:[#allocation2 + $0x20] sm:$0xff]
  %v1475 = vmul.f32 %v1472, %v277
  %v1476 = vmul.f32 %v1473, %v281
  %v1477 = vmul.f32 %v1474, %v279
  %1481 = vrot.lane.b32.xlu0 %v1475, 78
  %v1482 = vpop.permute.xlu0 %1481
  %1483 = vrot.lane.b32.xlu0 %v1476, 78
  %v1484 = vpop.permute.xlu0 %1483
  %1485 = vrot.lane.b32.xlu0 %v1477, 78
  %v1486 = vpop.permute.xlu0 %1485
  %v1487 = vsel %vm297, %v1482, %v1484
  %v1488 = vsel %vm297, %v1484, %v1486
  %1491 = vst [vmem:[#allocation3 + $0x70] sm:$0xff] %v1487
  %1492 = vst [vmem:[#allocation3 + $0x78] sm:$0xff] %v1488
  %v1493 = vld [vmem:[#allocation2] sm:$0xff]
  %v1494 = vld [vmem:[#allocation2 + $0x8] sm:$0xff]
  %v1495 = vld [vmem:[#allocation2 + $0x10] sm:$0xff]
  %1499 = vrot.lane.b32.xlu0 %v1493, 111
  %v1500 = vpop.permute.xlu0 %1499
  %1501 = vrot.lane.b32.xlu0 %v1494, 111
  %v1502 = vpop.permute.xlu0 %1501
  %1503 = vrot.lane.b32.xlu0 %v1495, 111
  %v1504 = vpop.permute.xlu0 %1503
  %v1505 = vsel %vm316, %v1500, %v1502
  %v1506 = vsel %vm316, %v1502, %v1504
  %1509 = vst [vmem:[#allocation3 + $0x80] sm:$0xff] %v1505
  %1510 = vst [vmem:[#allocation3 + $0x88] sm:$0xff] %v1506
  %v1511 = vld [vmem:[#allocation2 + $0x10] sm:$0xff]
  %v1512 = vld [vmem:[#allocation2 + $0x18] sm:$0xff]
  %v1513 = vld [vmem:[#allocation2 + $0x20] sm:$0xff]
  %1517 = vrot.lane.b32.xlu0 %v1511, 77
  %v1518 = vpop.permute.xlu0 %1517
  %1519 = vrot.lane.b32.xlu0 %v1512, 77
  %v1520 = vpop.permute.xlu0 %1519
  %1521 = vrot.lane.b32.xlu0 %v1513, 77
  %v1522 = vpop.permute.xlu0 %1521
  %v1523 = vsel %vm335, %v1518, %v1520
  %v1524 = vsel %vm335, %v1520, %v1522
  %1527 = vst [vmem:[#allocation3 + $0x90] sm:$0xff] %v1523
  %1528 = vst [vmem:[#allocation3 + $0x98] sm:$0xff] %v1524
  %v1529 = vld [vmem:[#allocation2] sm:$0xff]
  %v1530 = vld [vmem:[#allocation2 + $0x8] sm:$0xff]
  %v1531 = vld [vmem:[#allocation2 + $0x10] sm:$0xff]
  %v1532 = vmul.f32 %v1529, %v346
  %v1533 = vmul.f32 %v1530, %v350
  %v1534 = vmul.f32 %v1531, %v348
  %1538 = vrot.lane.b32.xlu0 %v1532, 110
  %v1539 = vpop.permute.xlu0 %1538
  %1540 = vrot.lane.b32.xlu0 %v1533, 110
  %v1541 = vpop.permute.xlu0 %1540
  %1542 = vrot.lane.b32.xlu0 %v1534, 110
  %v1543 = vpop.permute.xlu0 %1542
  %v1544 = vsel %vm366, %v1539, %v1541
  %v1545 = vsel %vm366, %v1541, %v1543
  %1548 = vst [vmem:[#allocation3 + $0xa0] sm:$0xff] %v1544
  %1549 = vst [vmem:[#allocation3 + $0xa8] sm:$0xff] %v1545
  %v1550 = vld [vmem:[#allocation2 + $0x10] sm:$0xff]
  %v1551 = vld [vmem:[#allocation2 + $0x18] sm:$0xff]
  %v1552 = vld [vmem:[#allocation2 + $0x20] sm:$0xff]
  %v1553 = vmul.f32 %v1550, %v377
  %v1554 = vmul.f32 %v1551, %v381
  %v1555 = vmul.f32 %v1552, %v379
  %1559 = vrot.lane.b32.xlu0 %v1553, 76
  %v1560 = vpop.permute.xlu0 %1559
  %1561 = vrot.lane.b32.xlu0 %v1554, 76
  %v1562 = vpop.permute.xlu0 %1561
  %1563 = vrot.lane.b32.xlu0 %v1555, 76
  %v1564 = vpop.permute.xlu0 %1563
  %v1565 = vsel %vm397, %v1560, %v1562
  %v1566 = vsel %vm397, %v1562, %v1564
  %1569 = vst [vmem:[#allocation3 + $0xb0] sm:$0xff] %v1565
  %1570 = vst [vmem:[#allocation3 + $0xb8] sm:$0xff] %v1566
  %v1571 = vld [vmem:[#allocation2] sm:$0xff]
  %v1572 = vld [vmem:[#allocation2 + $0x8] sm:$0xff]
  %v1573 = vld [vmem:[#allocation2 + $0x10] sm:$0xff]
  %v1574 = vmul.f32 %v1571, %v408
  %v1575 = vmul.f32 %v1572, %v412
  %v1576 = vmul.f32 %v1573, %v410
  %1580 = vrot.lane.b32.xlu0 %v1574, 96
  %v1581 = vpop.permute.xlu0 %1580
  %1582 = vrot.lane.b32.xlu0 %v1575, 96
  %v1583 = vpop.permute.xlu0 %1582
  %1584 = vrot.lane.b32.xlu0 %v1576, 96
  %v1585 = vpop.permute.xlu0 %1584
  %v1586 = vsel %vm428, %v1581, %v1583
  %v1587 = vsel %vm428, %v1583, %v1585
  %1590 = vst [vmem:[#allocation3 + $0xc0] sm:$0xff] %v1586
  %1591 = vst [vmem:[#allocation3 + $0xc8] sm:$0xff] %v1587
  %v1592 = vld [vmem:[#allocation2 + $0x10] sm:$0xff]
  %v1593 = vld [vmem:[#allocation2 + $0x18] sm:$0xff]
  %v1594 = vld [vmem:[#allocation2 + $0x20] sm:$0xff]
  %v1595 = vmul.f32 %v1592, %v439
  %v1596 = vmul.f32 %v1593, %v443
  %v1597 = vmul.f32 %v1594, %v441
  %1601 = vrot.lane.b32.xlu0 %v1595, 62
  %v1602 = vpop.permute.xlu0 %1601
  %1603 = vrot.lane.b32.xlu0 %v1596, 62
  %v1604 = vpop.permute.xlu0 %1603
  %1605 = vrot.lane.b32.xlu0 %v1597, 62
  %v1606 = vpop.permute.xlu0 %1605
  %v1607 = vsel %vm459, %v1602, %v1604
  %v1608 = vsel %vm459, %v1604, %v1606
  %1611 = vst [vmem:[#allocation3 + $0xd0] sm:$0xff] %v1607
  %1612 = vst [vmem:[#allocation3 + $0xd8] sm:$0xff] %v1608
  %v1613 = vld [vmem:[#allocation2] sm:$0xff]
  %v1614 = vld [vmem:[#allocation2 + $0x8] sm:$0xff]
  %v1615 = vld [vmem:[#allocation2 + $0x10] sm:$0xff]
  %1619 = vrot.lane.b32.xlu0 %v1613, 95
  %v1620 = vpop.permute.xlu0 %1619
  %1621 = vrot.lane.b32.xlu0 %v1614, 95
  %v1622 = vpop.permute.xlu0 %1621
  %1623 = vrot.lane.b32.xlu0 %v1615, 95
  %v1624 = vpop.permute.xlu0 %1623
  %v1625 = vsel %vm478, %v1620, %v1622
  %v1626 = vsel %vm478, %v1622, %v1624
  %1629 = vst [vmem:[#allocation3 + $0xe0] sm:$0xff] %v1625
  %1630 = vst [vmem:[#allocation3 + $0xe8] sm:$0xff] %v1626
  %v1631 = vld [vmem:[#allocation2 + $0x10] sm:$0xff]
  %v1632 = vld [vmem:[#allocation2 + $0x18] sm:$0xff]
  %v1633 = vld [vmem:[#allocation2 + $0x20] sm:$0xff]
  %1637 = vrot.lane.b32.xlu0 %v1631, 61
  %v1638 = vpop.permute.xlu0 %1637
  %1639 = vrot.lane.b32.xlu0 %v1632, 61
  %v1640 = vpop.permute.xlu0 %1639
  %1641 = vrot.lane.b32.xlu0 %v1633, 61
  %v1642 = vpop.permute.xlu0 %1641
  %v1643 = vsel %vm497, %v1638, %v1640
  %v1644 = vsel %vm497, %v1640, %v1642
  %1647 = vst [vmem:[#allocation3 + $0xf0] sm:$0xff] %v1643
  %1648 = vst [vmem:[#allocation3 + $0xf8] sm:$0xff] %v1644
  %v1649 = vld [vmem:[#allocation2] sm:$0xff]
  %v1650 = vld [vmem:[#allocation2 + $0x8] sm:$0xff]
  %v1651 = vld [vmem:[#allocation2 + $0x10] sm:$0xff]
  %v1652 = vmul.f32 %v1649, %v508
  %v1653 = vmul.f32 %v1650, %v511
  %v1654 = vmul.f32 %v1651, %v510
  %1658 = vrot.lane.b32.xlu0 %v1652, 94
  %v1659 = vpop.permute.xlu0 %1658
  %1660 = vrot.lane.b32.xlu0 %v1653, 94
  %v1661 = vpop.permute.xlu0 %1660
  %1662 = vrot.lane.b32.xlu0 %v1654, 94
  %v1663 = vpop.permute.xlu0 %1662
  %v1664 = vsel %vm126, %v1659, %v1661
  %v1665 = vsel %vm126, %v1661, %v1663
  %1668 = vst [vmem:[#allocation3 + $0x100] sm:$0xff] %v1664
  %1669 = vst [vmem:[#allocation3 + $0x108] sm:$0xff] %v1665
  %v1670 = vld [vmem:[#allocation2 + $0x10] sm:$0xff]
  %v1671 = vld [vmem:[#allocation2 + $0x18] sm:$0xff]
  %v1672 = vld [vmem:[#allocation2 + $0x20] sm:$0xff]
  %v1673 = vmul.f32 %v1670, %v537
  %v1674 = vmul.f32 %v1671, %v541
  %v1675 = vmul.f32 %v1672, %v539
  %1679 = vrot.lane.b32.xlu0 %v1673, 60
  %v1680 = vpop.permute.xlu0 %1679
  %1681 = vrot.lane.b32.xlu0 %v1674, 60
  %v1682 = vpop.permute.xlu0 %1681
  %1683 = vrot.lane.b32.xlu0 %v1675, 60
  %v1684 = vpop.permute.xlu0 %1683
  %v1685 = vsel %vm557, %v1680, %v1682
  %v1686 = vsel %vm557, %v1682, %v1684
  %1689 = vst [vmem:[#allocation3 + $0x110] sm:$0xff] %v1685
  %1690 = vst [vmem:[#allocation3 + $0x118] sm:$0xff] %v1686
  %v1691 = vld [vmem:[%s8] sm:$0xff]
  %v1692 = vld [vmem:[#allocation3] sm:$0xff]
  %v1693 = vld [vmem:[#allocation3 + $0x8] sm:$0xff]
  %v1694 = vld [vmem:[#allocation3 + $0x10] sm:$0xff]
  %v1695 = vld [vmem:[#allocation3 + $0x18] sm:$0xff]
  %v1696 = vld [vmem:[#allocation3 + $0x20] sm:$0xff]
  %v1697 = vld [vmem:[#allocation3 + $0x28] sm:$0xff]
  %v1698 = vld [vmem:[#allocation3 + $0x30] sm:$0xff]
  %v1699 = vld [vmem:[#allocation3 + $0x38] sm:$0xff]
  %v1700 = vld [vmem:[#allocation3 + $0x40] sm:$0xff]
  %v1701 = vld [vmem:[#allocation3 + $0x48] sm:$0xff]
  %v1702 = vld [vmem:[#allocation3 + $0x50] sm:$0xff]
  %v1703 = vld [vmem:[#allocation3 + $0x58] sm:$0xff]
  %v1704 = vld [vmem:[#allocation3 + $0x60] sm:$0xff]
  %v1705 = vld [vmem:[#allocation3 + $0x68] sm:$0xff]
  %v1706 = vld [vmem:[#allocation3 + $0x70] sm:$0xff]
  %v1707 = vld [vmem:[#allocation3 + $0x78] sm:$0xff]
  %v1708 = vld [vmem:[#allocation3 + $0x80] sm:$0xff]
  %v1709 = vld [vmem:[#allocation3 + $0x88] sm:$0xff]
  %v1710 = vld [vmem:[#allocation3 + $0x90] sm:$0xff]
  %v1711 = vld [vmem:[#allocation3 + $0x98] sm:$0xff]
  %v1712 = vld [vmem:[#allocation3 + $0xa0] sm:$0xff]
  %v1713 = vld [vmem:[#allocation3 + $0xa8] sm:$0xff]
  %v1714 = vld [vmem:[#allocation3 + $0xb0] sm:$0xff]
  %v1715 = vld [vmem:[#allocation3 + $0xb8] sm:$0xff]
  %v1716 = vld [vmem:[#allocation3 + $0xc0] sm:$0xff]
  %v1717 = vld [vmem:[#allocation3 + $0xc8] sm:$0xff]
  %v1718 = vld [vmem:[#allocation3 + $0xd0] sm:$0xff]
  %v1719 = vld [vmem:[#allocation3 + $0xd8] sm:$0xff]
  %v1720 = vld [vmem:[#allocation3 + $0xe0] sm:$0xff]
  %v1721 = vld [vmem:[#allocation3 + $0xe8] sm:$0xff]
  %v1722 = vld [vmem:[#allocation3 + $0xf0] sm:$0xff]
  %v1723 = vld [vmem:[#allocation3 + $0xf8] sm:$0xff]
  %v1724 = vld [vmem:[#allocation3 + $0x100] sm:$0xff]
  %v1725 = vld [vmem:[#allocation3 + $0x108] sm:$0xff]
  %v1726 = vld [vmem:[#allocation3 + $0x110] sm:$0xff]
  %v1727 = vld [vmem:[#allocation3 + $0x118] sm:$0xff]
  %v1728 = vld [vmem:[%s9] sm:$0xff]
  %1730 = vset.pattern.permute.xlu0 0
  %1731 = vperm.xlu0 %1730, %v1728
  %v1732 = vpop.permute.xlu0 %1731
  %v1735 = vsel %vm607, %v1691, 0
  %1737 = vmatprep.subr.mxu0 %v1693
  %1738 = vmatpush1.msra.mxu0 %v1692
  %1739 = vmatprep.subr.mxu0 %v1697
  %1740 = vmatpush1.msra.mxu0 %v1696
  %1741 = vmatprep.subr.mxu0 %v1701
  %1742 = vmatpush1.msra.mxu0 %v1700
  %1743 = vmatprep.subr.mxu0 %v1705
  %1744 = vmatpush1.msra.mxu0 %v1704
  %1745 = vmatprep.subr.mxu0 %v1709
  %1746 = vmatpush1.msra.mxu0 %v1708
  %1747 = vmatprep.subr.mxu0 %v1713
  %1748 = vmatpush1.msra.mxu0 %v1712
  %1749 = vmatprep.subr.mxu0 %v1717
  %1750 = vmatpush1.msra.mxu0 %v1716
  %1751 = vmatprep.subr.mxu0 %v1721
  %1752 = vmatpush1.msra.mxu0 %v1720
  %1753 = vmatprep.subr.mxu0 %v1725
  %1754 = vmatpush1.msra.mxu0 %v1724
  %1755 = vmatprep.subr.mxu0 0.0
  %1756 = vmatpush1.msra.mxu0 0.0
  %1757 = vmatprep.subr.mxu0 0.0
  %1758 = vmatpush1.msra.mxu0 0.0
  %1759 = vmatprep.subr.mxu0 0.0
  %1760 = vmatpush1.msra.mxu0 0.0
  %1761 = vmatprep.subr.mxu0 0.0
  %1762 = vmatpush1.msra.mxu0 0.0
  %1763 = vmatprep.subr.mxu0 0.0
  %1764 = vmatpush1.msra.mxu0 0.0
  %1765 = vmatprep.subr.mxu0 0.0
  %1766 = vmatpush1.msra.mxu0 0.0
  %1767 = vmatprep.subr.mxu0 0.0
  %1768 = vmatpush1.msra.mxu0 0.0
  %1769 = vmatprep.subr.mxu0 0.0
  %1770 = vmatpush1.msra.mxu0 0.0
  %1771 = vmatprep.subr.mxu0 0.0
  %1772 = vmatpush1.msra.mxu0 0.0
  %1773 = vmatprep.subr.mxu0 0.0
  %1774 = vmatpush1.msra.mxu0 0.0
  %1775 = vmatprep.subr.mxu0 0.0
  %1776 = vmatpush1.msra.mxu0 0.0
  %1777 = vmatprep.subr.mxu0 0.0
  %1778 = vmatpush1.msra.mxu0 0.0
  %1779 = vmatprep.subr.mxu0 0.0
  %1780 = vmatpush1.msra.mxu0 0.0
  %1781 = vmatprep.subr.mxu0 0.0
  %1782 = vmatpush1.msra.mxu0 0.0
  %1783 = vmatprep.subr.mxu0 0.0
  %1784 = vmatpush1.msra.mxu0 0.0
  %1785 = vmatprep.subr.mxu0 0.0
  %1786 = vmatpush1.msra.mxu0 0.0
  %1787 = vmatprep.subr.mxu0 0.0
  %1788 = vmatpush1.msra.mxu0 0.0
  %1789 = vmatprep.subr.mxu0 0.0
  %1790 = vmatpush1.msra.mxu0 0.0
  %1791 = vmatprep.subr.mxu0 0.0
  %1792 = vmatpush1.msra.mxu0 0.0
  %1793 = vmatprep.subr.mxu0 0.0
  %1794 = vmatpush1.msra.mxu0 0.0
  %1795 = vmatprep.subr.mxu0 0.0
  %1796 = vmatpush1.msra.mxu0 0.0
  %1797 = vmatprep.subr.mxu0 0.0
  %1798 = vmatpush1.msra.mxu0 0.0
  %1799 = vmatprep.subr.mxu0 0.0
  %1800 = vmatpush1.msra.mxu0 0.0
  %1801 = vmatprep.mubr.f32.mxu0 0.0
  %1802 = vmatmul.mubr.f32.gmra.mrb[0].mxu0 %v1735
  %v1803 = vpop.f32.mrb[0].mxu0
  %v1804 = vadd.f32 %v1732, %v1803
  %v1805 = vpop.f32.mrb[0].mxu0
  %v1806 = vadd.f32 %v1732, %v1805
  %1807 = vdwg.mxu0
  %1808 = vmatprep.subr.mxu0 %v1695
  %1809 = vmatpush1.msra.mxu0 %v1694
  %1810 = vmatprep.subr.mxu0 %v1699
  %1811 = vmatpush1.msra.mxu0 %v1698
  %1812 = vmatprep.subr.mxu0 %v1703
  %1813 = vmatpush1.msra.mxu0 %v1702
  %1814 = vmatprep.subr.mxu0 %v1707
  %1815 = vmatpush1.msra.mxu0 %v1706
  %1816 = vmatprep.subr.mxu0 %v1711
  %1817 = vmatpush1.msra.mxu0 %v1710
  %1818 = vmatprep.subr.mxu0 %v1715
  %1819 = vmatpush1.msra.mxu0 %v1714
  %1820 = vmatprep.subr.mxu0 %v1719
  %1821 = vmatpush1.msra.mxu0 %v1718
  %1822 = vmatprep.subr.mxu0 %v1723
  %1823 = vmatpush1.msra.mxu0 %v1722
  %1824 = vmatprep.subr.mxu0 %v1727
  %1825 = vmatpush1.msra.mxu0 %v1726
  %1826 = vmatprep.subr.mxu0 0.0
  %1827 = vmatpush1.msra.mxu0 0.0
  %1828 = vmatprep.subr.mxu0 0.0
  %1829 = vmatpush1.msra.mxu0 0.0
  %1830 = vmatprep.subr.mxu0 0.0
  %1831 = vmatpush1.msra.mxu0 0.0
  %1832 = vmatprep.subr.mxu0 0.0
  %1833 = vmatpush1.msra.mxu0 0.0
  %1834 = vmatprep.subr.mxu0 0.0
  %1835 = vmatpush1.msra.mxu0 0.0
  %1836 = vmatprep.subr.mxu0 0.0
  %1837 = vmatpush1.msra.mxu0 0.0
  %1838 = vmatprep.subr.mxu0 0.0
  %1839 = vmatpush1.msra.mxu0 0.0
  %1840 = vmatprep.subr.mxu0 0.0
  %1841 = vmatpush1.msra.mxu0 0.0
  %1842 = vmatprep.subr.mxu0 0.0
  %1843 = vmatpush1.msra.mxu0 0.0
  %1844 = vmatprep.subr.mxu0 0.0
  %1845 = vmatpush1.msra.mxu0 0.0
  %1846 = vmatprep.subr.mxu0 0.0
  %1847 = vmatpush1.msra.mxu0 0.0
  %1848 = vmatprep.subr.mxu0 0.0
  %1849 = vmatpush1.msra.mxu0 0.0
  %1850 = vmatprep.subr.mxu0 0.0
  %1851 = vmatpush1.msra.mxu0 0.0
  %1852 = vmatprep.subr.mxu0 0.0
  %1853 = vmatpush1.msra.mxu0 0.0
  %1854 = vmatprep.subr.mxu0 0.0
  %1855 = vmatpush1.msra.mxu0 0.0
  %1856 = vmatprep.subr.mxu0 0.0
  %1857 = vmatpush1.msra.mxu0 0.0
  %1858 = vmatprep.subr.mxu0 0.0
  %1859 = vmatpush1.msra.mxu0 0.0
  %1860 = vmatprep.subr.mxu0 0.0
  %1861 = vmatpush1.msra.mxu0 0.0
  %1862 = vmatprep.subr.mxu0 0.0
  %1863 = vmatpush1.msra.mxu0 0.0
  %1864 = vmatprep.subr.mxu0 0.0
  %1865 = vmatpush1.msra.mxu0 0.0
  %1866 = vmatprep.subr.mxu0 0.0
  %1867 = vmatpush1.msra.mxu0 0.0
  %1868 = vmatprep.subr.mxu0 0.0
  %1869 = vmatpush1.msra.mxu0 0.0
  %1870 = vmatprep.subr.mxu0 0.0
  %1871 = vmatpush1.msra.mxu0 0.0
  %1872 = vmatprep.mubr.f32.mxu0 0.0
  %1873 = vmatmul.mubr.f32.gmra.mrb[0].mxu0 %v1735
  %v1874 = vpop.f32.mrb[0].mxu0
  %v1875 = vadd.f32 %v1732, %v1874
  %v1876 = vpop.f32.mrb[0].mxu0
  %v1877 = vadd.f32 %v1732, %v1876
  %1878 = vdwg.mxu0
  %v1879 = vmax.f32 %v1804, 0.0
  %v1880 = vmax.f32 %v1806, 0.0
  %v1881 = vmax.f32 %v1875, 0.0
  %v1882 = vmax.f32 %v1877, 0.0
  %1885 = vrot.lane.b32.xlu0 %v1879, 17
  %v1886 = vpop.permute.xlu0 %1885
  %1887 = vrot.lane.b32.xlu0 %v1880, 17
  %v1888 = vpop.permute.xlu0 %1887
  %v1889 = vsel %vm43, %v1886, %v1888
  %1893 = vst.msk [vmem:[#allocation2] sm:$0xff] %vm59, %v1886
  %1894 = vst [vmem:[#allocation2 + $0x8] sm:$0xff] %v1889
  %1895 = vst.msk [vmem:[#allocation2 + $0x10] sm:$0xff] %vm43, %v1888
  %1898 = vrot.lane.b32.xlu0 %v1881, 51
  %v1899 = vpop.permute.xlu0 %1898
  %1900 = vrot.lane.b32.xlu0 %v1882, 51
  %v1901 = vpop.permute.xlu0 %1900
  %v1902 = vsel %vm76, %v1899, %v1901
  %1906 = vst.msk [vmem:[#allocation2 + $0x10] sm:$0xff] %vm81, %v1899
  %1907 = vst [vmem:[#allocation2 + $0x18] sm:$0xff] %v1902
  %1908 = vst.msk [vmem:[#allocation2 + $0x20] sm:$0xff] %vm76, %v1901
  %v1909 = vld [vmem:[#allocation2] sm:$0xff]
  %v1910 = vld [vmem:[#allocation2 + $0x8] sm:$0xff]
  %v1911 = vmul.f32 %v1909, %v91
  %v1912 = vmul.f32 %v1910, %v95
  %1913 = vst [vmem:[#allocation3] sm:$0xff] %v1911
  %1914 = vst [vmem:[#allocation3 + $0x8] sm:$0xff] %v1912
  %v1915 = vld [vmem:[#allocation2 + $0x10] sm:$0xff]
  %v1916 = vld [vmem:[#allocation2 + $0x18] sm:$0xff]
  %v1917 = vld [vmem:[#allocation2 + $0x20] sm:$0xff]
  %v1918 = vmul.f32 %v1915, %v106
  %v1919 = vmul.f32 %v1916, %v110
  %v1920 = vmul.f32 %v1917, %v108
  %1924 = vrot.lane.b32.xlu0 %v1918, 94
  %v1925 = vpop.permute.xlu0 %1924
  %1926 = vrot.lane.b32.xlu0 %v1919, 94
  %v1927 = vpop.permute.xlu0 %1926
  %1928 = vrot.lane.b32.xlu0 %v1920, 94
  %v1929 = vpop.permute.xlu0 %1928
  %v1930 = vsel %vm126, %v1925, %v1927
  %v1931 = vsel %vm126, %v1927, %v1929
  %1934 = vst [vmem:[#allocation3 + $0x10] sm:$0xff] %v1930
  %1935 = vst [vmem:[#allocation3 + $0x18] sm:$0xff] %v1931
  %v1936 = vld [vmem:[#allocation2] sm:$0xff]
  %v1937 = vld [vmem:[#allocation2 + $0x8] sm:$0xff]
  %v1938 = vld [vmem:[#allocation2 + $0x10] sm:$0xff]
  %1942 = vrot.lane.b32.xlu0 %v1936, 127
  %v1943 = vpop.permute.xlu0 %1942
  %1944 = vrot.lane.b32.xlu0 %v1937, 127
  %v1945 = vpop.permute.xlu0 %1944
  %1946 = vrot.lane.b32.xlu0 %v1938, 127
  %v1947 = vpop.permute.xlu0 %1946
  %v1948 = vsel %vm145, %v1943, %v1945
  %v1949 = vsel %vm145, %v1945, %v1947
  %1952 = vst [vmem:[#allocation3 + $0x20] sm:$0xff] %v1948
  %1953 = vst [vmem:[#allocation3 + $0x28] sm:$0xff] %v1949
  %v1954 = vld [vmem:[#allocation2 + $0x10] sm:$0xff]
  %v1955 = vld [vmem:[#allocation2 + $0x18] sm:$0xff]
  %v1956 = vld [vmem:[#allocation2 + $0x20] sm:$0xff]
  %1960 = vrot.lane.b32.xlu0 %v1954, 93
  %v1961 = vpop.permute.xlu0 %1960
  %1962 = vrot.lane.b32.xlu0 %v1955, 93
  %v1963 = vpop.permute.xlu0 %1962
  %1964 = vrot.lane.b32.xlu0 %v1956, 93
  %v1965 = vpop.permute.xlu0 %1964
  %v1966 = vsel %vm164, %v1961, %v1963
  %v1967 = vsel %vm164, %v1963, %v1965
  %1970 = vst [vmem:[#allocation3 + $0x30] sm:$0xff] %v1966
  %1971 = vst [vmem:[#allocation3 + $0x38] sm:$0xff] %v1967
  %v1972 = vld [vmem:[#allocation2] sm:$0xff]
  %v1973 = vld [vmem:[#allocation2 + $0x8] sm:$0xff]
  %v1974 = vld [vmem:[#allocation2 + $0x10] sm:$0xff]
  %v1975 = vmul.f32 %v1972, %v184
  %v1976 = vmul.f32 %v1973, %v188
  %v1977 = vmul.f32 %v1974, %v186
  %1981 = vrot.lane.b32.xlu0 %v1975, 126
  %v1982 = vpop.permute.xlu0 %1981
  %1983 = vrot.lane.b32.xlu0 %v1976, 126
  %v1984 = vpop.permute.xlu0 %1983
  %1985 = vrot.lane.b32.xlu0 %v1977, 126
  %v1986 = vpop.permute.xlu0 %1985
  %v1987 = vsel %vm204, %v1982, %v1984
  %v1988 = vsel %vm204, %v1984, %v1986
  %1991 = vst [vmem:[#allocation3 + $0x40] sm:$0xff] %v1987
  %1992 = vst [vmem:[#allocation3 + $0x48] sm:$0xff] %v1988
  %v1993 = vld [vmem:[#allocation2 + $0x10] sm:$0xff]
  %v1994 = vld [vmem:[#allocation2 + $0x18] sm:$0xff]
  %v1995 = vld [vmem:[#allocation2 + $0x20] sm:$0xff]
  %v1996 = vmul.f32 %v1993, %v215
  %v1997 = vmul.f32 %v1994, %v219
  %v1998 = vmul.f32 %v1995, %v217
  %2002 = vrot.lane.b32.xlu0 %v1996, 92
  %v2003 = vpop.permute.xlu0 %2002
  %2004 = vrot.lane.b32.xlu0 %v1997, 92
  %v2005 = vpop.permute.xlu0 %2004
  %2006 = vrot.lane.b32.xlu0 %v1998, 92
  %v2007 = vpop.permute.xlu0 %2006
  %v2008 = vsel %vm235, %v2003, %v2005
  %v2009 = vsel %vm235, %v2005, %v2007
  %2012 = vst [vmem:[#allocation3 + $0x50] sm:$0xff] %v2008
  %2013 = vst [vmem:[#allocation3 + $0x58] sm:$0xff] %v2009
  %v2014 = vld [vmem:[#allocation2] sm:$0xff]
  %v2015 = vld [vmem:[#allocation2 + $0x8] sm:$0xff]
  %v2016 = vld [vmem:[#allocation2 + $0x10] sm:$0xff]
  %v2017 = vmul.f32 %v2014, %v246
  %v2018 = vmul.f32 %v2015, %v250
  %v2019 = vmul.f32 %v2016, %v248
  %2023 = vrot.lane.b32.xlu0 %v2017, 112
  %v2024 = vpop.permute.xlu0 %2023
  %2025 = vrot.lane.b32.xlu0 %v2018, 112
  %v2026 = vpop.permute.xlu0 %2025
  %2027 = vrot.lane.b32.xlu0 %v2019, 112
  %v2028 = vpop.permute.xlu0 %2027
  %v2029 = vsel %vm266, %v2024, %v2026
  %v2030 = vsel %vm266, %v2026, %v2028
  %2033 = vst [vmem:[#allocation3 + $0x60] sm:$0xff] %v2029
  %2034 = vst [vmem:[#allocation3 + $0x68] sm:$0xff] %v2030
  %v2035 = vld [vmem:[#allocation2 + $0x10] sm:$0xff]
  %v2036 = vld [vmem:[#allocation2 + $0x18] sm:$0xff]
  %v2037 = vld [vmem:[#allocation2 + $0x20] sm:$0xff]
  %v2038 = vmul.f32 %v2035, %v277
  %v2039 = vmul.f32 %v2036, %v281
  %v2040 = vmul.f32 %v2037, %v279
  %2044 = vrot.lane.b32.xlu0 %v2038, 78
  %v2045 = vpop.permute.xlu0 %2044
  %2046 = vrot.lane.b32.xlu0 %v2039, 78
  %v2047 = vpop.permute.xlu0 %2046
  %2048 = vrot.lane.b32.xlu0 %v2040, 78
  %v2049 = vpop.permute.xlu0 %2048
  %v2050 = vsel %vm297, %v2045, %v2047
  %v2051 = vsel %vm297, %v2047, %v2049
  %2054 = vst [vmem:[#allocation3 + $0x70] sm:$0xff] %v2050
  %2055 = vst [vmem:[#allocation3 + $0x78] sm:$0xff] %v2051
  %v2056 = vld [vmem:[#allocation2] sm:$0xff]
  %v2057 = vld [vmem:[#allocation2 + $0x8] sm:$0xff]
  %v2058 = vld [vmem:[#allocation2 + $0x10] sm:$0xff]
  %2062 = vrot.lane.b32.xlu0 %v2056, 111
  %v2063 = vpop.permute.xlu0 %2062
  %2064 = vrot.lane.b32.xlu0 %v2057, 111
  %v2065 = vpop.permute.xlu0 %2064
  %2066 = vrot.lane.b32.xlu0 %v2058, 111
  %v2067 = vpop.permute.xlu0 %2066
  %v2068 = vsel %vm316, %v2063, %v2065
  %v2069 = vsel %vm316, %v2065, %v2067
  %2072 = vst [vmem:[#allocation3 + $0x80] sm:$0xff] %v2068
  %2073 = vst [vmem:[#allocation3 + $0x88] sm:$0xff] %v2069
  %v2074 = vld [vmem:[#allocation2 + $0x10] sm:$0xff]
  %v2075 = vld [vmem:[#allocation2 + $0x18] sm:$0xff]
  %v2076 = vld [vmem:[#allocation2 + $0x20] sm:$0xff]
  %2080 = vrot.lane.b32.xlu0 %v2074, 77
  %v2081 = vpop.permute.xlu0 %2080
  %2082 = vrot.lane.b32.xlu0 %v2075, 77
  %v2083 = vpop.permute.xlu0 %2082
  %2084 = vrot.lane.b32.xlu0 %v2076, 77
  %v2085 = vpop.permute.xlu0 %2084
  %v2086 = vsel %vm335, %v2081, %v2083
  %v2087 = vsel %vm335, %v2083, %v2085
  %2090 = vst [vmem:[#allocation3 + $0x90] sm:$0xff] %v2086
  %2091 = vst [vmem:[#allocation3 + $0x98] sm:$0xff] %v2087
  %v2092 = vld [vmem:[#allocation2] sm:$0xff]
  %v2093 = vld [vmem:[#allocation2 + $0x8] sm:$0xff]
  %v2094 = vld [vmem:[#allocation2 + $0x10] sm:$0xff]
  %v2095 = vmul.f32 %v2092, %v346
  %v2096 = vmul.f32 %v2093, %v350
  %v2097 = vmul.f32 %v2094, %v348
  %2101 = vrot.lane.b32.xlu0 %v2095, 110
  %v2102 = vpop.permute.xlu0 %2101
  %2103 = vrot.lane.b32.xlu0 %v2096, 110
  %v2104 = vpop.permute.xlu0 %2103
  %2105 = vrot.lane.b32.xlu0 %v2097, 110
  %v2106 = vpop.permute.xlu0 %2105
  %v2107 = vsel %vm366, %v2102, %v2104
  %v2108 = vsel %vm366, %v2104, %v2106
  %2111 = vst [vmem:[#allocation3 + $0xa0] sm:$0xff] %v2107
  %2112 = vst [vmem:[#allocation3 + $0xa8] sm:$0xff] %v2108
  %v2113 = vld [vmem:[#allocation2 + $0x10] sm:$0xff]
  %v2114 = vld [vmem:[#allocation2 + $0x18] sm:$0xff]
  %v2115 = vld [vmem:[#allocation2 + $0x20] sm:$0xff]
  %v2116 = vmul.f32 %v2113, %v377
  %v2117 = vmul.f32 %v2114, %v381
  %v2118 = vmul.f32 %v2115, %v379
  %2122 = vrot.lane.b32.xlu0 %v2116, 76
  %v2123 = vpop.permute.xlu0 %2122
  %2124 = vrot.lane.b32.xlu0 %v2117, 76
  %v2125 = vpop.permute.xlu0 %2124
  %2126 = vrot.lane.b32.xlu0 %v2118, 76
  %v2127 = vpop.permute.xlu0 %2126
  %v2128 = vsel %vm397, %v2123, %v2125
  %v2129 = vsel %vm397, %v2125, %v2127
  %2132 = vst [vmem:[#allocation3 + $0xb0] sm:$0xff] %v2128
  %2133 = vst [vmem:[#allocation3 + $0xb8] sm:$0xff] %v2129
  %v2134 = vld [vmem:[#allocation2] sm:$0xff]
  %v2135 = vld [vmem:[#allocation2 + $0x8] sm:$0xff]
  %v2136 = vld [vmem:[#allocation2 + $0x10] sm:$0xff]
  %v2137 = vmul.f32 %v2134, %v408
  %v2138 = vmul.f32 %v2135, %v412
  %v2139 = vmul.f32 %v2136, %v410
  %2143 = vrot.lane.b32.xlu0 %v2137, 96
  %v2144 = vpop.permute.xlu0 %2143
  %2145 = vrot.lane.b32.xlu0 %v2138, 96
  %v2146 = vpop.permute.xlu0 %2145
  %2147 = vrot.lane.b32.xlu0 %v2139, 96
  %v2148 = vpop.permute.xlu0 %2147
  %v2149 = vsel %vm428, %v2144, %v2146
  %v2150 = vsel %vm428, %v2146, %v2148
  %2153 = vst [vmem:[#allocation3 + $0xc0] sm:$0xff] %v2149
  %2154 = vst [vmem:[#allocation3 + $0xc8] sm:$0xff] %v2150
  %v2155 = vld [vmem:[#allocation2 + $0x10] sm:$0xff]
  %v2156 = vld [vmem:[#allocation2 + $0x18] sm:$0xff]
  %v2157 = vld [vmem:[#allocation2 + $0x20] sm:$0xff]
  %v2158 = vmul.f32 %v2155, %v439
  %v2159 = vmul.f32 %v2156, %v443
  %v2160 = vmul.f32 %v2157, %v441
  %2164 = vrot.lane.b32.xlu0 %v2158, 62
  %v2165 = vpop.permute.xlu0 %2164
  %2166 = vrot.lane.b32.xlu0 %v2159, 62
  %v2167 = vpop.permute.xlu0 %2166
  %2168 = vrot.lane.b32.xlu0 %v2160, 62
  %v2169 = vpop.permute.xlu0 %2168
  %v2170 = vsel %vm459, %v2165, %v2167
  %v2171 = vsel %vm459, %v2167, %v2169
  %2174 = vst [vmem:[#allocation3 + $0xd0] sm:$0xff] %v2170
  %2175 = vst [vmem:[#allocation3 + $0xd8] sm:$0xff] %v2171
  %v2176 = vld [vmem:[#allocation2] sm:$0xff]
  %v2177 = vld [vmem:[#allocation2 + $0x8] sm:$0xff]
  %v2178 = vld [vmem:[#allocation2 + $0x10] sm:$0xff]
  %2182 = vrot.lane.b32.xlu0 %v2176, 95
  %v2183 = vpop.permute.xlu0 %2182
  %2184 = vrot.lane.b32.xlu0 %v2177, 95
  %v2185 = vpop.permute.xlu0 %2184
  %2186 = vrot.lane.b32.xlu0 %v2178, 95
  %v2187 = vpop.permute.xlu0 %2186
  %v2188 = vsel %vm478, %v2183, %v2185
  %v2189 = vsel %vm478, %v2185, %v2187
  %2192 = vst [vmem:[#allocation3 + $0xe0] sm:$0xff] %v2188
  %2193 = vst [vmem:[#allocation3 + $0xe8] sm:$0xff] %v2189
  %v2194 = vld [vmem:[#allocation2 + $0x10] sm:$0xff]
  %v2195 = vld [vmem:[#allocation2 + $0x18] sm:$0xff]
  %v2196 = vld [vmem:[#allocation2 + $0x20] sm:$0xff]
  %2200 = vrot.lane.b32.xlu0 %v2194, 61
  %v2201 = vpop.permute.xlu0 %2200
  %2202 = vrot.lane.b32.xlu0 %v2195, 61
  %v2203 = vpop.permute.xlu0 %2202
  %2204 = vrot.lane.b32.xlu0 %v2196, 61
  %v2205 = vpop.permute.xlu0 %2204
  %v2206 = vsel %vm497, %v2201, %v2203
  %v2207 = vsel %vm497, %v2203, %v2205
  %2210 = vst [vmem:[#allocation3 + $0xf0] sm:$0xff] %v2206
  %2211 = vst [vmem:[#allocation3 + $0xf8] sm:$0xff] %v2207
  %v2212 = vld [vmem:[#allocation2] sm:$0xff]
  %v2213 = vld [vmem:[#allocation2 + $0x8] sm:$0xff]
  %v2214 = vld [vmem:[#allocation2 + $0x10] sm:$0xff]
  %v2215 = vmul.f32 %v2212, %v508
  %v2216 = vmul.f32 %v2213, %v511
  %v2217 = vmul.f32 %v2214, %v510
  %2221 = vrot.lane.b32.xlu0 %v2215, 94
  %v2222 = vpop.permute.xlu0 %2221
  %2223 = vrot.lane.b32.xlu0 %v2216, 94
  %v2224 = vpop.permute.xlu0 %2223
  %2225 = vrot.lane.b32.xlu0 %v2217, 94
  %v2226 = vpop.permute.xlu0 %2225
  %v2227 = vsel %vm126, %v2222, %v2224
  %v2228 = vsel %vm126, %v2224, %v2226
  %2231 = vst [vmem:[#allocation3 + $0x100] sm:$0xff] %v2227
  %2232 = vst [vmem:[#allocation3 + $0x108] sm:$0xff] %v2228
  %v2233 = vld [vmem:[#allocation2 + $0x10] sm:$0xff]
  %v2234 = vld [vmem:[#allocation2 + $0x18] sm:$0xff]
  %v2235 = vld [vmem:[#allocation2 + $0x20] sm:$0xff]
  %v2236 = vmul.f32 %v2233, %v537
  %v2237 = vmul.f32 %v2234, %v541
  %v2238 = vmul.f32 %v2235, %v539
  %2242 = vrot.lane.b32.xlu0 %v2236, 60
  %v2243 = vpop.permute.xlu0 %2242
  %2244 = vrot.lane.b32.xlu0 %v2237, 60
  %v2245 = vpop.permute.xlu0 %2244
  %2246 = vrot.lane.b32.xlu0 %v2238, 60
  %v2247 = vpop.permute.xlu0 %2246
  %v2248 = vsel %vm557, %v2243, %v2245
  %v2249 = vsel %vm557, %v2245, %v2247
  %2252 = vst [vmem:[#allocation3 + $0x110] sm:$0xff] %v2248
  %2253 = vst [vmem:[#allocation3 + $0x118] sm:$0xff] %v2249
  %v2254 = vld [vmem:[%s10] sm:$0xff]
  %v2255 = vld [vmem:[#allocation3] sm:$0xff]
  %v2256 = vld [vmem:[#allocation3 + $0x8] sm:$0xff]
  %v2257 = vld [vmem:[#allocation3 + $0x10] sm:$0xff]
  %v2258 = vld [vmem:[#allocation3 + $0x18] sm:$0xff]
  %v2259 = vld [vmem:[#allocation3 + $0x20] sm:$0xff]
  %v2260 = vld [vmem:[#allocation3 + $0x28] sm:$0xff]
  %v2261 = vld [vmem:[#allocation3 + $0x30] sm:$0xff]
  %v2262 = vld [vmem:[#allocation3 + $0x38] sm:$0xff]
  %v2263 = vld [vmem:[#allocation3 + $0x40] sm:$0xff]
  %v2264 = vld [vmem:[#allocation3 + $0x48] sm:$0xff]
  %v2265 = vld [vmem:[#allocation3 + $0x50] sm:$0xff]
  %v2266 = vld [vmem:[#allocation3 + $0x58] sm:$0xff]
  %v2267 = vld [vmem:[#allocation3 + $0x60] sm:$0xff]
  %v2268 = vld [vmem:[#allocation3 + $0x68] sm:$0xff]
  %v2269 = vld [vmem:[#allocation3 + $0x70] sm:$0xff]
  %v2270 = vld [vmem:[#allocation3 + $0x78] sm:$0xff]
  %v2271 = vld [vmem:[#allocation3 + $0x80] sm:$0xff]
  %v2272 = vld [vmem:[#allocation3 + $0x88] sm:$0xff]
  %v2273 = vld [vmem:[#allocation3 + $0x90] sm:$0xff]
  %v2274 = vld [vmem:[#allocation3 + $0x98] sm:$0xff]
  %v2275 = vld [vmem:[#allocation3 + $0xa0] sm:$0xff]
  %v2276 = vld [vmem:[#allocation3 + $0xa8] sm:$0xff]
  %v2277 = vld [vmem:[#allocation3 + $0xb0] sm:$0xff]
  %v2278 = vld [vmem:[#allocation3 + $0xb8] sm:$0xff]
  %v2279 = vld [vmem:[#allocation3 + $0xc0] sm:$0xff]
  %v2280 = vld [vmem:[#allocation3 + $0xc8] sm:$0xff]
  %v2281 = vld [vmem:[#allocation3 + $0xd0] sm:$0xff]
  %v2282 = vld [vmem:[#allocation3 + $0xd8] sm:$0xff]
  %v2283 = vld [vmem:[#allocation3 + $0xe0] sm:$0xff]
  %v2284 = vld [vmem:[#allocation3 + $0xe8] sm:$0xff]
  %v2285 = vld [vmem:[#allocation3 + $0xf0] sm:$0xff]
  %v2286 = vld [vmem:[#allocation3 + $0xf8] sm:$0xff]
  %v2287 = vld [vmem:[#allocation3 + $0x100] sm:$0xff]
  %v2288 = vld [vmem:[#allocation3 + $0x108] sm:$0xff]
  %v2289 = vld [vmem:[#allocation3 + $0x110] sm:$0xff]
  %v2290 = vld [vmem:[#allocation3 + $0x118] sm:$0xff]
  %v2291 = vld [vmem:[%s11] sm:$0xff]
  %2293 = vset.pattern.permute.xlu0 0
  %2294 = vperm.xlu0 %2293, %v2291
  %v2295 = vpop.permute.xlu0 %2294
  %v2298 = vsel %vm607, %v2254, 0
  %2300 = vmatprep.subr.mxu0 %v2256
  %2301 = vmatpush1.msra.mxu0 %v2255
  %2302 = vmatprep.subr.mxu0 %v2260
  %2303 = vmatpush1.msra.mxu0 %v2259
  %2304 = vmatprep.subr.mxu0 %v2264
  %2305 = vmatpush1.msra.mxu0 %v2263
  %2306 = vmatprep.subr.mxu0 %v2268
  %2307 = vmatpush1.msra.mxu0 %v2267
  %2308 = vmatprep.subr.mxu0 %v2272
  %2309 = vmatpush1.msra.mxu0 %v2271
  %2310 = vmatprep.subr.mxu0 %v2276
  %2311 = vmatpush1.msra.mxu0 %v2275
  %2312 = vmatprep.subr.mxu0 %v2280
  %2313 = vmatpush1.msra.mxu0 %v2279
  %2314 = vmatprep.subr.mxu0 %v2284
  %2315 = vmatpush1.msra.mxu0 %v2283
  %2316 = vmatprep.subr.mxu0 %v2288
  %2317 = vmatpush1.msra.mxu0 %v2287
  %2318 = vmatprep.subr.mxu0 0.0
  %2319 = vmatpush1.msra.mxu0 0.0
  %2320 = vmatprep.subr.mxu0 0.0
  %2321 = vmatpush1.msra.mxu0 0.0
  %2322 = vmatprep.subr.mxu0 0.0
  %2323 = vmatpush1.msra.mxu0 0.0
  %2324 = vmatprep.subr.mxu0 0.0
  %2325 = vmatpush1.msra.mxu0 0.0
  %2326 = vmatprep.subr.mxu0 0.0
  %2327 = vmatpush1.msra.mxu0 0.0
  %2328 = vmatprep.subr.mxu0 0.0
  %2329 = vmatpush1.msra.mxu0 0.0
  %2330 = vmatprep.subr.mxu0 0.0
  %2331 = vmatpush1.msra.mxu0 0.0
  %2332 = vmatprep.subr.mxu0 0.0
  %2333 = vmatpush1.msra.mxu0 0.0
  %2334 = vmatprep.subr.mxu0 0.0
  %2335 = vmatpush1.msra.mxu0 0.0
  %2336 = vmatprep.subr.mxu0 0.0
  %2337 = vmatpush1.msra.mxu0 0.0
  %2338 = vmatprep.subr.mxu0 0.0
  %2339 = vmatpush1.msra.mxu0 0.0
  %2340 = vmatprep.subr.mxu0 0.0
  %2341 = vmatpush1.msra.mxu0 0.0
  %2342 = vmatprep.subr.mxu0 0.0
  %2343 = vmatpush1.msra.mxu0 0.0
  %2344 = vmatprep.subr.mxu0 0.0
  %2345 = vmatpush1.msra.mxu0 0.0
  %2346 = vmatprep.subr.mxu0 0.0
  %2347 = vmatpush1.msra.mxu0 0.0
  %2348 = vmatprep.subr.mxu0 0.0
  %2349 = vmatpush1.msra.mxu0 0.0
  %2350 = vmatprep.subr.mxu0 0.0
  %2351 = vmatpush1.msra.mxu0 0.0
  %2352 = vmatprep.subr.mxu0 0.0
  %2353 = vmatpush1.msra.mxu0 0.0
  %2354 = vmatprep.subr.mxu0 0.0
  %2355 = vmatpush1.msra.mxu0 0.0
  %2356 = vmatprep.subr.mxu0 0.0
  %2357 = vmatpush1.msra.mxu0 0.0
  %2358 = vmatprep.subr.mxu0 0.0
  %2359 = vmatpush1.msra.mxu0 0.0
  %2360 = vmatprep.subr.mxu0 0.0
  %2361 = vmatpush1.msra.mxu0 0.0
  %2362 = vmatprep.subr.mxu0 0.0
  %2363 = vmatpush1.msra.mxu0 0.0
  %2364 = vmatprep.mubr.f32.mxu0 0.0
  %2365 = vmatmul.mubr.f32.gmra.mrb[0].mxu0 %v2298
  %v2366 = vpop.f32.mrb[0].mxu0
  %v2367 = vadd.f32 %v2295, %v2366
  %v2368 = vpop.f32.mrb[0].mxu0
  %v2369 = vadd.f32 %v2295, %v2368
  %2370 = vdwg.mxu0
  %2371 = vmatprep.subr.mxu0 %v2258
  %2372 = vmatpush1.msra.mxu0 %v2257
  %2373 = vmatprep.subr.mxu0 %v2262
  %2374 = vmatpush1.msra.mxu0 %v2261
  %2375 = vmatprep.subr.mxu0 %v2266
  %2376 = vmatpush1.msra.mxu0 %v2265
  %2377 = vmatprep.subr.mxu0 %v2270
  %2378 = vmatpush1.msra.mxu0 %v2269
  %2379 = vmatprep.subr.mxu0 %v2274
  %2380 = vmatpush1.msra.mxu0 %v2273
  %2381 = vmatprep.subr.mxu0 %v2278
  %2382 = vmatpush1.msra.mxu0 %v2277
  %2383 = vmatprep.subr.mxu0 %v2282
  %2384 = vmatpush1.msra.mxu0 %v2281
  %2385 = vmatprep.subr.mxu0 %v2286
  %2386 = vmatpush1.msra.mxu0 %v2285
  %2387 = vmatprep.subr.mxu0 %v2290
  %2388 = vmatpush1.msra.mxu0 %v2289
  %2389 = vmatprep.subr.mxu0 0.0
  %2390 = vmatpush1.msra.mxu0 0.0
  %2391 = vmatprep.subr.mxu0 0.0
  %2392 = vmatpush1.msra.mxu0 0.0
  %2393 = vmatprep.subr.mxu0 0.0
  %2394 = vmatpush1.msra.mxu0 0.0
  %2395 = vmatprep.subr.mxu0 0.0
  %2396 = vmatpush1.msra.mxu0 0.0
  %2397 = vmatprep.subr.mxu0 0.0
  %2398 = vmatpush1.msra.mxu0 0.0
  %2399 = vmatprep.subr.mxu0 0.0
  %2400 = vmatpush1.msra.mxu0 0.0
  %2401 = vmatprep.subr.mxu0 0.0
  %2402 = vmatpush1.msra.mxu0 0.0
  %2403 = vmatprep.subr.mxu0 0.0
  %2404 = vmatpush1.msra.mxu0 0.0
  %2405 = vmatprep.subr.mxu0 0.0
  %2406 = vmatpush1.msra.mxu0 0.0
  %2407 = vmatprep.subr.mxu0 0.0
  %2408 = vmatpush1.msra.mxu0 0.0
  %2409 = vmatprep.subr.mxu0 0.0
  %2410 = vmatpush1.msra.mxu0 0.0
  %2411 = vmatprep.subr.mxu0 0.0
  %2412 = vmatpush1.msra.mxu0 0.0
  %2413 = vmatprep.subr.mxu0 0.0
  %2414 = vmatpush1.msra.mxu0 0.0
  %2415 = vmatprep.subr.mxu0 0.0
  %2416 = vmatpush1.msra.mxu0 0.0
  %2417 = vmatprep.subr.mxu0 0.0
  %2418 = vmatpush1.msra.mxu0 0.0
  %2419 = vmatprep.subr.mxu0 0.0
  %2420 = vmatpush1.msra.mxu0 0.0
  %2421 = vmatprep.subr.mxu0 0.0
  %2422 = vmatpush1.msra.mxu0 0.0
  %2423 = vmatprep.subr.mxu0 0.0
  %2424 = vmatpush1.msra.mxu0 0.0
  %2425 = vmatprep.subr.mxu0 0.0
  %2426 = vmatpush1.msra.mxu0 0.0
  %2427 = vmatprep.subr.mxu0 0.0
  %2428 = vmatpush1.msra.mxu0 0.0
  %2429 = vmatprep.subr.mxu0 0.0
  %2430 = vmatpush1.msra.mxu0 0.0
  %2431 = vmatprep.subr.mxu0 0.0
  %2432 = vmatpush1.msra.mxu0 0.0
  %2433 = vmatprep.subr.mxu0 0.0
  %2434 = vmatpush1.msra.mxu0 0.0
  %2435 = vmatprep.mubr.f32.mxu0 0.0
  %2436 = vmatmul.mubr.f32.gmra.mrb[0].mxu0 %v2298
  %v2437 = vpop.f32.mrb[0].mxu0
  %v2438 = vadd.f32 %v2295, %v2437
  %v2439 = vpop.f32.mrb[0].mxu0
  %v2440 = vadd.f32 %v2295, %v2439
  %2441 = vdwg.mxu0
  %v2442 = vmax.f32 %v2367, 0.0
  %v2443 = vmax.f32 %v2369, 0.0
  %v2444 = vmax.f32 %v2438, 0.0
  %v2445 = vmax.f32 %v2440, 0.0
  %2448 = vrot.lane.b32.xlu0 %v2442, 17
  %v2449 = vpop.permute.xlu0 %2448
  %2450 = vrot.lane.b32.xlu0 %v2443, 17
  %v2451 = vpop.permute.xlu0 %2450
  %v2452 = vsel %vm43, %v2449, %v2451
  %2456 = vst.msk [vmem:[#allocation2] sm:$0xff] %vm59, %v2449
  %2457 = vst [vmem:[#allocation2 + $0x8] sm:$0xff] %v2452
  %2458 = vst.msk [vmem:[#allocation2 + $0x10] sm:$0xff] %vm43, %v2451
  %2461 = vrot.lane.b32.xlu0 %v2444, 51
  %v2462 = vpop.permute.xlu0 %2461
  %2463 = vrot.lane.b32.xlu0 %v2445, 51
  %v2464 = vpop.permute.xlu0 %2463
  %v2465 = vsel %vm76, %v2462, %v2464
  %2469 = vst.msk [vmem:[#allocation2 + $0x10] sm:$0xff] %vm81, %v2462
  %2470 = vst [vmem:[#allocation2 + $0x18] sm:$0xff] %v2465
  %2471 = vst.msk [vmem:[#allocation2 + $0x20] sm:$0xff] %vm76, %v2464
  %v2472 = vld [vmem:[#allocation2] sm:$0xff]
  %v2473 = vld [vmem:[#allocation2 + $0x8] sm:$0xff]
  %v2474 = vld [vmem:[#allocation2 + $0x10] sm:$0xff]
  %2478 = vrot.lane.b32.xlu0 %v2472, 110
  %v2479 = vpop.permute.xlu0 %2478
  %2480 = vrot.lane.b32.xlu0 %v2473, 110
  %v2481 = vpop.permute.xlu0 %2480
  %2482 = vrot.lane.b32.xlu0 %v2474, 110
  %v2483 = vpop.permute.xlu0 %2482
  %v2484 = vsel %vm366, %v2479, %v2481
  %v2485 = vsel %vm366, %v2481, %v2483
  %2488 = vst [vmem:[#allocation3] sm:$0xff] %v2484
  %2489 = vst [vmem:[#allocation3 + $0x8] sm:$0xff] %v2485
  %v2490 = vld [vmem:[#allocation2 + $0x10] sm:$0xff]
  %v2491 = vld [vmem:[#allocation2 + $0x18] sm:$0xff]
  %v2492 = vld [vmem:[#allocation2 + $0x20] sm:$0xff]
  %2496 = vrot.lane.b32.xlu0 %v2490, 76
  %v2497 = vpop.permute.xlu0 %2496
  %2498 = vrot.lane.b32.xlu0 %v2491, 76
  %v2499 = vpop.permute.xlu0 %2498
  %2500 = vrot.lane.b32.xlu0 %v2492, 76
  %v2501 = vpop.permute.xlu0 %2500
  %v2502 = vsel %vm397, %v2497, %v2499
  %v2503 = vsel %vm397, %v2499, %v2501
  %2506 = vst [vmem:[#allocation3 + $0x10] sm:$0xff] %v2502
  %2507 = vst [vmem:[#allocation3 + $0x18] sm:$0xff] %v2503
  %v2508 = vld [vmem:[#allocation2] sm:$0xff]
  %v2509 = vld [vmem:[#allocation2 + $0x8] sm:$0xff]
  %v2510 = vld [vmem:[#allocation2 + $0x10] sm:$0xff]
  %2514 = vrot.lane.b32.xlu0 %v2508, 95
  %v2515 = vpop.permute.xlu0 %2514
  %2516 = vrot.lane.b32.xlu0 %v2509, 95
  %v2517 = vpop.permute.xlu0 %2516
  %2518 = vrot.lane.b32.xlu0 %v2510, 95
  %v2519 = vpop.permute.xlu0 %2518
  %v2520 = vsel %vm478, %v2515, %v2517
  %v2521 = vsel %vm478, %v2517, %v2519
  %2524 = vst [vmem:[#allocation3 + $0x20] sm:$0xff] %v2520
  %2525 = vst [vmem:[#allocation3 + $0x28] sm:$0xff] %v2521
  %v2526 = vld [vmem:[#allocation2 + $0x10] sm:$0xff]
  %v2527 = vld [vmem:[#allocation2 + $0x18] sm:$0xff]
  %v2528 = vld [vmem:[#allocation2 + $0x20] sm:$0xff]
  %2532 = vrot.lane.b32.xlu0 %v2526, 61
  %v2533 = vpop.permute.xlu0 %2532
  %2534 = vrot.lane.b32.xlu0 %v2527, 61
  %v2535 = vpop.permute.xlu0 %2534
  %2536 = vrot.lane.b32.xlu0 %v2528, 61
  %v2537 = vpop.permute.xlu0 %2536
  %v2538 = vsel %vm497, %v2533, %v2535
  %v2539 = vsel %vm497, %v2535, %v2537
  %2542 = vst [vmem:[#allocation3 + $0x30] sm:$0xff] %v2538
  %2543 = vst [vmem:[#allocation3 + $0x38] sm:$0xff] %v2539
  %v2544 = vld [vmem:[#allocation2] sm:$0xff]
  %v2545 = vld [vmem:[#allocation2 + $0x8] sm:$0xff]
  %v2546 = vld [vmem:[#allocation2 + $0x10] sm:$0xff]
  %2550 = vrot.lane.b32.xlu0 %v2544, 94
  %v2551 = vpop.permute.xlu0 %2550
  %2552 = vrot.lane.b32.xlu0 %v2545, 94
  %v2553 = vpop.permute.xlu0 %2552
  %2554 = vrot.lane.b32.xlu0 %v2546, 94
  %v2555 = vpop.permute.xlu0 %2554
  %v2556 = vsel %vm126, %v2551, %v2553
  %v2557 = vsel %vm126, %v2553, %v2555
  %2560 = vst [vmem:[#allocation3 + $0x40] sm:$0xff] %v2556
  %2561 = vst [vmem:[#allocation3 + $0x48] sm:$0xff] %v2557
  %v2562 = vld [vmem:[#allocation2 + $0x10] sm:$0xff]
  %v2563 = vld [vmem:[#allocation2 + $0x18] sm:$0xff]
  %v2564 = vld [vmem:[#allocation2 + $0x20] sm:$0xff]
  %2568 = vrot.lane.b32.xlu0 %v2562, 60
  %v2569 = vpop.permute.xlu0 %2568
  %2570 = vrot.lane.b32.xlu0 %v2563, 60
  %v2571 = vpop.permute.xlu0 %2570
  %2572 = vrot.lane.b32.xlu0 %v2564, 60
  %v2573 = vpop.permute.xlu0 %2572
  %v2574 = vsel %vm557, %v2569, %v2571
  %v2575 = vsel %vm557, %v2571, %v2573
  %2578 = vst [vmem:[#allocation3 + $0x50] sm:$0xff] %v2574
  %2579 = vst [vmem:[#allocation3 + $0x58] sm:$0xff] %v2575
  %v2580 = vld [vmem:[#allocation3] sm:$0xff]
  %v2581 = vld [vmem:[#allocation3 + $0x8] sm:$0xff]
  %v2582 = vld [vmem:[#allocation3 + $0x10] sm:$0xff]
  %v2583 = vld [vmem:[#allocation3 + $0x18] sm:$0xff]
  %v2584 = vmax.f32 %v2442, %v2580
  %v2585 = vmax.f32 %v2443, %v2581
  %v2586 = vmax.f32 %v2444, %v2582
  %v2587 = vmax.f32 %v2445, %v2583
  %v2588 = vld [vmem:[#allocation3 + $0x20] sm:$0xff]
  %v2589 = vld [vmem:[#allocation3 + $0x28] sm:$0xff]
  %v2590 = vld [vmem:[#allocation3 + $0x30] sm:$0xff]
  %v2591 = vld [vmem:[#allocation3 + $0x38] sm:$0xff]
  %v2592 = vmax.f32 %v2584, %v2588
  %v2593 = vmax.f32 %v2585, %v2589
  %v2594 = vmax.f32 %v2586, %v2590
  %v2595 = vmax.f32 %v2587, %v2591
  %v2596 = vld [vmem:[#allocation3 + $0x40] sm:$0xff]
  %v2597 = vld [vmem:[#allocation3 + $0x48] sm:$0xff]
  %v2598 = vld [vmem:[#allocation3 + $0x50] sm:$0xff]
  %v2599 = vld [vmem:[#allocation3 + $0x58] sm:$0xff]
  %v2600 = vmax.f32 %v2592, %v2596
  %v2601 = vmax.f32 %v2593, %v2597
  %v2602 = vmax.f32 %v2594, %v2598
  %v2603 = vmax.f32 %v2595, %v2599
  %v2604 = vld [vmem:[%s3] sm:$0xff]
  %v2605 = vld [vmem:[%s3 + $0x8] sm:$0xff]
  %v2606 = vld [vmem:[%s3 + $0x10] sm:$0xff]
  %v2607 = vld [vmem:[%s3 + $0x18] sm:$0xff]
  %v2608 = vld [vmem:[%s3 + $0x20] sm:$0xff]
  %v2609 = vld [vmem:[%s3 + $0x28] sm:$0xff]
  %v2610 = vld [vmem:[%s3 + $0x30] sm:$0xff]
  %v2611 = vld [vmem:[%s3 + $0x38] sm:$0xff]
  %v2612 = vld [vmem:[%s3 + $0x40] sm:$0xff]
  %v2613 = vld [vmem:[%s3 + $0x48] sm:$0xff]
  %v2614 = vld [vmem:[%s3 + $0x50] sm:$0xff]
  %v2615 = vld [vmem:[%s3 + $0x58] sm:$0xff]
  %v2616 = vld [vmem:[%s3 + $0x60] sm:$0xff]
  %v2617 = vld [vmem:[%s3 + $0x68] sm:$0xff]
  %v2618 = vld [vmem:[%s3 + $0x70] sm:$0xff]
  %v2619 = vld [vmem:[%s3 + $0x78] sm:$0xff]
  %v2620 = vld [vmem:[%s3 + $0x80] sm:$0xff]
  %v2621 = vld [vmem:[%s3 + $0x88] sm:$0xff]
  %v2622 = vld [vmem:[%s3 + $0x90] sm:$0xff]
  %v2623 = vld [vmem:[%s3 + $0x98] sm:$0xff]
  %v2624 = vld [vmem:[%s3 + $0xa0] sm:$0xff]
  %v2625 = vld [vmem:[%s3 + $0xa8] sm:$0xff]
  %v2626 = vld [vmem:[%s3 + $0xb0] sm:$0xff]
  %v2627 = vld [vmem:[%s3 + $0xb8] sm:$0xff]
  %v2628 = vld [vmem:[%s3 + $0xc0] sm:$0xff]
  %v2629 = vld [vmem:[%s3 + $0xc8] sm:$0xff]
  %v2630 = vld [vmem:[%s3 + $0xd0] sm:$0xff]
  %v2631 = vld [vmem:[%s3 + $0xd8] sm:$0xff]
  %v2632 = vld [vmem:[%s3 + $0xe0] sm:$0xff]
  %v2633 = vld [vmem:[%s3 + $0xe8] sm:$0xff]
  %v2634 = vld [vmem:[%s3 + $0xf0] sm:$0xff]
  %v2635 = vld [vmem:[%s3 + $0xf8] sm:$0xff]
  %v2636 = vld [vmem:[%s3 + $0x100] sm:$0xff]
  %v2637 = vld [vmem:[%s3 + $0x108] sm:$0xff]
  %v2638 = vld [vmem:[%s3 + $0x110] sm:$0xff]
  %v2639 = vld [vmem:[%s3 + $0x118] sm:$0xff]
  %v2640 = vld [vmem:[%s3 + $0x120] sm:$0xff]
  %v2641 = vld [vmem:[%s3 + $0x128] sm:$0xff]
  %v2642 = vld [vmem:[%s3 + $0x130] sm:$0xff]
  %v2643 = vld [vmem:[%s3 + $0x138] sm:$0xff]
  %v2644 = vld [vmem:[%s3 + $0x140] sm:$0xff]
  %v2645 = vld [vmem:[%s3 + $0x148] sm:$0xff]
  %v2646 = vld [vmem:[%s3 + $0x150] sm:$0xff]
  %v2647 = vld [vmem:[%s3 + $0x158] sm:$0xff]
  %v2648 = vld [vmem:[%s3 + $0x160] sm:$0xff]
  %v2649 = vld [vmem:[%s3 + $0x168] sm:$0xff]
  %v2650 = vld [vmem:[%s3 + $0x170] sm:$0xff]
  %v2651 = vld [vmem:[%s3 + $0x178] sm:$0xff]
  %v2652 = vld [vmem:[%s3 + $0x180] sm:$0xff]
  %v2653 = vld [vmem:[%s3 + $0x188] sm:$0xff]
  %v2654 = vld [vmem:[%s3 + $0x190] sm:$0xff]
  %v2655 = vld [vmem:[%s3 + $0x198] sm:$0xff]
  %v2656 = vld [vmem:[%s3 + $0x1a0] sm:$0xff]
  %v2657 = vld [vmem:[%s3 + $0x1a8] sm:$0xff]
  %v2658 = vld [vmem:[%s3 + $0x1b0] sm:$0xff]
  %v2659 = vld [vmem:[%s3 + $0x1b8] sm:$0xff]
  %v2660 = vld [vmem:[%s3 + $0x1c0] sm:$0xff]
  %v2661 = vld [vmem:[%s3 + $0x1c8] sm:$0xff]
  %v2662 = vld [vmem:[%s3 + $0x1d0] sm:$0xff]
  %v2663 = vld [vmem:[%s3 + $0x1d8] sm:$0xff]
  %v2664 = vld [vmem:[%s3 + $0x1e0] sm:$0xff]
  %v2665 = vld [vmem:[%s3 + $0x1e8] sm:$0xff]
  %v2666 = vld [vmem:[%s3 + $0x1f0] sm:$0xff]
  %v2667 = vld [vmem:[%s3 + $0x1f8] sm:$0xff]
  %2668 = vmatprep.subr.mxu0 0.0
  %2669 = vmatpush1.msra.mxu0 %v2604
  %2670 = vmatprep.subr.mxu0 0.0
  %2671 = vmatpush1.msra.mxu0 %v2605
  %2672 = vmatprep.subr.mxu0 0.0
  %2673 = vmatpush1.msra.mxu0 %v2606
  %2674 = vmatprep.subr.mxu0 0.0
  %2675 = vmatpush1.msra.mxu0 %v2607
  %2676 = vmatprep.subr.mxu0 0.0
  %2677 = vmatpush1.msra.mxu0 %v2608
  %2678 = vmatprep.subr.mxu0 0.0
  %2679 = vmatpush1.msra.mxu0 %v2609
  %2680 = vmatprep.subr.mxu0 0.0
  %2681 = vmatpush1.msra.mxu0 %v2610
  %2682 = vmatprep.subr.mxu0 0.0
  %2683 = vmatpush1.msra.mxu0 %v2611
  %2684 = vmatprep.subr.mxu0 0.0
  %2685 = vmatpush1.msra.mxu0 %v2612
  %2686 = vmatprep.subr.mxu0 0.0
  %2687 = vmatpush1.msra.mxu0 %v2613
  %2688 = vmatprep.subr.mxu0 0.0
  %2689 = vmatpush1.msra.mxu0 %v2614
  %2690 = vmatprep.subr.mxu0 0.0
  %2691 = vmatpush1.msra.mxu0 %v2615
  %2692 = vmatprep.subr.mxu0 0.0
  %2693 = vmatpush1.msra.mxu0 %v2616
  %2694 = vmatprep.subr.mxu0 0.0
  %2695 = vmatpush1.msra.mxu0 %v2617
  %2696 = vmatprep.subr.mxu0 0.0
  %2697 = vmatpush1.msra.mxu0 %v2618
  %2698 = vmatprep.subr.mxu0 0.0
  %2699 = vmatpush1.msra.mxu0 %v2619
  %2700 = vmatprep.subr.mxu0 0.0
  %2701 = vmatpush1.msra.mxu0 %v2620
  %2702 = vmatprep.subr.mxu0 0.0
  %2703 = vmatpush1.msra.mxu0 %v2621
  %2704 = vmatprep.subr.mxu0 0.0
  %2705 = vmatpush1.msra.mxu0 %v2622
  %2706 = vmatprep.subr.mxu0 0.0
  %2707 = vmatpush1.msra.mxu0 %v2623
  %2708 = vmatprep.subr.mxu0 0.0
  %2709 = vmatpush1.msra.mxu0 %v2624
  %2710 = vmatprep.subr.mxu0 0.0
  %2711 = vmatpush1.msra.mxu0 %v2625
  %2712 = vmatprep.subr.mxu0 0.0
  %2713 = vmatpush1.msra.mxu0 %v2626
  %2714 = vmatprep.subr.mxu0 0.0
  %2715 = vmatpush1.msra.mxu0 %v2627
  %2716 = vmatprep.subr.mxu0 0.0
  %2717 = vmatpush1.msra.mxu0 %v2628
  %2718 = vmatprep.subr.mxu0 0.0
  %2719 = vmatpush1.msra.mxu0 %v2629
  %2720 = vmatprep.subr.mxu0 0.0
  %2721 = vmatpush1.msra.mxu0 %v2630
  %2722 = vmatprep.subr.mxu0 0.0
  %2723 = vmatpush1.msra.mxu0 %v2631
  %2724 = vmatprep.subr.mxu0 0.0
  %2725 = vmatpush1.msra.mxu0 %v2632
  %2726 = vmatprep.subr.mxu0 0.0
  %2727 = vmatpush1.msra.mxu0 %v2633
  %2728 = vmatprep.subr.mxu0 0.0
  %2729 = vmatpush1.msra.mxu0 %v2634
  %2730 = vmatprep.subr.mxu0 0.0
  %2731 = vmatpush1.msra.mxu0 %v2635
  %2732 = vmatprep.mubr.f32.mxu0 %v2601
  %2733 = vmatmul.mubr.f32.gmra.mrb[0].mxu0 %v2600
  %v2734 = vpop.f32.mrb[0].mxu0
  %v2735 = vadd.f32 0.0, %v2734
  %v2736 = vpop.f32.mrb[0].mxu0
  %2737 = vdwg.mxu0
  %2738 = vmatprep.subr.mxu0 0.0
  %2739 = vmatpush1.msra.mxu0 %v2636
  %2740 = vmatprep.subr.mxu0 0.0
  %2741 = vmatpush1.msra.mxu0 %v2637
  %2742 = vmatprep.subr.mxu0 0.0
  %2743 = vmatpush1.msra.mxu0 %v2638
  %2744 = vmatprep.subr.mxu0 0.0
  %2745 = vmatpush1.msra.mxu0 %v2639
  %2746 = vmatprep.subr.mxu0 0.0
  %2747 = vmatpush1.msra.mxu0 %v2640
  %2748 = vmatprep.subr.mxu0 0.0
  %2749 = vmatpush1.msra.mxu0 %v2641
  %2750 = vmatprep.subr.mxu0 0.0
  %2751 = vmatpush1.msra.mxu0 %v2642
  %2752 = vmatprep.subr.mxu0 0.0
  %2753 = vmatpush1.msra.mxu0 %v2643
  %2754 = vmatprep.subr.mxu0 0.0
  %2755 = vmatpush1.msra.mxu0 %v2644
  %2756 = vmatprep.subr.mxu0 0.0
  %2757 = vmatpush1.msra.mxu0 %v2645
  %2758 = vmatprep.subr.mxu0 0.0
  %2759 = vmatpush1.msra.mxu0 %v2646
  %2760 = vmatprep.subr.mxu0 0.0
  %2761 = vmatpush1.msra.mxu0 %v2647
  %2762 = vmatprep.subr.mxu0 0.0
  %2763 = vmatpush1.msra.mxu0 %v2648
  %2764 = vmatprep.subr.mxu0 0.0
  %2765 = vmatpush1.msra.mxu0 %v2649
  %2766 = vmatprep.subr.mxu0 0.0
  %2767 = vmatpush1.msra.mxu0 %v2650
  %2768 = vmatprep.subr.mxu0 0.0
  %2769 = vmatpush1.msra.mxu0 %v2651
  %2770 = vmatprep.subr.mxu0 0.0
  %2771 = vmatpush1.msra.mxu0 %v2652
  %2772 = vmatprep.subr.mxu0 0.0
  %2773 = vmatpush1.msra.mxu0 %v2653
  %2774 = vmatprep.subr.mxu0 0.0
  %2775 = vmatpush1.msra.mxu0 %v2654
  %2776 = vmatprep.subr.mxu0 0.0
  %2777 = vmatpush1.msra.mxu0 %v2655
  %2778 = vmatprep.subr.mxu0 0.0
  %2779 = vmatpush1.msra.mxu0 %v2656
  %2780 = vmatprep.subr.mxu0 0.0
  %2781 = vmatpush1.msra.mxu0 %v2657
  %2782 = vmatprep.subr.mxu0 0.0
  %2783 = vmatpush1.msra.mxu0 %v2658
  %2784 = vmatprep.subr.mxu0 0.0
  %2785 = vmatpush1.msra.mxu0 %v2659
  %2786 = vmatprep.subr.mxu0 0.0
  %2787 = vmatpush1.msra.mxu0 %v2660
  %2788 = vmatprep.subr.mxu0 0.0
  %2789 = vmatpush1.msra.mxu0 %v2661
  %2790 = vmatprep.subr.mxu0 0.0
  %2791 = vmatpush1.msra.mxu0 %v2662
  %2792 = vmatprep.subr.mxu0 0.0
  %2793 = vmatpush1.msra.mxu0 %v2663
  %2794 = vmatprep.subr.mxu0 0.0
  %2795 = vmatpush1.msra.mxu0 %v2664
  %2796 = vmatprep.subr.mxu0 0.0
  %2797 = vmatpush1.msra.mxu0 %v2665
  %2798 = vmatprep.subr.mxu0 0.0
  %2799 = vmatpush1.msra.mxu0 %v2666
  %2800 = vmatprep.subr.mxu0 0.0
  %2801 = vmatpush1.msra.mxu0 %v2667
  %2802 = vmatprep.mubr.f32.mxu0 %v2603
  %2803 = vmatmul.mubr.f32.gmra.mrb[0].mxu0 %v2602
  %v2804 = vpop.f32.mrb[0].mxu0
  %v2805 = vadd.f32 %v2735, %v2804
  %v2806 = vpop.f32.mrb[0].mxu0
  %2807 = vdwg.mxu0
  %2808 = vst [vmem:[%s12] sm:$0xff] %v2805
  // Predicated region
  $region50: #{block_quad_forward.1} parent=0 // pred_check
    _
  $region51: #{block_quad_forward.1} parent=0 // pred_check_branch
    %2810 = sbr.rel (0) target = $region53
  $region52: #{block_quad_forward.1} parent=0 // pred_region
    _
  $region53: #{block_quad_forward.1} parent=0 // pred_fallthru
    _
  // Predicated region
  $region54: #{block_quad_forward.1} parent=0 // pred_check
    _
  $region55: #{block_quad_forward.1} parent=0 // pred_check_branch
    %2812 = sbr.rel (0) target = $region57
  $region56: #{block_quad_forward.1} parent=0 // pred_region
    _
  $region57: #{block_quad_forward.1} parent=0 // pred_fallthru
    _

</llo_original>
